<compile_context>
chip_gen: v5e
topology: v5e:2x2
jax: 0.10.0
libtpu: 0.0.40
codegen_flags: <defaults>
</compile_context>

<pallas_src>
import jax
import jax.numpy as jnp
from jax.experimental import pallas as pl
from jax.experimental.pallas import tpu as pltpu

# ----- shapes implied by the PyTorch module -----
Npix = 20
Nppix = 2
Nx = 2 * Npix * Nppix            # 80
Ny = 2 * Npix * Nppix            # 80
IN_FEATURES = 4 * Ny * Nx // 4   # 6400
OUT_FEATURES = 400

NKP = 2                          # number of K slabs (grid steps)
TK = IN_FEATURES // NKP          # 3200 (multiple of 128, lane-dense)


def _dot_contract_lanes(x_blk_f32, w_blk_bf16):
    """(B, TK) x (OUT, TK) -> (B, OUT): contract the lane-dense TK dims (A @ B^T)."""
    xb = x_blk_f32.astype(jnp.bfloat16)          # on-chip cast (VPU, free here)
    return jax.lax.dot_general(
        xb, w_blk_bf16,
        dimension_numbers=(((1,), (1,)), ((), ())),   # transposed-RHS MXU matmul
        preferred_element_type=jnp.float32,
    )


def _fused_kernel(x_ref, w_ref, b_ref, o_ref):
    """Single-TC path: accumulate into the resident f32 output block, fuse bias."""
    k = pl.program_id(0)

    @pl.when(k == 0)
    def _():
        o_ref[...] = jnp.zeros_like(o_ref)

    o_ref[...] += _dot_contract_lanes(x_ref[...], w_ref[...])

    @pl.when(k == pl.num_programs(0) - 1)
    def _():
        o_ref[...] += b_ref[...]


def _partial_kernel(x_ref, w_ref, o_ref):
    """Multi-TC (v7x) path: each K slab writes its own partial (race-free)."""
    o_ref[...] = _dot_contract_lanes(x_ref[...], w_ref[...])


def _is_multicore_tensorcore_chip():
    """True for chips with 2 TensorCores per device (v7x-class)."""
    try:
        kind = jax.devices()[0].device_kind.lower()
    except Exception:
        return False
    return ("v7" in kind) or ("7x" in kind)


_MULTICORE = _is_multicore_tensorcore_chip()


def backward_nn_forward(x, w_bf16, b):
    """y = x @ W^T + b, matching torch.nn.Linear(IN_FEATURES, OUT_FEATURES).

    x      : (B, IN_FEATURES) float32   (cast to bf16 on-chip)
    w_bf16 : (OUT_FEATURES, IN_FEATURES) bfloat16  -- torch-native layout, no transpose
    b      : (OUT_FEATURES,) float32
    """
    B, F = x.shape
    N, F2 = w_bf16.shape
    assert F == F2 == IN_FEATURES and N == OUT_FEATURES
    assert F % NKP == 0 and TK % 128 == 0

    cost = pl.CostEstimate(
        flops=2 * B * F * N,
        transcendentals=0,
        bytes_accessed=F * N * 2 + B * F * 4 + B * N * 4 + N * 4,
    )

    x_spec = pl.BlockSpec((B, TK), lambda k: (0, k))   # activation slab (f32, tiny)
    w_spec = pl.BlockSpec((N, TK), lambda k: (0, k))   # weight slab (bf16, lane-dense)

    if _MULTICORE:
        # v7x: stream one weight slab per TensorCore; per-slab partials are race-free.
        partials = pl.pallas_call(
            _partial_kernel,
            out_shape=jax.ShapeDtypeStruct((NKP, B, N), jnp.float32),
            grid_spec=pltpu.PrefetchScalarGridSpec(
                num_scalar_prefetch=0,
                grid=(NKP,),
                in_specs=[x_spec, w_spec],
                out_specs=pl.BlockSpec((None, B, N), lambda k: (k, 0, 0)),
            ),
            compiler_params=pltpu.CompilerParams(
                dimension_semantics=(pltpu.CORE_PARALLEL,),
            ),
            cost_estimate=cost,
        )(x, w_bf16)
        # Tiny (NKP, B, 400) reduction + bias add; negligible vs. the weight stream.
        return jnp.sum(partials, axis=0) + b

    # v5e / v6e: single TensorCore -> accumulate + bias entirely inside the kernel.
    return pl.pallas_call(
        _fused_kernel,
        out_shape=jax.ShapeDtypeStruct((B, N), jnp.float32),
        grid_spec=pltpu.PrefetchScalarGridSpec(
            num_scalar_prefetch=0,
            grid=(NKP,),
            in_specs=[x_spec, w_spec,
                      pl.BlockSpec((1, N), lambda k: (0, 0))],
            out_specs=pl.BlockSpec((B, N), lambda k: (0, 0)),
        ),
        compiler_params=pltpu.CompilerParams(
            dimension_semantics=("arbitrary",),
        ),
        cost_estimate=cost,
    )(x, w_bf16, b.reshape(1, N))


if __name__ == "__main__":
    key = jax.random.PRNGKey(0)
    kx, kw, kb = jax.random.split(key, 3)

    B = 2
    bound = 1.0 / jnp.sqrt(jnp.float32(IN_FEATURES))
    # torch-layout weight (out, in) with a deterministic uniform init
    w = jax.random.uniform(kw, (OUT_FEATURES, IN_FEATURES), jnp.float32, -bound, bound)
    b = jax.random.uniform(kb, (OUT_FEATURES,), jnp.float32, -bound, bound)
    x = jax.random.normal(kx, (B, IN_FEATURES), jnp.float32)

    # One-time parameter preparation (outside the per-call path): bf16 cast only,
    # torch-native (out, in) layout kept -> the 6400 dim stays lane-dense in HBM.
    w_bf16 = w.astype(jnp.bfloat16)

    fwd = jax.jit(backward_nn_forward)
    y = jax.block_until_ready(fwd(x, w_bf16, b))

    # Reference with the same bf16-quantized weights/activations (f32 accum),
    # isolating kernel correctness from the intentional bf16 quantization.
    y_ref = (x.astype(jnp.bfloat16).astype(jnp.float32)
             @ w_bf16.astype(jnp.float32).T) + b
    assert y.shape == (B, OUT_FEATURES)
    err = jnp.max(jnp.abs(y - y_ref))
    assert err < 2e-3, err

    print("KERNEL_OK")
</pallas_src>

<mosaic_0001>
module attributes {stable_mosaic.version = 11 : i64} {
  func.func @_fused_kernel(%arg0: i32, %arg1: memref<2x3200xf32, #tpu.memory_space<vmem>>, %arg2: memref<400x3200xbf16, #tpu.memory_space<vmem>>, %arg3: memref<1x400xf32, #tpu.memory_space<vmem>>, %arg4: memref<2x400xf32, #tpu.memory_space<vmem>>) attributes {dimension_semantics = [#tpu.dimension_semantics<arbitrary>], iteration_bounds = array<i64: 2>, scalar_prefetch = 0 : i64, scratch_operands = 0 : i64, tpu.core_type = #tpu.core_type<tc>, window_params = [{transform_indices = @transform_0, window_bounds = array<i64: 2, 3200>}, {transform_indices = @transform_1, window_bounds = array<i64: 400, 3200>}, {pipeline_mode = #tpu.pipeline_mode<synchronous>, transform_indices = @transform_2, window_bounds = array<i64: 1, 400>}, {pipeline_mode = #tpu.pipeline_mode<synchronous>, transform_indices = @transform_3, window_bounds = array<i64: 2, 400>}]} {
    %c0_i32 = arith.constant 0 : i32
    %0 = arith.cmpi eq, %arg0, %c0_i32 : i32
    %1 = arith.extui %0 : i1 to i32
    %c0_i32_0 = arith.constant 0 : i32
    %2 = arith.cmpi ne, %1, %c0_i32_0 : i32
    scf.if %2 {
      %cst_9 = arith.constant 0.000000e+00 : f32
      %13 = vector.broadcast %cst_9 : f32 to vector<2x400xf32>
      %c0_10 = arith.constant 0 : index
      %c0_11 = arith.constant 0 : index
      %14 = vector.load %arg4[%c0_10, %c0_11] : memref<2x400xf32, #tpu.memory_space<vmem>>, vector<2x400xf32>
      tpu.vector_store %arg4[%c0_10, %c0_11], %13 {strides = array<i32>} : memref<2x400xf32, #tpu.memory_space<vmem>>, vector<2x400xf32>,
    } else {
    }
    %c0 = arith.constant 0 : index
    %c0_1 = arith.constant 0 : index
    %3 = vector.load %arg4[%c0, %c0_1] : memref<2x400xf32, #tpu.memory_space<vmem>>, vector<2x400xf32>
    %c0_2 = arith.constant 0 : index
    %c0_3 = arith.constant 0 : index
    %4 = vector.load %arg1[%c0_2, %c0_3] : memref<2x3200xf32, #tpu.memory_space<vmem>>, vector<2x3200xf32>
    %c0_4 = arith.constant 0 : index
    %c0_5 = arith.constant 0 : index
    %5 = vector.load %arg2[%c0_4, %c0_5] : memref<400x3200xbf16, #tpu.memory_space<vmem>>, vector<400x3200xbf16>
    %6 = arith.truncf %4 : vector<2x3200xf32> to vector<2x3200xbf16>
    %cst = arith.constant dense<0.000000e+00> : vector<2x400xf32>
    %7 = tpu.matmul %6, %5, %cst {dimension_numbers = #tpu.dot_dimension_numbers<[1], [1], [0], [0], [0, 0, 1, 0], [], []>} : vector<2x3200xbf16>, vector<400x3200xbf16>, vector<2x400xf32> -> vector<2x400xf32>
    %8 = arith.addf %3, %7 : vector<2x400xf32>
    %c0_6 = arith.constant 0 : index
    %c0_7 = arith.constant 0 : index
    %9 = vector.load %arg4[%c0_6, %c0_7] : memref<2x400xf32, #tpu.memory_space<vmem>>, vector<2x400xf32>
    tpu.vector_store %arg4[%c0_6, %c0_7], %8 {strides = array<i32>} : memref<2x400xf32, #tpu.memory_space<vmem>>, vector<2x400xf32>,
    %c1_i32 = arith.constant 1 : i32
    %10 = arith.cmpi eq, %arg0, %c1_i32 : i32
    %11 = arith.extui %10 : i1 to i32
    %c0_i32_8 = arith.constant 0 : i32
    %12 = arith.cmpi ne, %11, %c0_i32_8 : i32
    scf.if %12 {
      %c0_9 = arith.constant 0 : index
      %c0_10 = arith.constant 0 : index
      %13 = vector.load %arg4[%c0_9, %c0_10] : memref<2x400xf32, #tpu.memory_space<vmem>>, vector<2x400xf32>
      %c0_11 = arith.constant 0 : index
      %c0_12 = arith.constant 0 : index
      %14 = vector.load %arg3[%c0_11, %c0_12] : memref<1x400xf32, #tpu.memory_space<vmem>>, vector<1x400xf32>
      %15 = vector.broadcast %14 : vector<1x400xf32> to vector<2x400xf32>
      %16 = arith.addf %13, %15 : vector<2x400xf32>
      %c0_13 = arith.constant 0 : index
      %c0_14 = arith.constant 0 : index
      %17 = vector.load %arg4[%c0_13, %c0_14] : memref<2x400xf32, #tpu.memory_space<vmem>>, vector<2x400xf32>
      tpu.vector_store %arg4[%c0_13, %c0_14], %16 {strides = array<i32>} : memref<2x400xf32, #tpu.memory_space<vmem>>, vector<2x400xf32>,
    } else {
    }
    return
  }
  func.func @transform_0(%arg0: i32) -> (i32, i32) {
    %c0_i32 = arith.constant 0 : i32
    %c0_i32_0 = arith.constant 0 : i32
    return %c0_i32, %arg0 : i32, i32
  }
  func.func @transform_1(%arg0: i32) -> (i32, i32) {
    %c0_i32 = arith.constant 0 : i32
    %c0_i32_0 = arith.constant 0 : i32
    return %c0_i32, %arg0 : i32, i32
  }
  func.func @transform_2(%arg0: i32) -> (i32, i32) {
    %c0_i32 = arith.constant 0 : i32
    %c0_i32_0 = arith.constant 0 : i32
    %c0_i32_1 = arith.constant 0 : i32
    return %c0_i32, %c0_i32_0 : i32, i32
  }
  func.func @transform_3(%arg0: i32) -> (i32, i32) {
    %c0_i32 = arith.constant 0 : i32
    %c0_i32_0 = arith.constant 0 : i32
    %c0_i32_1 = arith.constant 0 : i32
    return %c0_i32, %c0_i32_0 : i32, i32
  }
}

</mosaic_0001>

<llo_original>
// kernel: backward_nn_forward.1
$region0: #{backward_nn_forward.1}
  #allocation0 [shape = 'u32[]', space=smem, size = 0x4, offset = 0x4, fixed_abs, tag = 'smem constant byte address 0x4 - core index']
  #allocation1 [shape = 'u32[72,128]{1,0:T(1,128)}', space=vmem, size = 0x9000, scoped, tag = 'internal scratch']
  %s0 = inlined_call_operand.hbm [shape: f32[2,6400], index: 0, kind: input, shape index: {}]
  %s1 = inlined_call_operand.hbm [shape: bf16[400,6400], index: 1, kind: input, shape index: {}]
  %s2 = inlined_call_operand.hbm [shape: f32[1,400], index: 2, kind: input, shape index: {}]
  %s3 = inlined_call_operand.hbm [shape: f32[2,400], index: 3, kind: output, shape index: {}]
  %s4 = sld [smem:[#allocation0]]
  $region65: #{backward_nn_forward.1} parent=0
    _
  %s6 = ssub.s32 1, %s4
  %s7 = scalar_select 0, %s6, %s4
  $region1: #{backward_nn_forward.1} parent=0
    #allocation2 [shape = 'u8[51200]{0}', space=vmem, size = 0xc800, scoped, tag = 'input window, operand 0']
    #allocation3 [shape = 's32[2]{0}', space=sflag, size = 0x8, scoped, tag = 'scoped memory for backward_nn_forward.1']
    #allocation4 [shape = 's32[2]{0}', space=sflag, size = 0x8, scoped, tag = 'scoped memory for backward_nn_forward.1']
    #allocation5 [shape = 'u8[5120000]{0}', space=vmem, size = 0x4e2000, scoped, tag = 'input window, operand 1']
    #allocation6 [shape = 's32[2]{0}', space=sflag, size = 0x8, scoped, tag = 'scoped memory for backward_nn_forward.1']
    #allocation7 [shape = 'u8[2048]{0}', space=vmem, size = 0x800, scoped, tag = 'input window, operand 2, single buffered']
    #allocation8 [shape = 'u8[4096]{0}', space=vmem, size = 0x1000, scoped, tag = 'output window, operand 0, single buffered']
    %8 = vsyncpa [#allocation3], 0
    %s9 = scalar_lea.sflag [#allocation3], 1
    %10 = vsyncpa %s9, 0
    %11 = vsyncpa [#allocation6], 0
    %s12 = scalar_lea.sflag [#allocation6], 1
    %13 = vsyncpa %s12, 0
    %14 = vsyncpa [#allocation4], 0
    loop: start=0, step=1, limit=4
    $region2: #{backward_nn_forward.1} parent=1 // loop_pre_header
      _
    $region3: #{backward_nn_forward.1} parent=1 // loop_header
      %s16 = sphi 0, %s20
      %p17 = scmp.ge.s32.totalorder %s16, 4
      %s26 = sphi 0, %s28
      %s29 = sphi 0, %s26
      %s30 = sphi 0, %s29
      %s46 = sphi 0, %s30
      %s52 = sphi 0, %s54
      %s55 = sphi 0, %s52
      %s56 = sphi 0, %s55
      %s72 = sphi 0, %s56
      %s76 = sphi 0, %s76
      %s78 = sphi 0, %s76
      %s79 = sphi 0, %s78
      %s93 = sphi 0, %s79
      %s97 = sphi 0, %s97
      %s99 = sphi 0, %s97
      %s100 = sphi 0, %s99
      %s114 = sphi 0, %s100
    $region4: #{backward_nn_forward.1} parent=1 // loop_header_branch
      %19 = sbr.rel (%p17) target = $region8
    $region5: #{backward_nn_forward.1} parent=1 // loop_body
      %s21 = ssub.s32 %s16, 1
      %s22 = ssub.s32 %s16, 2
      %s23 = sadd.s32 %s16, 1
      %s24 = ssub.s32 %s16, %s23
      %p25 = scmp.eq.s32.totalorder %s24, 0
      %s27 = sadd.s32 %s26, 1
      %s28 = scalar_select %p25, %s26, %s27
      %p31 = pneg %p25
      %p32 = scmp.eq.s32.totalorder %s16, 1
      %p33 = por %p31, %p32
      %p34 = scmp.ne.s32.totalorder %s26, %s29
      %p35 = scmp.eq.s32.totalorder %s16, 0
      %p36 = por %p34, %p35
      %p37 = scmp.ne.s32.totalorder %s26, %s29
      %p38 = scmp.eq.s32.totalorder %s21, 1
      %p39 = por %p37, %p38
      %p40 = scmp.ne.s32.totalorder %s29, %s30
      %p41 = scmp.eq.s32.totalorder %s21, 0
      %p42 = por %p40, %p41
      %p43 = scmp.ne.s32.totalorder %s29, %s30
      %p44 = scmp.eq.s32.totalorder %s22, 1
      %p45 = por %p43, %p44
      %p47 = scmp.ne.s32.totalorder %s30, %s46
      %p48 = scmp.eq.s32.totalorder %s22, 0
      %p49 = por %p47, %p48
      %s50 = ssub.s32 %s16, %s23
      %p51 = scmp.eq.s32.totalorder %s50, 0
      %s53 = sadd.s32 %s52, 1
      %s54 = scalar_select %p51, %s52, %s53
      %p57 = pneg %p51
      %p58 = scmp.eq.s32.totalorder %s16, 1
      %p59 = por %p57, %p58
      %p60 = scmp.ne.s32.totalorder %s52, %s55
      %p61 = scmp.eq.s32.totalorder %s16, 0
      %p62 = por %p60, %p61
      %p63 = scmp.ne.s32.totalorder %s52, %s55
      %p64 = scmp.eq.s32.totalorder %s21, 1
      %p65 = por %p63, %p64
      %p66 = scmp.ne.s32.totalorder %s55, %s56
      %p67 = scmp.eq.s32.totalorder %s21, 0
      %p68 = por %p66, %p67
      %p69 = scmp.ne.s32.totalorder %s55, %s56
      %p70 = scmp.eq.s32.totalorder %s22, 1
      %p71 = por %p69, %p70
      %p73 = scmp.ne.s32.totalorder %s56, %s72
      %p74 = scmp.eq.s32.totalorder %s22, 0
      %p75 = por %p73, %p74
      %s77 = sadd.s32 %s76, 1
      %p80 = scmp.eq.s32.totalorder %s16, 1
      %p81 = scmp.ne.s32.totalorder %s76, %s78
      %p82 = scmp.eq.s32.totalorder %s16, 0
      %p83 = por %p81, %p82
      %p84 = scmp.ne.s32.totalorder %s76, %s78
      %p85 = scmp.eq.s32.totalorder %s21, 1
      %p86 = por %p84, %p85
      %p87 = scmp.ne.s32.totalorder %s78, %s79
      %p88 = scmp.eq.s32.totalorder %s21, 0
      %p89 = por %p87, %p88
      %p90 = scmp.ne.s32.totalorder %s78, %s79
      %p91 = scmp.eq.s32.totalorder %s22, 1
      %p92 = por %p90, %p91
      %p94 = scmp.ne.s32.totalorder %s79, %s93
      %p95 = scmp.eq.s32.totalorder %s22, 0
      %p96 = por %p94, %p95
      %s98 = sadd.s32 %s97, 1
      %p101 = scmp.eq.s32.totalorder %s16, 1
      %p102 = scmp.ne.s32.totalorder %s97, %s99
      %p103 = scmp.eq.s32.totalorder %s16, 0
      %p104 = por %p102, %p103
      %p105 = scmp.ne.s32.totalorder %s97, %s99
      %p106 = scmp.eq.s32.totalorder %s21, 1
      %p107 = por %p105, %p106
      %p108 = scmp.ne.s32.totalorder %s99, %s100
      %p109 = scmp.eq.s32.totalorder %s21, 0
      %p110 = por %p108, %p109
      %p111 = scmp.ne.s32.totalorder %s99, %s100
      %p112 = scmp.eq.s32.totalorder %s22, 1
      %p113 = por %p111, %p112
      %p115 = scmp.ne.s32.totalorder %s100, %s114
      %p116 = scmp.eq.s32.totalorder %s22, 0
      %p117 = por %p115, %p116
      %p118 = scmp.le.s32.totalorder 1, %s16
      %p119 = scmp.lt.s32.totalorder %s16, 3
      %p120 = pnand %p118, %p119
      %p121 = pneg %p120
      // Predicated region
      $region9: #{backward_nn_forward.1} parent=5 // pred_check
        _
      $region10: #{backward_nn_forward.1} parent=5 // pred_check_branch
        %123 = sbr.rel (%p120) target = $region12
      $region11: #{backward_nn_forward.1} parent=5 // pred_region
        %s124 = ssub.s32 %s16, 1
        // Predicated region
        $region13: #{backward_nn_forward.1} parent=11 // pred_check
          %p125 = pneg %p89
        $region14: #{backward_nn_forward.1} parent=11 // pred_check_branch
          %127 = sbr.rel (%p125) target = $region16
        $region15: #{backward_nn_forward.1} parent=11 // pred_region
          %129 = vsyncadd [#allocation6], 0
          %s131 = sshll.u32 %s2, 4
          %s132 = int_to_ptr.hbm [resolvable:$true] %s131
          %s133 = sshll.u32 [#allocation7], 4
          %s134 = int_to_ptr.vmem [resolvable:$true] %s133
          %136 = dma.hbm_to_vmem [thread:$0]  %s132, 64, %s134, [#allocation6]
        $region16: #{backward_nn_forward.1} parent=11 // pred_fallthru
          _
      $region12: #{backward_nn_forward.1} parent=5 // pred_fallthru
        _
      %p137 = scmp.lt.s32.totalorder %s16, 2
      // Predicated region
      $region17: #{backward_nn_forward.1} parent=5 // pred_check
        %p138 = pneg %p137
      $region18: #{backward_nn_forward.1} parent=5 // pred_check_branch
        %140 = sbr.rel (%p138) target = $region20
      $region19: #{backward_nn_forward.1} parent=5 // pred_region
        // Predicated region
        $region21: #{backward_nn_forward.1} parent=19 // pred_check
          %p141 = pneg %p36
        $region22: #{backward_nn_forward.1} parent=19 // pred_check_branch
          %143 = sbr.rel (%p141) target = $region24
        $region23: #{backward_nn_forward.1} parent=19 // pred_region
          %s144 = sand.u32 %s26, 1
          %s145 = scalar_lea.sflag [#allocation3], %s144
          %s146 = sand.u32 %s26, 1
          %s147 = smul.addr %s146, 50
          %s148 = scalar_lea.vmem [#allocation2], %s147
          %s149 = smul.u32 25, %s16
          %151 = vsyncadd %s145, 0
          %s152 = smul.addr %s149, 2
          %s153 = scalar_lea.hbm %s0, %s152
          %s155 = sshll.u32 %s153, 4
          %s156 = int_to_ptr.hbm [resolvable:$true] %s155
          %s157 = sshll.u32 %s148, 4
          %s158 = int_to_ptr.vmem [resolvable:$true] %s157
          %160 = dma.hbm_to_vmem [thread:$0]  %s156, 800, %s158, %s145
        $region24: #{backward_nn_forward.1} parent=19 // pred_fallthru
          _
        // Predicated region
        $region25: #{backward_nn_forward.1} parent=19 // pred_check
          %p161 = pneg %p62
        $region26: #{backward_nn_forward.1} parent=19 // pred_check_branch
          %163 = sbr.rel (%p161) target = $region28
        $region27: #{backward_nn_forward.1} parent=19 // pred_region
          %s164 = sand.u32 %s16, 1
          %s165 = scalar_lea.sflag [#allocation6], %s164
          %s166 = sand.u32 %s52, 1
          %s167 = smul.addr %s166, 5000
          %s168 = scalar_lea.vmem [#allocation5], %s167
          %s169 = smul.u32 25, %s16
          %171 = vsyncadd %s165, 0
          %s172 = smul.addr %s169, 4
          %s173 = scalar_lea.hbm %s1, %s172
          %s174 = sshll.u32 %s173, 4
          %s175 = int_to_ptr.hbm [resolvable:$true] %s174
          %s176 = sshll.u32 %s168, 4
          %s177 = int_to_ptr.vmem [resolvable:$true] %s176
          %182 = dma.hbm_to_vmem [thread:$0]  %s175, 80000, %s177, %s165, 3200, 1600, 100
        $region28: #{backward_nn_forward.1} parent=19 // pred_fallthru
          _
      $region20: #{backward_nn_forward.1} parent=5 // pred_fallthru
        _
      %p183 = scmp.le.s32.totalorder 1, %s16
      %p184 = scmp.lt.s32.totalorder %s16, 3
      %p185 = pnand %p183, %p184
      %p186 = pneg %p185
      // Predicated region
      $region29: #{backward_nn_forward.1} parent=5 // pred_check
        _
      $region30: #{backward_nn_forward.1} parent=5 // pred_check_branch
        %188 = sbr.rel (%p185) target = $region32
      $region31: #{backward_nn_forward.1} parent=5 // pred_region
        %s189 = ssub.s32 %s16, 1
        %s190 = sand.u32 %s29, 1
        %s191 = scalar_lea.sflag [#allocation3], %s190
        %s192 = sand.u32 %s29, 1
        %s193 = smul.addr %s192, 50
        %s194 = scalar_lea.vmem [#allocation2], %s193
        // Predicated region
        $region33: #{backward_nn_forward.1} parent=31 // pred_check
          %p195 = pneg %p42
        $region34: #{backward_nn_forward.1} parent=31 // pred_check_branch
          %197 = sbr.rel (%p195) target = $region36
        $region35: #{backward_nn_forward.1} parent=31 // pred_region
          %199 = dma.done %s191, 800
        $region36: #{backward_nn_forward.1} parent=31 // pred_fallthru
          _
        %s200 = sand.u32 %s21, 1
        %s201 = scalar_lea.sflag [#allocation6], %s200
        %s202 = sand.u32 %s55, 1
        %s203 = smul.addr %s202, 5000
        %s204 = scalar_lea.vmem [#allocation5], %s203
        // Predicated region
        $region37: #{backward_nn_forward.1} parent=31 // pred_check
          %p205 = pneg %p68
        $region38: #{backward_nn_forward.1} parent=31 // pred_check_branch
          %207 = sbr.rel (%p205) target = $region40
        $region39: #{backward_nn_forward.1} parent=31 // pred_region
          %209 = dma.done %s201, 80000
        $region40: #{backward_nn_forward.1} parent=31 // pred_fallthru
          _
        // Predicated region
        $region41: #{backward_nn_forward.1} parent=31 // pred_check
          %p210 = pneg %p89
        $region42: #{backward_nn_forward.1} parent=31 // pred_check_branch
          %212 = sbr.rel (%p210) target = $region44
        $region43: #{backward_nn_forward.1} parent=31 // pred_region
          %214 = dma.done [#allocation6], 64
        $region44: #{backward_nn_forward.1} parent=31 // pred_fallthru
          _
        %s215 = sand.u32 %s29, 1
        %s216 = scalar_lea.sflag [#allocation3], %s215
        %s217 = sand.u32 %s29, 1
        %s218 = smul.addr %s217, 50
        %s219 = scalar_lea.vmem [#allocation2], %s218
        %p220 = pneg %p42
        %p221 = pneg %p39
        %s222 = sand.u32 %s21, 1
        %s223 = scalar_lea.sflag [#allocation6], %s222
        %s224 = sand.u32 %s55, 1
        %s225 = smul.addr %s224, 5000
        %s226 = scalar_lea.vmem [#allocation5], %s225
        %p227 = pneg %p68
        %p228 = pneg %p65
        %p229 = pneg %p89
        %p230 = pneg %p86
        %p231 = pneg %p110
        %p232 = pneg %p107
        %s233 = smul.u32 25, %s21
        %s234 = smul.u32 25, %s21
        %p236 = scmp.eq.s32.totalorder %s21, 0
        // Predicated region
        $region45: #{backward_nn_forward.1} parent=31 // pred_check
          %p237 = pneg %p236
        $region46: #{backward_nn_forward.1} parent=31 // pred_check_branch
          %239 = sbr.rel (%p237) target = $region48
        $region47: #{backward_nn_forward.1} parent=31 // pred_region
          %vm240 = vcmask 1041408
          %vm241 = vcmask 1043458
          %vm242 = vmor %vm241, %vm240
          %vm243 = vcmask 1045508
          %vm244 = vmor %vm243, %vm242
          %vm245 = vcmask 130054
          %vm246 = vmor %vm245, %vm244
          %247 = vst.msk [vmem:[#allocation8] sm:$0xff] %vm246, 0.0
        $region48: #{backward_nn_forward.1} parent=31 // pred_fallthru
          _
        %v248 = vld [vmem:[#allocation8] sm:$0xff]
        %v249 = vld [vmem:[%s194] sm:$0xff]
        %v250 = vld [vmem:[%s194 + $0x8] sm:$0xff]
        %v251 = vld [vmem:[%s194 + $0x10] sm:$0xff]
        %v252 = vld [vmem:[%s194 + $0x18] sm:$0xff]
        %v253 = vld [vmem:[%s194 + $0x20] sm:$0xff]
        %v254 = vld [vmem:[%s194 + $0x28] sm:$0xff]
        %v255 = vld [vmem:[%s194 + $0x30] sm:$0x3]
        %v256 = vld [vmem:[%s204] sm:$0xff]
        %v257 = vld [vmem:[%s204 + $0x8] sm:$0xff]
        %v258 = vld [vmem:[%s204 + $0x10] sm:$0xff]
        %v259 = vld [vmem:[%s204 + $0x18] sm:$0xff]
        %v260 = vld [vmem:[%s204 + $0x20] sm:$0xff]
        %v261 = vld [vmem:[%s204 + $0x28] sm:$0xff]
        %v262 = vld [vmem:[%s204 + $0x30] sm:$0xff]
        %v263 = vld [vmem:[%s204 + $0x38] sm:$0xff]
        %v264 = vld [vmem:[%s204 + $0x40] sm:$0xff]
        %v265 = vld [vmem:[%s204 + $0x48] sm:$0xff]
        %v266 = vld [vmem:[%s204 + $0x50] sm:$0xff]
        %v267 = vld [vmem:[%s204 + $0x58] sm:$0xff]
        %v268 = vld [vmem:[%s204 + $0x60] sm:$0xf]
        %v269 = vld [vmem:[%s204 + $0x64] sm:$0xff]
        %v270 = vld [vmem:[%s204 + $0x6c] sm:$0xff]
        %v271 = vld [vmem:[%s204 + $0x74] sm:$0xff]
        %v272 = vld [vmem:[%s204 + $0x7c] sm:$0xff]
        %v273 = vld [vmem:[%s204 + $0x84] sm:$0xff]
        %v274 = vld [vmem:[%s204 + $0x8c] sm:$0xff]
        %v275 = vld [vmem:[%s204 + $0x94] sm:$0xff]
        %v276 = vld [vmem:[%s204 + $0x9c] sm:$0xff]
        %v277 = vld [vmem:[%s204 + $0xa4] sm:$0xff]
        %v278 = vld [vmem:[%s204 + $0xac] sm:$0xff]
        %v279 = vld [vmem:[%s204 + $0xb4] sm:$0xff]
        %v280 = vld [vmem:[%s204 + $0xbc] sm:$0xff]
        %v281 = vld [vmem:[%s204 + $0xc4] sm:$0xf]
        %v282 = vld [vmem:[%s204 + $0xc8] sm:$0xff]
        %v283 = vld [vmem:[%s204 + $0xd0] sm:$0xff]
        %v284 = vld [vmem:[%s204 + $0xd8] sm:$0xff]
        %v285 = vld [vmem:[%s204 + $0xe0] sm:$0xff]
        %v286 = vld [vmem:[%s204 + $0xe8] sm:$0xff]
        %v287 = vld [vmem:[%s204 + $0xf0] sm:$0xff]
        %v288 = vld [vmem:[%s204 + $0xf8] sm:$0xff]
        %v289 = vld [vmem:[%s204 + $0x100] sm:$0xff]
        %v290 = vld [vmem:[%s204 + $0x108] sm:$0xff]
        %v291 = vld [vmem:[%s204 + $0x110] sm:$0xff]
        %v292 = vld [vmem:[%s204 + $0x118] sm:$0xff]
        %v293 = vld [vmem:[%s204 + $0x120] sm:$0xff]
        %v294 = vld [vmem:[%s204 + $0x128] sm:$0xf]
        %v295 = vld [vmem:[%s204 + $0x12c] sm:$0xff]
        %v296 = vld [vmem:[%s204 + $0x134] sm:$0xff]
        %v297 = vld [vmem:[%s204 + $0x13c] sm:$0xff]
        %v298 = vld [vmem:[%s204 + $0x144] sm:$0xff]
        %v299 = vld [vmem:[%s204 + $0x14c] sm:$0xff]
        %v300 = vld [vmem:[%s204 + $0x154] sm:$0xff]
        %v301 = vld [vmem:[%s204 + $0x15c] sm:$0xff]
        %v302 = vld [vmem:[%s204 + $0x164] sm:$0xff]
        %v303 = vld [vmem:[%s204 + $0x16c] sm:$0xff]
        %v304 = vld [vmem:[%s204 + $0x174] sm:$0xff]
        %v305 = vld [vmem:[%s204 + $0x17c] sm:$0xff]
        %v306 = vld [vmem:[%s204 + $0x184] sm:$0xff]
        %v307 = vld [vmem:[%s204 + $0x18c] sm:$0xf]
        %v308 = vld [vmem:[%s204 + $0x190] sm:$0xff]
        %v309 = vld [vmem:[%s204 + $0x198] sm:$0xff]
        %v310 = vld [vmem:[%s204 + $0x1a0] sm:$0xff]
        %v311 = vld [vmem:[%s204 + $0x1a8] sm:$0xff]
        %v312 = vld [vmem:[%s204 + $0x1b0] sm:$0xff]
        %v313 = vld [vmem:[%s204 + $0x1b8] sm:$0xff]
        %v314 = vld [vmem:[%s204 + $0x1c0] sm:$0xff]
        %v315 = vld [vmem:[%s204 + $0x1c8] sm:$0xff]
        %v316 = vld [vmem:[%s204 + $0x1d0] sm:$0xff]
        %v317 = vld [vmem:[%s204 + $0x1d8] sm:$0xff]
        %v318 = vld [vmem:[%s204 + $0x1e0] sm:$0xff]
        %v319 = vld [vmem:[%s204 + $0x1e8] sm:$0xff]
        %v320 = vld [vmem:[%s204 + $0x1f0] sm:$0xf]
        %v321 = vld [vmem:[%s204 + $0x1f4] sm:$0xff]
        %v322 = vld [vmem:[%s204 + $0x1fc] sm:$0xff]
        %v323 = vld [vmem:[%s204 + $0x204] sm:$0xff]
        %v324 = vld [vmem:[%s204 + $0x20c] sm:$0xff]
        %v325 = vld [vmem:[%s204 + $0x214] sm:$0xff]
        %v326 = vld [vmem:[%s204 + $0x21c] sm:$0xff]
        %v327 = vld [vmem:[%s204 + $0x224] sm:$0xff]
        %v328 = vld [vmem:[%s204 + $0x22c] sm:$0xff]
        %v329 = vld [vmem:[%s204 + $0x234] sm:$0xff]
        %v330 = vld [vmem:[%s204 + $0x23c] sm:$0xff]
        %v331 = vld [vmem:[%s204 + $0x244] sm:$0xff]
        %v332 = vld [vmem:[%s204 + $0x24c] sm:$0xff]
        %v333 = vld [vmem:[%s204 + $0x254] sm:$0xf]
        %v334 = vld [vmem:[%s204 + $0x258] sm:$0xff]
        %v335 = vld [vmem:[%s204 + $0x260] sm:$0xff]
        %v336 = vld [vmem:[%s204 + $0x268] sm:$0xff]
        %v337 = vld [vmem:[%s204 + $0x270] sm:$0xff]
        %v338 = vld [vmem:[%s204 + $0x278] sm:$0xff]
        %v339 = vld [vmem:[%s204 + $0x280] sm:$0xff]
        %v340 = vld [vmem:[%s204 + $0x288] sm:$0xff]
        %v341 = vld [vmem:[%s204 + $0x290] sm:$0xff]
        %v342 = vld [vmem:[%s204 + $0x298] sm:$0xff]
        %v343 = vld [vmem:[%s204 + $0x2a0] sm:$0xff]
        %v344 = vld [vmem:[%s204 + $0x2a8] sm:$0xff]
        %v345 = vld [vmem:[%s204 + $0x2b0] sm:$0xff]
        %v346 = vld [vmem:[%s204 + $0x2b8] sm:$0xf]
        %v347 = vld [vmem:[%s204 + $0x2bc] sm:$0xff]
        %v348 = vld [vmem:[%s204 + $0x2c4] sm:$0xff]
        %v349 = vld [vmem:[%s204 + $0x2cc] sm:$0xff]
        %v350 = vld [vmem:[%s204 + $0x2d4] sm:$0xff]
        %v351 = vld [vmem:[%s204 + $0x2dc] sm:$0xff]
        %v352 = vld [vmem:[%s204 + $0x2e4] sm:$0xff]
        %v353 = vld [vmem:[%s204 + $0x2ec] sm:$0xff]
        %v354 = vld [vmem:[%s204 + $0x2f4] sm:$0xff]
        %v355 = vld [vmem:[%s204 + $0x2fc] sm:$0xff]
        %v356 = vld [vmem:[%s204 + $0x304] sm:$0xff]
        %v357 = vld [vmem:[%s204 + $0x30c] sm:$0xff]
        %v358 = vld [vmem:[%s204 + $0x314] sm:$0xff]
        %v359 = vld [vmem:[%s204 + $0x31c] sm:$0xf]
        %v360 = vld [vmem:[%s204 + $0x320] sm:$0xff]
        %v361 = vld [vmem:[%s204 + $0x328] sm:$0xff]
        %v362 = vld [vmem:[%s204 + $0x330] sm:$0xff]
        %v363 = vld [vmem:[%s204 + $0x338] sm:$0xff]
        %v364 = vld [vmem:[%s204 + $0x340] sm:$0xff]
        %v365 = vld [vmem:[%s204 + $0x348] sm:$0xff]
        %v366 = vld [vmem:[%s204 + $0x350] sm:$0xff]
        %v367 = vld [vmem:[%s204 + $0x358] sm:$0xff]
        %v368 = vld [vmem:[%s204 + $0x360] sm:$0xff]
        %v369 = vld [vmem:[%s204 + $0x368] sm:$0xff]
        %v370 = vld [vmem:[%s204 + $0x370] sm:$0xff]
        %v371 = vld [vmem:[%s204 + $0x378] sm:$0xff]
        %v372 = vld [vmem:[%s204 + $0x380] sm:$0xf]
        %v373 = vld [vmem:[%s204 + $0x384] sm:$0xff]
        %v374 = vld [vmem:[%s204 + $0x38c] sm:$0xff]
        %v375 = vld [vmem:[%s204 + $0x394] sm:$0xff]
        %v376 = vld [vmem:[%s204 + $0x39c] sm:$0xff]
        %v377 = vld [vmem:[%s204 + $0x3a4] sm:$0xff]
        %v378 = vld [vmem:[%s204 + $0x3ac] sm:$0xff]
        %v379 = vld [vmem:[%s204 + $0x3b4] sm:$0xff]
        %v380 = vld [vmem:[%s204 + $0x3bc] sm:$0xff]
        %v381 = vld [vmem:[%s204 + $0x3c4] sm:$0xff]
        %v382 = vld [vmem:[%s204 + $0x3cc] sm:$0xff]
        %v383 = vld [vmem:[%s204 + $0x3d4] sm:$0xff]
        %v384 = vld [vmem:[%s204 + $0x3dc] sm:$0xff]
        %v385 = vld [vmem:[%s204 + $0x3e4] sm:$0xf]
        %v386 = vld [vmem:[%s204 + $0x3e8] sm:$0xff]
        %v387 = vld [vmem:[%s204 + $0x3f0] sm:$0xff]
        %v388 = vld [vmem:[%s204 + $0x3f8] sm:$0xff]
        %v389 = vld [vmem:[%s204 + $0x400] sm:$0xff]
        %v390 = vld [vmem:[%s204 + $0x408] sm:$0xff]
        %v391 = vld [vmem:[%s204 + $0x410] sm:$0xff]
        %v392 = vld [vmem:[%s204 + $0x418] sm:$0xff]
        %v393 = vld [vmem:[%s204 + $0x420] sm:$0xff]
        %v394 = vld [vmem:[%s204 + $0x428] sm:$0xff]
        %v395 = vld [vmem:[%s204 + $0x430] sm:$0xff]
        %v396 = vld [vmem:[%s204 + $0x438] sm:$0xff]
        %v397 = vld [vmem:[%s204 + $0x440] sm:$0xff]
        %v398 = vld [vmem:[%s204 + $0x448] sm:$0xf]
        %v399 = vld [vmem:[%s204 + $0x44c] sm:$0xff]
        %v400 = vld [vmem:[%s204 + $0x454] sm:$0xff]
        %v401 = vld [vmem:[%s204 + $0x45c] sm:$0xff]
        %v402 = vld [vmem:[%s204 + $0x464] sm:$0xff]
        %v403 = vld [vmem:[%s204 + $0x46c] sm:$0xff]
        %v404 = vld [vmem:[%s204 + $0x474] sm:$0xff]
        %v405 = vld [vmem:[%s204 + $0x47c] sm:$0xff]
        %v406 = vld [vmem:[%s204 + $0x484] sm:$0xff]
        %v407 = vld [vmem:[%s204 + $0x48c] sm:$0xff]
        %v408 = vld [vmem:[%s204 + $0x494] sm:$0xff]
        %v409 = vld [vmem:[%s204 + $0x49c] sm:$0xff]
        %v410 = vld [vmem:[%s204 + $0x4a4] sm:$0xff]
        %v411 = vld [vmem:[%s204 + $0x4ac] sm:$0xf]
        %v412 = vld [vmem:[%s204 + $0x4b0] sm:$0xff]
        %v413 = vld [vmem:[%s204 + $0x4b8] sm:$0xff]
        %v414 = vld [vmem:[%s204 + $0x4c0] sm:$0xff]
        %v415 = vld [vmem:[%s204 + $0x4c8] sm:$0xff]
        %v416 = vld [vmem:[%s204 + $0x4d0] sm:$0xff]
        %v417 = vld [vmem:[%s204 + $0x4d8] sm:$0xff]
        %v418 = vld [vmem:[%s204 + $0x4e0] sm:$0xff]
        %v419 = vld [vmem:[%s204 + $0x4e8] sm:$0xff]
        %v420 = vld [vmem:[%s204 + $0x4f0] sm:$0xff]
        %v421 = vld [vmem:[%s204 + $0x4f8] sm:$0xff]
        %v422 = vld [vmem:[%s204 + $0x500] sm:$0xff]
        %v423 = vld [vmem:[%s204 + $0x508] sm:$0xff]
        %v424 = vld [vmem:[%s204 + $0x510] sm:$0xf]
        %v425 = vld [vmem:[%s204 + $0x514] sm:$0xff]
        %v426 = vld [vmem:[%s204 + $0x51c] sm:$0xff]
        %v427 = vld [vmem:[%s204 + $0x524] sm:$0xff]
        %v428 = vld [vmem:[%s204 + $0x52c] sm:$0xff]
        %v429 = vld [vmem:[%s204 + $0x534] sm:$0xff]
        %v430 = vld [vmem:[%s204 + $0x53c] sm:$0xff]
        %v431 = vld [vmem:[%s204 + $0x544] sm:$0xff]
        %v432 = vld [vmem:[%s204 + $0x54c] sm:$0xff]
        %v433 = vld [vmem:[%s204 + $0x554] sm:$0xff]
        %v434 = vld [vmem:[%s204 + $0x55c] sm:$0xff]
        %v435 = vld [vmem:[%s204 + $0x564] sm:$0xff]
        %v436 = vld [vmem:[%s204 + $0x56c] sm:$0xff]
        %v437 = vld [vmem:[%s204 + $0x574] sm:$0xf]
        %v438 = vld [vmem:[%s204 + $0x578] sm:$0xff]
        %v439 = vld [vmem:[%s204 + $0x580] sm:$0xff]
        %v440 = vld [vmem:[%s204 + $0x588] sm:$0xff]
        %v441 = vld [vmem:[%s204 + $0x590] sm:$0xff]
        %v442 = vld [vmem:[%s204 + $0x598] sm:$0xff]
        %v443 = vld [vmem:[%s204 + $0x5a0] sm:$0xff]
        %v444 = vld [vmem:[%s204 + $0x5a8] sm:$0xff]
        %v445 = vld [vmem:[%s204 + $0x5b0] sm:$0xff]
        %v446 = vld [vmem:[%s204 + $0x5b8] sm:$0xff]
        %v447 = vld [vmem:[%s204 + $0x5c0] sm:$0xff]
        %v448 = vld [vmem:[%s204 + $0x5c8] sm:$0xff]
        %v449 = vld [vmem:[%s204 + $0x5d0] sm:$0xff]
        %v450 = vld [vmem:[%s204 + $0x5d8] sm:$0xf]
        %v451 = vld [vmem:[%s204 + $0x5dc] sm:$0xff]
        %v452 = vld [vmem:[%s204 + $0x5e4] sm:$0xff]
        %v453 = vld [vmem:[%s204 + $0x5ec] sm:$0xff]
        %v454 = vld [vmem:[%s204 + $0x5f4] sm:$0xff]
        %v455 = vld [vmem:[%s204 + $0x5fc] sm:$0xff]
        %v456 = vld [vmem:[%s204 + $0x604] sm:$0xff]
        %v457 = vld [vmem:[%s204 + $0x60c] sm:$0xff]
        %v458 = vld [vmem:[%s204 + $0x614] sm:$0xff]
        %v459 = vld [vmem:[%s204 + $0x61c] sm:$0xff]
        %v460 = vld [vmem:[%s204 + $0x624] sm:$0xff]
        %v461 = vld [vmem:[%s204 + $0x62c] sm:$0xff]
        %v462 = vld [vmem:[%s204 + $0x634] sm:$0xff]
        %v463 = vld [vmem:[%s204 + $0x63c] sm:$0xf]
        %v464 = vld [vmem:[%s204 + $0x640] sm:$0xff]
        %v465 = vld [vmem:[%s204 + $0x648] sm:$0xff]
        %v466 = vld [vmem:[%s204 + $0x650] sm:$0xff]
        %v467 = vld [vmem:[%s204 + $0x658] sm:$0xff]
        %v468 = vld [vmem:[%s204 + $0x660] sm:$0xff]
        %v469 = vld [vmem:[%s204 + $0x668] sm:$0xff]
        %v470 = vld [vmem:[%s204 + $0x670] sm:$0xff]
        %v471 = vld [vmem:[%s204 + $0x678] sm:$0xff]
        %v472 = vld [vmem:[%s204 + $0x680] sm:$0xff]
        %v473 = vld [vmem:[%s204 + $0x688] sm:$0xff]
        %v474 = vld [vmem:[%s204 + $0x690] sm:$0xff]
        %v475 = vld [vmem:[%s204 + $0x698] sm:$0xff]
        %v476 = vld [vmem:[%s204 + $0x6a0] sm:$0xf]
        %v477 = vld [vmem:[%s204 + $0x6a4] sm:$0xff]
        %v478 = vld [vmem:[%s204 + $0x6ac] sm:$0xff]
        %v479 = vld [vmem:[%s204 + $0x6b4] sm:$0xff]
        %v480 = vld [vmem:[%s204 + $0x6bc] sm:$0xff]
        %v481 = vld [vmem:[%s204 + $0x6c4] sm:$0xff]
        %v482 = vld [vmem:[%s204 + $0x6cc] sm:$0xff]
        %v483 = vld [vmem:[%s204 + $0x6d4] sm:$0xff]
        %v484 = vld [vmem:[%s204 + $0x6dc] sm:$0xff]
        %v485 = vld [vmem:[%s204 + $0x6e4] sm:$0xff]
        %v486 = vld [vmem:[%s204 + $0x6ec] sm:$0xff]
        %v487 = vld [vmem:[%s204 + $0x6f4] sm:$0xff]
        %v488 = vld [vmem:[%s204 + $0x6fc] sm:$0xff]
        %v489 = vld [vmem:[%s204 + $0x704] sm:$0xf]
        %v490 = vld [vmem:[%s204 + $0x708] sm:$0xff]
        %v491 = vld [vmem:[%s204 + $0x710] sm:$0xff]
        %v492 = vld [vmem:[%s204 + $0x718] sm:$0xff]
        %v493 = vld [vmem:[%s204 + $0x720] sm:$0xff]
        %v494 = vld [vmem:[%s204 + $0x728] sm:$0xff]
        %v495 = vld [vmem:[%s204 + $0x730] sm:$0xff]
        %v496 = vld [vmem:[%s204 + $0x738] sm:$0xff]
        %v497 = vld [vmem:[%s204 + $0x740] sm:$0xff]
        %v498 = vld [vmem:[%s204 + $0x748] sm:$0xff]
        %v499 = vld [vmem:[%s204 + $0x750] sm:$0xff]
        %v500 = vld [vmem:[%s204 + $0x758] sm:$0xff]
        %v501 = vld [vmem:[%s204 + $0x760] sm:$0xff]
        %v502 = vld [vmem:[%s204 + $0x768] sm:$0xf]
        %v503 = vld [vmem:[%s204 + $0x76c] sm:$0xff]
        %v504 = vld [vmem:[%s204 + $0x774] sm:$0xff]
        %v505 = vld [vmem:[%s204 + $0x77c] sm:$0xff]
        %v506 = vld [vmem:[%s204 + $0x784] sm:$0xff]
        %v507 = vld [vmem:[%s204 + $0x78c] sm:$0xff]
        %v508 = vld [vmem:[%s204 + $0x794] sm:$0xff]
        %v509 = vld [vmem:[%s204 + $0x79c] sm:$0xff]
        %v510 = vld [vmem:[%s204 + $0x7a4] sm:$0xff]
        %v511 = vld [vmem:[%s204 + $0x7ac] sm:$0xff]
        %v512 = vld [vmem:[%s204 + $0x7b4] sm:$0xff]
        %v513 = vld [vmem:[%s204 + $0x7bc] sm:$0xff]
        %v514 = vld [vmem:[%s204 + $0x7c4] sm:$0xff]
        %v515 = vld [vmem:[%s204 + $0x7cc] sm:$0xf]
        %v516 = vld [vmem:[%s204 + $0x7d0] sm:$0xff]
        %v517 = vld [vmem:[%s204 + $0x7d8] sm:$0xff]
        %v518 = vld [vmem:[%s204 + $0x7e0] sm:$0xff]
        %v519 = vld [vmem:[%s204 + $0x7e8] sm:$0xff]
        %v520 = vld [vmem:[%s204 + $0x7f0] sm:$0xff]
        %v521 = vld [vmem:[%s204 + $0x7f8] sm:$0xff]
        %v522 = vld [vmem:[%s204 + $0x800] sm:$0xff]
        %v523 = vld [vmem:[%s204 + $0x808] sm:$0xff]
        %v524 = vld [vmem:[%s204 + $0x810] sm:$0xff]
        %v525 = vld [vmem:[%s204 + $0x818] sm:$0xff]
        %v526 = vld [vmem:[%s204 + $0x820] sm:$0xff]
        %v527 = vld [vmem:[%s204 + $0x828] sm:$0xff]
        %v528 = vld [vmem:[%s204 + $0x830] sm:$0xf]
        %v529 = vld [vmem:[%s204 + $0x834] sm:$0xff]
        %v530 = vld [vmem:[%s204 + $0x83c] sm:$0xff]
        %v531 = vld [vmem:[%s204 + $0x844] sm:$0xff]
        %v532 = vld [vmem:[%s204 + $0x84c] sm:$0xff]
        %v533 = vld [vmem:[%s204 + $0x854] sm:$0xff]
        %v534 = vld [vmem:[%s204 + $0x85c] sm:$0xff]
        %v535 = vld [vmem:[%s204 + $0x864] sm:$0xff]
        %v536 = vld [vmem:[%s204 + $0x86c] sm:$0xff]
        %v537 = vld [vmem:[%s204 + $0x874] sm:$0xff]
        %v538 = vld [vmem:[%s204 + $0x87c] sm:$0xff]
        %v539 = vld [vmem:[%s204 + $0x884] sm:$0xff]
        %v540 = vld [vmem:[%s204 + $0x88c] sm:$0xff]
        %v541 = vld [vmem:[%s204 + $0x894] sm:$0xf]
        %v542 = vld [vmem:[%s204 + $0x898] sm:$0xff]
        %v543 = vld [vmem:[%s204 + $0x8a0] sm:$0xff]
        %v544 = vld [vmem:[%s204 + $0x8a8] sm:$0xff]
        %v545 = vld [vmem:[%s204 + $0x8b0] sm:$0xff]
        %v546 = vld [vmem:[%s204 + $0x8b8] sm:$0xff]
        %v547 = vld [vmem:[%s204 + $0x8c0] sm:$0xff]
        %v548 = vld [vmem:[%s204 + $0x8c8] sm:$0xff]
        %v549 = vld [vmem:[%s204 + $0x8d0] sm:$0xff]
        %v550 = vld [vmem:[%s204 + $0x8d8] sm:$0xff]
        %v551 = vld [vmem:[%s204 + $0x8e0] sm:$0xff]
        %v552 = vld [vmem:[%s204 + $0x8e8] sm:$0xff]
        %v553 = vld [vmem:[%s204 + $0x8f0] sm:$0xff]
        %v554 = vld [vmem:[%s204 + $0x8f8] sm:$0xf]
        %v555 = vld [vmem:[%s204 + $0x8fc] sm:$0xff]
        %v556 = vld [vmem:[%s204 + $0x904] sm:$0xff]
        %v557 = vld [vmem:[%s204 + $0x90c] sm:$0xff]
        %v558 = vld [vmem:[%s204 + $0x914] sm:$0xff]
        %v559 = vld [vmem:[%s204 + $0x91c] sm:$0xff]
        %v560 = vld [vmem:[%s204 + $0x924] sm:$0xff]
        %v561 = vld [vmem:[%s204 + $0x92c] sm:$0xff]
        %v562 = vld [vmem:[%s204 + $0x934] sm:$0xff]
        %v563 = vld [vmem:[%s204 + $0x93c] sm:$0xff]
        %v564 = vld [vmem:[%s204 + $0x944] sm:$0xff]
        %v565 = vld [vmem:[%s204 + $0x94c] sm:$0xff]
        %v566 = vld [vmem:[%s204 + $0x954] sm:$0xff]
        %v567 = vld [vmem:[%s204 + $0x95c] sm:$0xf]
        %v568 = vld [vmem:[%s204 + $0x960] sm:$0xff]
        %v569 = vld [vmem:[%s204 + $0x968] sm:$0xff]
        %v570 = vld [vmem:[%s204 + $0x970] sm:$0xff]
        %v571 = vld [vmem:[%s204 + $0x978] sm:$0xff]
        %v572 = vld [vmem:[%s204 + $0x980] sm:$0xff]
        %v573 = vld [vmem:[%s204 + $0x988] sm:$0xff]
        %v574 = vld [vmem:[%s204 + $0x990] sm:$0xff]
        %v575 = vld [vmem:[%s204 + $0x998] sm:$0xff]
        %v576 = vld [vmem:[%s204 + $0x9a0] sm:$0xff]
        %v577 = vld [vmem:[%s204 + $0x9a8] sm:$0xff]
        %v578 = vld [vmem:[%s204 + $0x9b0] sm:$0xff]
        %v579 = vld [vmem:[%s204 + $0x9b8] sm:$0xff]
        %v580 = vld [vmem:[%s204 + $0x9c0] sm:$0xf]
        %v581 = vld [vmem:[%s204 + $0x9c4] sm:$0xff]
        %v582 = vld [vmem:[%s204 + $0x9cc] sm:$0xff]
        %v583 = vld [vmem:[%s204 + $0x9d4] sm:$0xff]
        %v584 = vld [vmem:[%s204 + $0x9dc] sm:$0xff]
        %v585 = vld [vmem:[%s204 + $0x9e4] sm:$0xff]
        %v586 = vld [vmem:[%s204 + $0x9ec] sm:$0xff]
        %v587 = vld [vmem:[%s204 + $0x9f4] sm:$0xff]
        %v588 = vld [vmem:[%s204 + $0x9fc] sm:$0xff]
        %v589 = vld [vmem:[%s204 + $0xa04] sm:$0xff]
        %v590 = vld [vmem:[%s204 + $0xa0c] sm:$0xff]
        %v591 = vld [vmem:[%s204 + $0xa14] sm:$0xff]
        %v592 = vld [vmem:[%s204 + $0xa1c] sm:$0xff]
        %v593 = vld [vmem:[%s204 + $0xa24] sm:$0xf]
        %v594 = vld [vmem:[%s204 + $0xa28] sm:$0xff]
        %v595 = vld [vmem:[%s204 + $0xa30] sm:$0xff]
        %v596 = vld [vmem:[%s204 + $0xa38] sm:$0xff]
        %v597 = vld [vmem:[%s204 + $0xa40] sm:$0xff]
        %v598 = vld [vmem:[%s204 + $0xa48] sm:$0xff]
        %v599 = vld [vmem:[%s204 + $0xa50] sm:$0xff]
        %v600 = vld [vmem:[%s204 + $0xa58] sm:$0xff]
        %v601 = vld [vmem:[%s204 + $0xa60] sm:$0xff]
        %v602 = vld [vmem:[%s204 + $0xa68] sm:$0xff]
        %v603 = vld [vmem:[%s204 + $0xa70] sm:$0xff]
        %v604 = vld [vmem:[%s204 + $0xa78] sm:$0xff]
        %v605 = vld [vmem:[%s204 + $0xa80] sm:$0xff]
        %v606 = vld [vmem:[%s204 + $0xa88] sm:$0xf]
        %v607 = vld [vmem:[%s204 + $0xa8c] sm:$0xff]
        %v608 = vld [vmem:[%s204 + $0xa94] sm:$0xff]
        %v609 = vld [vmem:[%s204 + $0xa9c] sm:$0xff]
        %v610 = vld [vmem:[%s204 + $0xaa4] sm:$0xff]
        %v611 = vld [vmem:[%s204 + $0xaac] sm:$0xff]
        %v612 = vld [vmem:[%s204 + $0xab4] sm:$0xff]
        %v613 = vld [vmem:[%s204 + $0xabc] sm:$0xff]
        %v614 = vld [vmem:[%s204 + $0xac4] sm:$0xff]
        %v615 = vld [vmem:[%s204 + $0xacc] sm:$0xff]
        %v616 = vld [vmem:[%s204 + $0xad4] sm:$0xff]
        %v617 = vld [vmem:[%s204 + $0xadc] sm:$0xff]
        %v618 = vld [vmem:[%s204 + $0xae4] sm:$0xff]
        %v619 = vld [vmem:[%s204 + $0xaec] sm:$0xf]
        %v620 = vld [vmem:[%s204 + $0xaf0] sm:$0xff]
        %v621 = vld [vmem:[%s204 + $0xaf8] sm:$0xff]
        %v622 = vld [vmem:[%s204 + $0xb00] sm:$0xff]
        %v623 = vld [vmem:[%s204 + $0xb08] sm:$0xff]
        %v624 = vld [vmem:[%s204 + $0xb10] sm:$0xff]
        %v625 = vld [vmem:[%s204 + $0xb18] sm:$0xff]
        %v626 = vld [vmem:[%s204 + $0xb20] sm:$0xff]
        %v627 = vld [vmem:[%s204 + $0xb28] sm:$0xff]
        %v628 = vld [vmem:[%s204 + $0xb30] sm:$0xff]
        %v629 = vld [vmem:[%s204 + $0xb38] sm:$0xff]
        %v630 = vld [vmem:[%s204 + $0xb40] sm:$0xff]
        %v631 = vld [vmem:[%s204 + $0xb48] sm:$0xff]
        %v632 = vld [vmem:[%s204 + $0xb50] sm:$0xf]
        %v633 = vld [vmem:[%s204 + $0xb54] sm:$0xff]
        %v634 = vld [vmem:[%s204 + $0xb5c] sm:$0xff]
        %v635 = vld [vmem:[%s204 + $0xb64] sm:$0xff]
        %v636 = vld [vmem:[%s204 + $0xb6c] sm:$0xff]
        %v637 = vld [vmem:[%s204 + $0xb74] sm:$0xff]
        %v638 = vld [vmem:[%s204 + $0xb7c] sm:$0xff]
        %v639 = vld [vmem:[%s204 + $0xb84] sm:$0xff]
        %v640 = vld [vmem:[%s204 + $0xb8c] sm:$0xff]
        %v641 = vld [vmem:[%s204 + $0xb94] sm:$0xff]
        %v642 = vld [vmem:[%s204 + $0xb9c] sm:$0xff]
        %v643 = vld [vmem:[%s204 + $0xba4] sm:$0xff]
        %v644 = vld [vmem:[%s204 + $0xbac] sm:$0xff]
        %v645 = vld [vmem:[%s204 + $0xbb4] sm:$0xf]
        %v646 = vld [vmem:[%s204 + $0xbb8] sm:$0xff]
        %v647 = vld [vmem:[%s204 + $0xbc0] sm:$0xff]
        %v648 = vld [vmem:[%s204 + $0xbc8] sm:$0xff]
        %v649 = vld [vmem:[%s204 + $0xbd0] sm:$0xff]
        %v650 = vld [vmem:[%s204 + $0xbd8] sm:$0xff]
        %v651 = vld [vmem:[%s204 + $0xbe0] sm:$0xff]
        %v652 = vld [vmem:[%s204 + $0xbe8] sm:$0xff]
        %v653 = vld [vmem:[%s204 + $0xbf0] sm:$0xff]
        %v654 = vld [vmem:[%s204 + $0xbf8] sm:$0xff]
        %v655 = vld [vmem:[%s204 + $0xc00] sm:$0xff]
        %v656 = vld [vmem:[%s204 + $0xc08] sm:$0xff]
        %v657 = vld [vmem:[%s204 + $0xc10] sm:$0xff]
        %v658 = vld [vmem:[%s204 + $0xc18] sm:$0xf]
        %v659 = vld [vmem:[%s204 + $0xc1c] sm:$0xff]
        %v660 = vld [vmem:[%s204 + $0xc24] sm:$0xff]
        %v661 = vld [vmem:[%s204 + $0xc2c] sm:$0xff]
        %v662 = vld [vmem:[%s204 + $0xc34] sm:$0xff]
        %v663 = vld [vmem:[%s204 + $0xc3c] sm:$0xff]
        %v664 = vld [vmem:[%s204 + $0xc44] sm:$0xff]
        %v665 = vld [vmem:[%s204 + $0xc4c] sm:$0xff]
        %v666 = vld [vmem:[%s204 + $0xc54] sm:$0xff]
        %v667 = vld [vmem:[%s204 + $0xc5c] sm:$0xff]
        %v668 = vld [vmem:[%s204 + $0xc64] sm:$0xff]
        %v669 = vld [vmem:[%s204 + $0xc6c] sm:$0xff]
        %v670 = vld [vmem:[%s204 + $0xc74] sm:$0xff]
        %v671 = vld [vmem:[%s204 + $0xc7c] sm:$0xf]
        %v672 = vld [vmem:[%s204 + $0xc80] sm:$0xff]
        %v673 = vld [vmem:[%s204 + $0xc88] sm:$0xff]
        %v674 = vld [vmem:[%s204 + $0xc90] sm:$0xff]
        %v675 = vld [vmem:[%s204 + $0xc98] sm:$0xff]
        %v676 = vld [vmem:[%s204 + $0xca0] sm:$0xff]
        %v677 = vld [vmem:[%s204 + $0xca8] sm:$0xff]
        %v678 = vld [vmem:[%s204 + $0xcb0] sm:$0xff]
        %v679 = vld [vmem:[%s204 + $0xcb8] sm:$0xff]
        %v680 = vld [vmem:[%s204 + $0xcc0] sm:$0xff]
        %v681 = vld [vmem:[%s204 + $0xcc8] sm:$0xff]
        %v682 = vld [vmem:[%s204 + $0xcd0] sm:$0xff]
        %v683 = vld [vmem:[%s204 + $0xcd8] sm:$0xff]
        %v684 = vld [vmem:[%s204 + $0xce0] sm:$0xf]
        %v685 = vld [vmem:[%s204 + $0xce4] sm:$0xff]
        %v686 = vld [vmem:[%s204 + $0xcec] sm:$0xff]
        %v687 = vld [vmem:[%s204 + $0xcf4] sm:$0xff]
        %v688 = vld [vmem:[%s204 + $0xcfc] sm:$0xff]
        %v689 = vld [vmem:[%s204 + $0xd04] sm:$0xff]
        %v690 = vld [vmem:[%s204 + $0xd0c] sm:$0xff]
        %v691 = vld [vmem:[%s204 + $0xd14] sm:$0xff]
        %v692 = vld [vmem:[%s204 + $0xd1c] sm:$0xff]
        %v693 = vld [vmem:[%s204 + $0xd24] sm:$0xff]
        %v694 = vld [vmem:[%s204 + $0xd2c] sm:$0xff]
        %v695 = vld [vmem:[%s204 + $0xd34] sm:$0xff]
        %v696 = vld [vmem:[%s204 + $0xd3c] sm:$0xff]
        %v697 = vld [vmem:[%s204 + $0xd44] sm:$0xf]
        %v698 = vld [vmem:[%s204 + $0xd48] sm:$0xff]
        %v699 = vld [vmem:[%s204 + $0xd50] sm:$0xff]
        %v700 = vld [vmem:[%s204 + $0xd58] sm:$0xff]
        %v701 = vld [vmem:[%s204 + $0xd60] sm:$0xff]
        %v702 = vld [vmem:[%s204 + $0xd68] sm:$0xff]
        %v703 = vld [vmem:[%s204 + $0xd70] sm:$0xff]
        %v704 = vld [vmem:[%s204 + $0xd78] sm:$0xff]
        %v705 = vld [vmem:[%s204 + $0xd80] sm:$0xff]
        %v706 = vld [vmem:[%s204 + $0xd88] sm:$0xff]
        %v707 = vld [vmem:[%s204 + $0xd90] sm:$0xff]
        %v708 = vld [vmem:[%s204 + $0xd98] sm:$0xff]
        %v709 = vld [vmem:[%s204 + $0xda0] sm:$0xff]
        %v710 = vld [vmem:[%s204 + $0xda8] sm:$0xf]
        %v711 = vld [vmem:[%s204 + $0xdac] sm:$0xff]
        %v712 = vld [vmem:[%s204 + $0xdb4] sm:$0xff]
        %v713 = vld [vmem:[%s204 + $0xdbc] sm:$0xff]
        %v714 = vld [vmem:[%s204 + $0xdc4] sm:$0xff]
        %v715 = vld [vmem:[%s204 + $0xdcc] sm:$0xff]
        %v716 = vld [vmem:[%s204 + $0xdd4] sm:$0xff]
        %v717 = vld [vmem:[%s204 + $0xddc] sm:$0xff]
        %v718 = vld [vmem:[%s204 + $0xde4] sm:$0xff]
        %v719 = vld [vmem:[%s204 + $0xdec] sm:$0xff]
        %v720 = vld [vmem:[%s204 + $0xdf4] sm:$0xff]
        %v721 = vld [vmem:[%s204 + $0xdfc] sm:$0xff]
        %v722 = vld [vmem:[%s204 + $0xe04] sm:$0xff]
        %v723 = vld [vmem:[%s204 + $0xe0c] sm:$0xf]
        %v724 = vld [vmem:[%s204 + $0xe10] sm:$0xff]
        %v725 = vld [vmem:[%s204 + $0xe18] sm:$0xff]
        %v726 = vld [vmem:[%s204 + $0xe20] sm:$0xff]
        %v727 = vld [vmem:[%s204 + $0xe28] sm:$0xff]
        %v728 = vld [vmem:[%s204 + $0xe30] sm:$0xff]
        %v729 = vld [vmem:[%s204 + $0xe38] sm:$0xff]
        %v730 = vld [vmem:[%s204 + $0xe40] sm:$0xff]
        %v731 = vld [vmem:[%s204 + $0xe48] sm:$0xff]
        %v732 = vld [vmem:[%s204 + $0xe50] sm:$0xff]
        %v733 = vld [vmem:[%s204 + $0xe58] sm:$0xff]
        %v734 = vld [vmem:[%s204 + $0xe60] sm:$0xff]
        %v735 = vld [vmem:[%s204 + $0xe68] sm:$0xff]
        %v736 = vld [vmem:[%s204 + $0xe70] sm:$0xf]
        %v737 = vld [vmem:[%s204 + $0xe74] sm:$0xff]
        %v738 = vld [vmem:[%s204 + $0xe7c] sm:$0xff]
        %v739 = vld [vmem:[%s204 + $0xe84] sm:$0xff]
        %v740 = vld [vmem:[%s204 + $0xe8c] sm:$0xff]
        %v741 = vld [vmem:[%s204 + $0xe94] sm:$0xff]
        %v742 = vld [vmem:[%s204 + $0xe9c] sm:$0xff]
        %v743 = vld [vmem:[%s204 + $0xea4] sm:$0xff]
        %v744 = vld [vmem:[%s204 + $0xeac] sm:$0xff]
        %v745 = vld [vmem:[%s204 + $0xeb4] sm:$0xff]
        %v746 = vld [vmem:[%s204 + $0xebc] sm:$0xff]
        %v747 = vld [vmem:[%s204 + $0xec4] sm:$0xff]
        %v748 = vld [vmem:[%s204 + $0xecc] sm:$0xff]
        %v749 = vld [vmem:[%s204 + $0xed4] sm:$0xf]
        %v750 = vld [vmem:[%s204 + $0xed8] sm:$0xff]
        %v751 = vld [vmem:[%s204 + $0xee0] sm:$0xff]
        %v752 = vld [vmem:[%s204 + $0xee8] sm:$0xff]
        %v753 = vld [vmem:[%s204 + $0xef0] sm:$0xff]
        %v754 = vld [vmem:[%s204 + $0xef8] sm:$0xff]
        %v755 = vld [vmem:[%s204 + $0xf00] sm:$0xff]
        %v756 = vld [vmem:[%s204 + $0xf08] sm:$0xff]
        %v757 = vld [vmem:[%s204 + $0xf10] sm:$0xff]
        %v758 = vld [vmem:[%s204 + $0xf18] sm:$0xff]
        %v759 = vld [vmem:[%s204 + $0xf20] sm:$0xff]
        %v760 = vld [vmem:[%s204 + $0xf28] sm:$0xff]
        %v761 = vld [vmem:[%s204 + $0xf30] sm:$0xff]
        %v762 = vld [vmem:[%s204 + $0xf38] sm:$0xf]
        %v763 = vld [vmem:[%s204 + $0xf3c] sm:$0xff]
        %v764 = vld [vmem:[%s204 + $0xf44] sm:$0xff]
        %v765 = vld [vmem:[%s204 + $0xf4c] sm:$0xff]
        %v766 = vld [vmem:[%s204 + $0xf54] sm:$0xff]
        %v767 = vld [vmem:[%s204 + $0xf5c] sm:$0xff]
        %v768 = vld [vmem:[%s204 + $0xf64] sm:$0xff]
        %v769 = vld [vmem:[%s204 + $0xf6c] sm:$0xff]
        %v770 = vld [vmem:[%s204 + $0xf74] sm:$0xff]
        %v771 = vld [vmem:[%s204 + $0xf7c] sm:$0xff]
        %v772 = vld [vmem:[%s204 + $0xf84] sm:$0xff]
        %v773 = vld [vmem:[%s204 + $0xf8c] sm:$0xff]
        %v774 = vld [vmem:[%s204 + $0xf94] sm:$0xff]
        %v775 = vld [vmem:[%s204 + $0xf9c] sm:$0xf]
        %v776 = vld [vmem:[%s204 + $0xfa0] sm:$0xff]
        %v777 = vld [vmem:[%s204 + $0xfa8] sm:$0xff]
        %v778 = vld [vmem:[%s204 + $0xfb0] sm:$0xff]
        %v779 = vld [vmem:[%s204 + $0xfb8] sm:$0xff]
        %v780 = vld [vmem:[%s204 + $0xfc0] sm:$0xff]
        %v781 = vld [vmem:[%s204 + $0xfc8] sm:$0xff]
        %v782 = vld [vmem:[%s204 + $0xfd0] sm:$0xff]
        %v783 = vld [vmem:[%s204 + $0xfd8] sm:$0xff]
        %v784 = vld [vmem:[%s204 + $0xfe0] sm:$0xff]
        %v785 = vld [vmem:[%s204 + $0xfe8] sm:$0xff]
        %v786 = vld [vmem:[%s204 + $0xff0] sm:$0xff]
        %v787 = vld [vmem:[%s204 + $0xff8] sm:$0xff]
        %v788 = vld [vmem:[%s204 + $0x1000] sm:$0xf]
        %v789 = vld [vmem:[%s204 + $0x1004] sm:$0xff]
        %v790 = vld [vmem:[%s204 + $0x100c] sm:$0xff]
        %v791 = vld [vmem:[%s204 + $0x1014] sm:$0xff]
        %v792 = vld [vmem:[%s204 + $0x101c] sm:$0xff]
        %v793 = vld [vmem:[%s204 + $0x1024] sm:$0xff]
        %v794 = vld [vmem:[%s204 + $0x102c] sm:$0xff]
        %v795 = vld [vmem:[%s204 + $0x1034] sm:$0xff]
        %v796 = vld [vmem:[%s204 + $0x103c] sm:$0xff]
        %v797 = vld [vmem:[%s204 + $0x1044] sm:$0xff]
        %v798 = vld [vmem:[%s204 + $0x104c] sm:$0xff]
        %v799 = vld [vmem:[%s204 + $0x1054] sm:$0xff]
        %v800 = vld [vmem:[%s204 + $0x105c] sm:$0xff]
        %v801 = vld [vmem:[%s204 + $0x1064] sm:$0xf]
        %v802 = vld [vmem:[%s204 + $0x1068] sm:$0xff]
        %v803 = vld [vmem:[%s204 + $0x1070] sm:$0xff]
        %v804 = vld [vmem:[%s204 + $0x1078] sm:$0xff]
        %v805 = vld [vmem:[%s204 + $0x1080] sm:$0xff]
        %v806 = vld [vmem:[%s204 + $0x1088] sm:$0xff]
        %v807 = vld [vmem:[%s204 + $0x1090] sm:$0xff]
        %v808 = vld [vmem:[%s204 + $0x1098] sm:$0xff]
        %v809 = vld [vmem:[%s204 + $0x10a0] sm:$0xff]
        %v810 = vld [vmem:[%s204 + $0x10a8] sm:$0xff]
        %v811 = vld [vmem:[%s204 + $0x10b0] sm:$0xff]
        %v812 = vld [vmem:[%s204 + $0x10b8] sm:$0xff]
        %v813 = vld [vmem:[%s204 + $0x10c0] sm:$0xff]
        %v814 = vld [vmem:[%s204 + $0x10c8] sm:$0xf]
        %v815 = vld [vmem:[%s204 + $0x10cc] sm:$0xff]
        %v816 = vld [vmem:[%s204 + $0x10d4] sm:$0xff]
        %v817 = vld [vmem:[%s204 + $0x10dc] sm:$0xff]
        %v818 = vld [vmem:[%s204 + $0x10e4] sm:$0xff]
        %v819 = vld [vmem:[%s204 + $0x10ec] sm:$0xff]
        %v820 = vld [vmem:[%s204 + $0x10f4] sm:$0xff]
        %v821 = vld [vmem:[%s204 + $0x10fc] sm:$0xff]
        %v822 = vld [vmem:[%s204 + $0x1104] sm:$0xff]
        %v823 = vld [vmem:[%s204 + $0x110c] sm:$0xff]
        %v824 = vld [vmem:[%s204 + $0x1114] sm:$0xff]
        %v825 = vld [vmem:[%s204 + $0x111c] sm:$0xff]
        %v826 = vld [vmem:[%s204 + $0x1124] sm:$0xff]
        %v827 = vld [vmem:[%s204 + $0x112c] sm:$0xf]
        %v828 = vld [vmem:[%s204 + $0x1130] sm:$0xff]
        %v829 = vld [vmem:[%s204 + $0x1138] sm:$0xff]
        %v830 = vld [vmem:[%s204 + $0x1140] sm:$0xff]
        %v831 = vld [vmem:[%s204 + $0x1148] sm:$0xff]
        %v832 = vld [vmem:[%s204 + $0x1150] sm:$0xff]
        %v833 = vld [vmem:[%s204 + $0x1158] sm:$0xff]
        %v834 = vld [vmem:[%s204 + $0x1160] sm:$0xff]
        %v835 = vld [vmem:[%s204 + $0x1168] sm:$0xff]
        %v836 = vld [vmem:[%s204 + $0x1170] sm:$0xff]
        %v837 = vld [vmem:[%s204 + $0x1178] sm:$0xff]
        %v838 = vld [vmem:[%s204 + $0x1180] sm:$0xff]
        %v839 = vld [vmem:[%s204 + $0x1188] sm:$0xff]
        %v840 = vld [vmem:[%s204 + $0x1190] sm:$0xf]
        %v841 = vld [vmem:[%s204 + $0x1194] sm:$0xff]
        %v842 = vld [vmem:[%s204 + $0x119c] sm:$0xff]
        %v843 = vld [vmem:[%s204 + $0x11a4] sm:$0xff]
        %v844 = vld [vmem:[%s204 + $0x11ac] sm:$0xff]
        %v845 = vld [vmem:[%s204 + $0x11b4] sm:$0xff]
        %v846 = vld [vmem:[%s204 + $0x11bc] sm:$0xff]
        %v847 = vld [vmem:[%s204 + $0x11c4] sm:$0xff]
        %v848 = vld [vmem:[%s204 + $0x11cc] sm:$0xff]
        %v849 = vld [vmem:[%s204 + $0x11d4] sm:$0xff]
        %v850 = vld [vmem:[%s204 + $0x11dc] sm:$0xff]
        %v851 = vld [vmem:[%s204 + $0x11e4] sm:$0xff]
        %v852 = vld [vmem:[%s204 + $0x11ec] sm:$0xff]
        %v853 = vld [vmem:[%s204 + $0x11f4] sm:$0xf]
        %v854 = vld [vmem:[%s204 + $0x11f8] sm:$0xff]
        %v855 = vld [vmem:[%s204 + $0x1200] sm:$0xff]
        %v856 = vld [vmem:[%s204 + $0x1208] sm:$0xff]
        %v857 = vld [vmem:[%s204 + $0x1210] sm:$0xff]
        %v858 = vld [vmem:[%s204 + $0x1218] sm:$0xff]
        %v859 = vld [vmem:[%s204 + $0x1220] sm:$0xff]
        %v860 = vld [vmem:[%s204 + $0x1228] sm:$0xff]
        %v861 = vld [vmem:[%s204 + $0x1230] sm:$0xff]
        %v862 = vld [vmem:[%s204 + $0x1238] sm:$0xff]
        %v863 = vld [vmem:[%s204 + $0x1240] sm:$0xff]
        %v864 = vld [vmem:[%s204 + $0x1248] sm:$0xff]
        %v865 = vld [vmem:[%s204 + $0x1250] sm:$0xff]
        %v866 = vld [vmem:[%s204 + $0x1258] sm:$0xf]
        %v867 = vld [vmem:[%s204 + $0x125c] sm:$0xff]
        %v868 = vld [vmem:[%s204 + $0x1264] sm:$0xff]
        %v869 = vld [vmem:[%s204 + $0x126c] sm:$0xff]
        %v870 = vld [vmem:[%s204 + $0x1274] sm:$0xff]
        %v871 = vld [vmem:[%s204 + $0x127c] sm:$0xff]
        %v872 = vld [vmem:[%s204 + $0x1284] sm:$0xff]
        %v873 = vld [vmem:[%s204 + $0x128c] sm:$0xff]
        %v874 = vld [vmem:[%s204 + $0x1294] sm:$0xff]
        %v875 = vld [vmem:[%s204 + $0x129c] sm:$0xff]
        %v876 = vld [vmem:[%s204 + $0x12a4] sm:$0xff]
        %v877 = vld [vmem:[%s204 + $0x12ac] sm:$0xff]
        %v878 = vld [vmem:[%s204 + $0x12b4] sm:$0xff]
        %v879 = vld [vmem:[%s204 + $0x12bc] sm:$0xf]
        %v880 = vld [vmem:[%s204 + $0x12c0] sm:$0xff]
        %v881 = vld [vmem:[%s204 + $0x12c8] sm:$0xff]
        %v882 = vld [vmem:[%s204 + $0x12d0] sm:$0xff]
        %v883 = vld [vmem:[%s204 + $0x12d8] sm:$0xff]
        %v884 = vld [vmem:[%s204 + $0x12e0] sm:$0xff]
        %v885 = vld [vmem:[%s204 + $0x12e8] sm:$0xff]
        %v886 = vld [vmem:[%s204 + $0x12f0] sm:$0xff]
        %v887 = vld [vmem:[%s204 + $0x12f8] sm:$0xff]
        %v888 = vld [vmem:[%s204 + $0x1300] sm:$0xff]
        %v889 = vld [vmem:[%s204 + $0x1308] sm:$0xff]
        %v890 = vld [vmem:[%s204 + $0x1310] sm:$0xff]
        %v891 = vld [vmem:[%s204 + $0x1318] sm:$0xff]
        %v892 = vld [vmem:[%s204 + $0x1320] sm:$0xf]
        %v893 = vld [vmem:[%s204 + $0x1324] sm:$0xff]
        %v894 = vld [vmem:[%s204 + $0x132c] sm:$0xff]
        %v895 = vld [vmem:[%s204 + $0x1334] sm:$0xff]
        %v896 = vld [vmem:[%s204 + $0x133c] sm:$0xff]
        %v897 = vld [vmem:[%s204 + $0x1344] sm:$0xff]
        %v898 = vld [vmem:[%s204 + $0x134c] sm:$0xff]
        %v899 = vld [vmem:[%s204 + $0x1354] sm:$0xff]
        %v900 = vld [vmem:[%s204 + $0x135c] sm:$0xff]
        %v901 = vld [vmem:[%s204 + $0x1364] sm:$0xff]
        %v902 = vld [vmem:[%s204 + $0x136c] sm:$0xff]
        %v903 = vld [vmem:[%s204 + $0x1374] sm:$0xff]
        %v904 = vld [vmem:[%s204 + $0x137c] sm:$0xff]
        %v905 = vld [vmem:[%s204 + $0x1384] sm:$0xf]
        %913 = vst [vmem:[#allocation1] ss:$4 sm:$0xff] %v249
        %s914 = scalar_lea.vmem [#allocation1], 32
        %915 = vst [vmem:[%s914] ss:$4 sm:$0xff] %v250
        %v916 = vld.sshfl [vmem:[#allocation1] sm:$0xff pattern:$0x73625140]
        %v917 = vld.sshfl [vmem:[#allocation1 + $0x8] sm:$0xff pattern:$0x73625140]
        %v918 = vld.sshfl [vmem:[#allocation1 + $0x10] sm:$0xff pattern:$0x73625140]
        %v919 = vld.sshfl [vmem:[#allocation1 + $0x18] sm:$0xff pattern:$0x73625140]
        %v920 = vld.sshfl [vmem:[#allocation1 + $0x20] sm:$0xff pattern:$0x73625140]
        %v921 = vld.sshfl [vmem:[#allocation1 + $0x28] sm:$0xff pattern:$0x73625140]
        %v922 = vld.sshfl [vmem:[#allocation1 + $0x30] sm:$0xff pattern:$0x73625140]
        %v923 = vld.sshfl [vmem:[#allocation1 + $0x38] sm:$0xff pattern:$0x73625140]
        %924 = vst [vmem:[#allocation1] ss:$4 sm:$0xff] %v251
        %925 = vst [vmem:[%s914] ss:$4 sm:$0xff] %v252
        %v926 = vld.sshfl [vmem:[#allocation1] sm:$0xff pattern:$0x73625140]
        %v927 = vld.sshfl [vmem:[#allocation1 + $0x8] sm:$0xff pattern:$0x73625140]
        %v928 = vld.sshfl [vmem:[#allocation1 + $0x10] sm:$0xff pattern:$0x73625140]
        %v929 = vld.sshfl [vmem:[#allocation1 + $0x18] sm:$0xff pattern:$0x73625140]
        %v930 = vld.sshfl [vmem:[#allocation1 + $0x20] sm:$0xff pattern:$0x73625140]
        %v931 = vld.sshfl [vmem:[#allocation1 + $0x28] sm:$0xff pattern:$0x73625140]
        %v932 = vld.sshfl [vmem:[#allocation1 + $0x30] sm:$0xff pattern:$0x73625140]
        %v933 = vld.sshfl [vmem:[#allocation1 + $0x38] sm:$0xff pattern:$0x73625140]
        %934 = vst [vmem:[#allocation1] ss:$4 sm:$0xff] %v253
        %935 = vst [vmem:[%s914] ss:$4 sm:$0xff] %v254
        %v936 = vld.sshfl [vmem:[#allocation1] sm:$0xff pattern:$0x73625140]
        %v937 = vld.sshfl [vmem:[#allocation1 + $0x8] sm:$0xff pattern:$0x73625140]
        %v938 = vld.sshfl [vmem:[#allocation1 + $0x10] sm:$0xff pattern:$0x73625140]
        %v939 = vld.sshfl [vmem:[#allocation1 + $0x18] sm:$0xff pattern:$0x73625140]
        %v940 = vld.sshfl [vmem:[#allocation1 + $0x20] sm:$0xff pattern:$0x73625140]
        %v941 = vld.sshfl [vmem:[#allocation1 + $0x28] sm:$0xff pattern:$0x73625140]
        %v942 = vld.sshfl [vmem:[#allocation1 + $0x30] sm:$0xff pattern:$0x73625140]
        %v943 = vld.sshfl [vmem:[#allocation1 + $0x38] sm:$0xff pattern:$0x73625140]
        %944 = vst [vmem:[#allocation1] ss:$4 sm:$0xff] %v255
        %v945 = vld.sshfl [vmem:[#allocation1] sm:$0xff pattern:$0x73625140]
        %v971 = vpack.c.bf16 %v916, %v916
        %v972 = vpack.c.bf16 %v917, %v917
        %v973 = vpack.c.bf16 %v918, %v918
        %v974 = vpack.c.bf16 %v919, %v919
        %v975 = vpack.c.bf16 %v920, %v920
        %v976 = vpack.c.bf16 %v921, %v921
        %v977 = vpack.c.bf16 %v922, %v922
        %v978 = vpack.c.bf16 %v923, %v923
        %v979 = vpack.c.bf16 %v926, %v926
        %v980 = vpack.c.bf16 %v927, %v927
        %v981 = vpack.c.bf16 %v928, %v928
        %v982 = vpack.c.bf16 %v929, %v929
        %v983 = vpack.c.bf16 %v930, %v930
        %v984 = vpack.c.bf16 %v931, %v931
        %v985 = vpack.c.bf16 %v932, %v932
        %v986 = vpack.c.bf16 %v933, %v933
        %v987 = vpack.c.bf16 %v936, %v936
        %v988 = vpack.c.bf16 %v937, %v937
        %v989 = vpack.c.bf16 %v938, %v938
        %v990 = vpack.c.bf16 %v939, %v939
        %v991 = vpack.c.bf16 %v940, %v940
        %v992 = vpack.c.bf16 %v941, %v941
        %v993 = vpack.c.bf16 %v942, %v942
        %v994 = vpack.c.bf16 %v943, %v943
        %v995 = vpack.c.bf16 %v945, %v945
        %v1646 = vunpack.c.l.b16 %v256
        %v1647 = vunpack.c.h.b16 %v256
        %v1648 = vunpack.c.l.b16 %v257
        %v1649 = vunpack.c.h.b16 %v257
        %v1650 = vunpack.c.l.b16 %v258
        %v1651 = vunpack.c.h.b16 %v258
        %v1652 = vunpack.c.l.b16 %v259
        %v1653 = vunpack.c.h.b16 %v259
        %v1654 = vunpack.c.l.b16 %v260
        %v1655 = vunpack.c.h.b16 %v260
        %v1656 = vunpack.c.l.b16 %v261
        %v1657 = vunpack.c.h.b16 %v261
        %v1658 = vunpack.c.l.b16 %v262
        %v1659 = vunpack.c.h.b16 %v262
        %v1660 = vunpack.c.l.b16 %v263
        %v1661 = vunpack.c.h.b16 %v263
        %v1662 = vunpack.c.l.b16 %v264
        %v1663 = vunpack.c.h.b16 %v264
        %v1664 = vunpack.c.l.b16 %v265
        %v1665 = vunpack.c.h.b16 %v265
        %v1666 = vunpack.c.l.b16 %v266
        %v1667 = vunpack.c.h.b16 %v266
        %v1668 = vunpack.c.l.b16 %v267
        %v1669 = vunpack.c.h.b16 %v267
        %v1670 = vunpack.c.l.b16 %v268
        %v1671 = vunpack.c.l.b16 %v269
        %v1672 = vunpack.c.h.b16 %v269
        %v1673 = vunpack.c.l.b16 %v270
        %v1674 = vunpack.c.h.b16 %v270
        %v1675 = vunpack.c.l.b16 %v271
        %v1676 = vunpack.c.h.b16 %v271
        %v1677 = vunpack.c.l.b16 %v272
        %v1678 = vunpack.c.h.b16 %v272
        %v1679 = vunpack.c.l.b16 %v273
        %v1680 = vunpack.c.h.b16 %v273
        %v1681 = vunpack.c.l.b16 %v274
        %v1682 = vunpack.c.h.b16 %v274
        %v1683 = vunpack.c.l.b16 %v275
        %v1684 = vunpack.c.h.b16 %v275
        %v1685 = vunpack.c.l.b16 %v276
        %v1686 = vunpack.c.h.b16 %v276
        %v1687 = vunpack.c.l.b16 %v277
        %v1688 = vunpack.c.h.b16 %v277
        %v1689 = vunpack.c.l.b16 %v278
        %v1690 = vunpack.c.h.b16 %v278
        %v1691 = vunpack.c.l.b16 %v279
        %v1692 = vunpack.c.h.b16 %v279
        %v1693 = vunpack.c.l.b16 %v280
        %v1694 = vunpack.c.h.b16 %v280
        %v1695 = vunpack.c.l.b16 %v281
        %v1696 = vunpack.c.l.b16 %v282
        %v1697 = vunpack.c.h.b16 %v282
        %v1698 = vunpack.c.l.b16 %v283
        %v1699 = vunpack.c.h.b16 %v283
        %v1700 = vunpack.c.l.b16 %v284
        %v1701 = vunpack.c.h.b16 %v284
        %v1702 = vunpack.c.l.b16 %v285
        %v1703 = vunpack.c.h.b16 %v285
        %v1704 = vunpack.c.l.b16 %v286
        %v1705 = vunpack.c.h.b16 %v286
        %v1706 = vunpack.c.l.b16 %v287
        %v1707 = vunpack.c.h.b16 %v287
        %v1708 = vunpack.c.l.b16 %v288
        %v1709 = vunpack.c.h.b16 %v288
        %v1710 = vunpack.c.l.b16 %v289
        %v1711 = vunpack.c.h.b16 %v289
        %v1712 = vunpack.c.l.b16 %v290
        %v1713 = vunpack.c.h.b16 %v290
        %v1714 = vunpack.c.l.b16 %v291
        %v1715 = vunpack.c.h.b16 %v291
        %v1716 = vunpack.c.l.b16 %v292
        %v1717 = vunpack.c.h.b16 %v292
        %v1718 = vunpack.c.l.b16 %v293
        %v1719 = vunpack.c.h.b16 %v293
        %v1720 = vunpack.c.l.b16 %v294
        %v1721 = vunpack.c.l.b16 %v295
        %v1722 = vunpack.c.h.b16 %v295
        %v1723 = vunpack.c.l.b16 %v296
        %v1724 = vunpack.c.h.b16 %v296
        %v1725 = vunpack.c.l.b16 %v297
        %v1726 = vunpack.c.h.b16 %v297
        %v1727 = vunpack.c.l.b16 %v298
        %v1728 = vunpack.c.h.b16 %v298
        %v1729 = vunpack.c.l.b16 %v299
        %v1730 = vunpack.c.h.b16 %v299
        %v1731 = vunpack.c.l.b16 %v300
        %v1732 = vunpack.c.h.b16 %v300
        %v1733 = vunpack.c.l.b16 %v301
        %v1734 = vunpack.c.h.b16 %v301
        %v1735 = vunpack.c.l.b16 %v302
        %v1736 = vunpack.c.h.b16 %v302
        %v1737 = vunpack.c.l.b16 %v303
        %v1738 = vunpack.c.h.b16 %v303
        %v1739 = vunpack.c.l.b16 %v304
        %v1740 = vunpack.c.h.b16 %v304
        %v1741 = vunpack.c.l.b16 %v305
        %v1742 = vunpack.c.h.b16 %v305
        %v1743 = vunpack.c.l.b16 %v306
        %v1744 = vunpack.c.h.b16 %v306
        %v1745 = vunpack.c.l.b16 %v307
        %v1746 = vunpack.c.l.b16 %v308
        %v1747 = vunpack.c.h.b16 %v308
        %v1748 = vunpack.c.l.b16 %v309
        %v1749 = vunpack.c.h.b16 %v309
        %v1750 = vunpack.c.l.b16 %v310
        %v1751 = vunpack.c.h.b16 %v310
        %v1752 = vunpack.c.l.b16 %v311
        %v1753 = vunpack.c.h.b16 %v311
        %v1754 = vunpack.c.l.b16 %v312
        %v1755 = vunpack.c.h.b16 %v312
        %v1756 = vunpack.c.l.b16 %v313
        %v1757 = vunpack.c.h.b16 %v313
        %v1758 = vunpack.c.l.b16 %v314
        %v1759 = vunpack.c.h.b16 %v314
        %v1760 = vunpack.c.l.b16 %v315
        %v1761 = vunpack.c.h.b16 %v315
        %v1762 = vunpack.c.l.b16 %v316
        %v1763 = vunpack.c.h.b16 %v316
        %v1764 = vunpack.c.l.b16 %v317
        %v1765 = vunpack.c.h.b16 %v317
        %v1766 = vunpack.c.l.b16 %v318
        %v1767 = vunpack.c.h.b16 %v318
        %v1768 = vunpack.c.l.b16 %v319
        %v1769 = vunpack.c.h.b16 %v319
        %v1770 = vunpack.c.l.b16 %v320
        %v1771 = vunpack.c.l.b16 %v321
        %v1772 = vunpack.c.h.b16 %v321
        %v1773 = vunpack.c.l.b16 %v322
        %v1774 = vunpack.c.h.b16 %v322
        %v1775 = vunpack.c.l.b16 %v323
        %v1776 = vunpack.c.h.b16 %v323
        %v1777 = vunpack.c.l.b16 %v324
        %v1778 = vunpack.c.h.b16 %v324
        %v1779 = vunpack.c.l.b16 %v325
        %v1780 = vunpack.c.h.b16 %v325
        %v1781 = vunpack.c.l.b16 %v326
        %v1782 = vunpack.c.h.b16 %v326
        %v1783 = vunpack.c.l.b16 %v327
        %v1784 = vunpack.c.h.b16 %v327
        %v1785 = vunpack.c.l.b16 %v328
        %v1786 = vunpack.c.h.b16 %v328
        %v1787 = vunpack.c.l.b16 %v329
        %v1788 = vunpack.c.h.b16 %v329
        %v1789 = vunpack.c.l.b16 %v330
        %v1790 = vunpack.c.h.b16 %v330
        %v1791 = vunpack.c.l.b16 %v331
        %v1792 = vunpack.c.h.b16 %v331
        %v1793 = vunpack.c.l.b16 %v332
        %v1794 = vunpack.c.h.b16 %v332
        %v1795 = vunpack.c.l.b16 %v333
        %v1796 = vunpack.c.l.b16 %v334
        %v1797 = vunpack.c.h.b16 %v334
        %v1798 = vunpack.c.l.b16 %v335
        %v1799 = vunpack.c.h.b16 %v335
        %v1800 = vunpack.c.l.b16 %v336
        %v1801 = vunpack.c.h.b16 %v336
        %v1802 = vunpack.c.l.b16 %v337
        %v1803 = vunpack.c.h.b16 %v337
        %v1804 = vunpack.c.l.b16 %v338
        %v1805 = vunpack.c.h.b16 %v338
        %v1806 = vunpack.c.l.b16 %v339
        %v1807 = vunpack.c.h.b16 %v339
        %v1808 = vunpack.c.l.b16 %v340
        %v1809 = vunpack.c.h.b16 %v340
        %v1810 = vunpack.c.l.b16 %v341
        %v1811 = vunpack.c.h.b16 %v341
        %v1812 = vunpack.c.l.b16 %v342
        %v1813 = vunpack.c.h.b16 %v342
        %v1814 = vunpack.c.l.b16 %v343
        %v1815 = vunpack.c.h.b16 %v343
        %v1816 = vunpack.c.l.b16 %v344
        %v1817 = vunpack.c.h.b16 %v344
        %v1818 = vunpack.c.l.b16 %v345
        %v1819 = vunpack.c.h.b16 %v345
        %v1820 = vunpack.c.l.b16 %v346
        %v1821 = vunpack.c.l.b16 %v347
        %v1822 = vunpack.c.h.b16 %v347
        %v1823 = vunpack.c.l.b16 %v348
        %v1824 = vunpack.c.h.b16 %v348
        %v1825 = vunpack.c.l.b16 %v349
        %v1826 = vunpack.c.h.b16 %v349
        %v1827 = vunpack.c.l.b16 %v350
        %v1828 = vunpack.c.h.b16 %v350
        %v1829 = vunpack.c.l.b16 %v351
        %v1830 = vunpack.c.h.b16 %v351
        %v1831 = vunpack.c.l.b16 %v352
        %v1832 = vunpack.c.h.b16 %v352
        %v1833 = vunpack.c.l.b16 %v353
        %v1834 = vunpack.c.h.b16 %v353
        %v1835 = vunpack.c.l.b16 %v354
        %v1836 = vunpack.c.h.b16 %v354
        %v1837 = vunpack.c.l.b16 %v355
        %v1838 = vunpack.c.h.b16 %v355
        %v1839 = vunpack.c.l.b16 %v356
        %v1840 = vunpack.c.h.b16 %v356
        %v1841 = vunpack.c.l.b16 %v357
        %v1842 = vunpack.c.h.b16 %v357
        %v1843 = vunpack.c.l.b16 %v358
        %v1844 = vunpack.c.h.b16 %v358
        %v1845 = vunpack.c.l.b16 %v359
        %v1846 = vunpack.c.l.b16 %v360
        %v1847 = vunpack.c.h.b16 %v360
        %v1848 = vunpack.c.l.b16 %v361
        %v1849 = vunpack.c.h.b16 %v361
        %v1850 = vunpack.c.l.b16 %v362
        %v1851 = vunpack.c.h.b16 %v362
        %v1852 = vunpack.c.l.b16 %v363
        %v1853 = vunpack.c.h.b16 %v363
        %v1854 = vunpack.c.l.b16 %v364
        %v1855 = vunpack.c.h.b16 %v364
        %v1856 = vunpack.c.l.b16 %v365
        %v1857 = vunpack.c.h.b16 %v365
        %v1858 = vunpack.c.l.b16 %v366
        %v1859 = vunpack.c.h.b16 %v366
        %v1860 = vunpack.c.l.b16 %v367
        %v1861 = vunpack.c.h.b16 %v367
        %v1862 = vunpack.c.l.b16 %v368
        %v1863 = vunpack.c.h.b16 %v368
        %v1864 = vunpack.c.l.b16 %v369
        %v1865 = vunpack.c.h.b16 %v369
        %v1866 = vunpack.c.l.b16 %v370
        %v1867 = vunpack.c.h.b16 %v370
        %v1868 = vunpack.c.l.b16 %v371
        %v1869 = vunpack.c.h.b16 %v371
        %v1870 = vunpack.c.l.b16 %v372
        %v1871 = vunpack.c.l.b16 %v373
        %v1872 = vunpack.c.h.b16 %v373
        %v1873 = vunpack.c.l.b16 %v374
        %v1874 = vunpack.c.h.b16 %v374
        %v1875 = vunpack.c.l.b16 %v375
        %v1876 = vunpack.c.h.b16 %v375
        %v1877 = vunpack.c.l.b16 %v376
        %v1878 = vunpack.c.h.b16 %v376
        %v1879 = vunpack.c.l.b16 %v377
        %v1880 = vunpack.c.h.b16 %v377
        %v1881 = vunpack.c.l.b16 %v378
        %v1882 = vunpack.c.h.b16 %v378
        %v1883 = vunpack.c.l.b16 %v379
        %v1884 = vunpack.c.h.b16 %v379
        %v1885 = vunpack.c.l.b16 %v380
        %v1886 = vunpack.c.h.b16 %v380
        %v1887 = vunpack.c.l.b16 %v381
        %v1888 = vunpack.c.h.b16 %v381
        %v1889 = vunpack.c.l.b16 %v382
        %v1890 = vunpack.c.h.b16 %v382
        %v1891 = vunpack.c.l.b16 %v383
        %v1892 = vunpack.c.h.b16 %v383
        %v1893 = vunpack.c.l.b16 %v384
        %v1894 = vunpack.c.h.b16 %v384
        %v1895 = vunpack.c.l.b16 %v385
        %v1896 = vunpack.c.l.b16 %v386
        %v1897 = vunpack.c.h.b16 %v386
        %v1898 = vunpack.c.l.b16 %v387
        %v1899 = vunpack.c.h.b16 %v387
        %v1900 = vunpack.c.l.b16 %v388
        %v1901 = vunpack.c.h.b16 %v388
        %v1902 = vunpack.c.l.b16 %v389
        %v1903 = vunpack.c.h.b16 %v389
        %v1904 = vunpack.c.l.b16 %v390
        %v1905 = vunpack.c.h.b16 %v390
        %v1906 = vunpack.c.l.b16 %v391
        %v1907 = vunpack.c.h.b16 %v391
        %v1908 = vunpack.c.l.b16 %v392
        %v1909 = vunpack.c.h.b16 %v392
        %v1910 = vunpack.c.l.b16 %v393
        %v1911 = vunpack.c.h.b16 %v393
        %v1912 = vunpack.c.l.b16 %v394
        %v1913 = vunpack.c.h.b16 %v394
        %v1914 = vunpack.c.l.b16 %v395
        %v1915 = vunpack.c.h.b16 %v395
        %v1916 = vunpack.c.l.b16 %v396
        %v1917 = vunpack.c.h.b16 %v396
        %v1918 = vunpack.c.l.b16 %v397
        %v1919 = vunpack.c.h.b16 %v397
        %v1920 = vunpack.c.l.b16 %v398
        %v1921 = vunpack.c.l.b16 %v399
        %v1922 = vunpack.c.h.b16 %v399
        %v1923 = vunpack.c.l.b16 %v400
        %v1924 = vunpack.c.h.b16 %v400
        %v1925 = vunpack.c.l.b16 %v401
        %v1926 = vunpack.c.h.b16 %v401
        %v1927 = vunpack.c.l.b16 %v402
        %v1928 = vunpack.c.h.b16 %v402
        %v1929 = vunpack.c.l.b16 %v403
        %v1930 = vunpack.c.h.b16 %v403
        %v1931 = vunpack.c.l.b16 %v404
        %v1932 = vunpack.c.h.b16 %v404
        %v1933 = vunpack.c.l.b16 %v405
        %v1934 = vunpack.c.h.b16 %v405
        %v1935 = vunpack.c.l.b16 %v406
        %v1936 = vunpack.c.h.b16 %v406
        %v1937 = vunpack.c.l.b16 %v407
        %v1938 = vunpack.c.h.b16 %v407
        %v1939 = vunpack.c.l.b16 %v408
        %v1940 = vunpack.c.h.b16 %v408
        %v1941 = vunpack.c.l.b16 %v409
        %v1942 = vunpack.c.h.b16 %v409
        %v1943 = vunpack.c.l.b16 %v410
        %v1944 = vunpack.c.h.b16 %v410
        %v1945 = vunpack.c.l.b16 %v411
        %v1946 = vunpack.c.l.b16 %v412
        %v1947 = vunpack.c.h.b16 %v412
        %v1948 = vunpack.c.l.b16 %v413
        %v1949 = vunpack.c.h.b16 %v413
        %v1950 = vunpack.c.l.b16 %v414
        %v1951 = vunpack.c.h.b16 %v414
        %v1952 = vunpack.c.l.b16 %v415
        %v1953 = vunpack.c.h.b16 %v415
        %v1954 = vunpack.c.l.b16 %v416
        %v1955 = vunpack.c.h.b16 %v416
        %v1956 = vunpack.c.l.b16 %v417
        %v1957 = vunpack.c.h.b16 %v417
        %v1958 = vunpack.c.l.b16 %v418
        %v1959 = vunpack.c.h.b16 %v418
        %v1960 = vunpack.c.l.b16 %v419
        %v1961 = vunpack.c.h.b16 %v419
        %v1962 = vunpack.c.l.b16 %v420
        %v1963 = vunpack.c.h.b16 %v420
        %v1964 = vunpack.c.l.b16 %v421
        %v1965 = vunpack.c.h.b16 %v421
        %v1966 = vunpack.c.l.b16 %v422
        %v1967 = vunpack.c.h.b16 %v422
        %v1968 = vunpack.c.l.b16 %v423
        %v1969 = vunpack.c.h.b16 %v423
        %v1970 = vunpack.c.l.b16 %v424
        %v1971 = vunpack.c.l.b16 %v425
        %v1972 = vunpack.c.h.b16 %v425
        %v1973 = vunpack.c.l.b16 %v426
        %v1974 = vunpack.c.h.b16 %v426
        %v1975 = vunpack.c.l.b16 %v427
        %v1976 = vunpack.c.h.b16 %v427
        %v1977 = vunpack.c.l.b16 %v428
        %v1978 = vunpack.c.h.b16 %v428
        %v1979 = vunpack.c.l.b16 %v429
        %v1980 = vunpack.c.h.b16 %v429
        %v1981 = vunpack.c.l.b16 %v430
        %v1982 = vunpack.c.h.b16 %v430
        %v1983 = vunpack.c.l.b16 %v431
        %v1984 = vunpack.c.h.b16 %v431
        %v1985 = vunpack.c.l.b16 %v432
        %v1986 = vunpack.c.h.b16 %v432
        %v1987 = vunpack.c.l.b16 %v433
        %v1988 = vunpack.c.h.b16 %v433
        %v1989 = vunpack.c.l.b16 %v434
        %v1990 = vunpack.c.h.b16 %v434
        %v1991 = vunpack.c.l.b16 %v435
        %v1992 = vunpack.c.h.b16 %v435
        %v1993 = vunpack.c.l.b16 %v436
        %v1994 = vunpack.c.h.b16 %v436
        %v1995 = vunpack.c.l.b16 %v437
        %v1996 = vunpack.c.l.b16 %v438
        %v1997 = vunpack.c.h.b16 %v438
        %v1998 = vunpack.c.l.b16 %v439
        %v1999 = vunpack.c.h.b16 %v439
        %v2000 = vunpack.c.l.b16 %v440
        %v2001 = vunpack.c.h.b16 %v440
        %v2002 = vunpack.c.l.b16 %v441
        %v2003 = vunpack.c.h.b16 %v441
        %v2004 = vunpack.c.l.b16 %v442
        %v2005 = vunpack.c.h.b16 %v442
        %v2006 = vunpack.c.l.b16 %v443
        %v2007 = vunpack.c.h.b16 %v443
        %v2008 = vunpack.c.l.b16 %v444
        %v2009 = vunpack.c.h.b16 %v444
        %v2010 = vunpack.c.l.b16 %v445
        %v2011 = vunpack.c.h.b16 %v445
        %v2012 = vunpack.c.l.b16 %v446
        %v2013 = vunpack.c.h.b16 %v446
        %v2014 = vunpack.c.l.b16 %v447
        %v2015 = vunpack.c.h.b16 %v447
        %v2016 = vunpack.c.l.b16 %v448
        %v2017 = vunpack.c.h.b16 %v448
        %v2018 = vunpack.c.l.b16 %v449
        %v2019 = vunpack.c.h.b16 %v449
        %v2020 = vunpack.c.l.b16 %v450
        %v2021 = vunpack.c.l.b16 %v451
        %v2022 = vunpack.c.h.b16 %v451
        %v2023 = vunpack.c.l.b16 %v452
        %v2024 = vunpack.c.h.b16 %v452
        %v2025 = vunpack.c.l.b16 %v453
        %v2026 = vunpack.c.h.b16 %v453
        %v2027 = vunpack.c.l.b16 %v454
        %v2028 = vunpack.c.h.b16 %v454
        %v2029 = vunpack.c.l.b16 %v455
        %v2030 = vunpack.c.h.b16 %v455
        %v2031 = vunpack.c.l.b16 %v456
        %v2032 = vunpack.c.h.b16 %v456
        %v2033 = vunpack.c.l.b16 %v457
        %v2034 = vunpack.c.h.b16 %v457
        %v2035 = vunpack.c.l.b16 %v458
        %v2036 = vunpack.c.h.b16 %v458
        %v2037 = vunpack.c.l.b16 %v459
        %v2038 = vunpack.c.h.b16 %v459
        %v2039 = vunpack.c.l.b16 %v460
        %v2040 = vunpack.c.h.b16 %v460
        %v2041 = vunpack.c.l.b16 %v461
        %v2042 = vunpack.c.h.b16 %v461
        %v2043 = vunpack.c.l.b16 %v462
        %v2044 = vunpack.c.h.b16 %v462
        %v2045 = vunpack.c.l.b16 %v463
        %v2046 = vunpack.c.l.b16 %v464
        %v2047 = vunpack.c.h.b16 %v464
        %v2048 = vunpack.c.l.b16 %v465
        %v2049 = vunpack.c.h.b16 %v465
        %v2050 = vunpack.c.l.b16 %v466
        %v2051 = vunpack.c.h.b16 %v466
        %v2052 = vunpack.c.l.b16 %v467
        %v2053 = vunpack.c.h.b16 %v467
        %v2054 = vunpack.c.l.b16 %v468
        %v2055 = vunpack.c.h.b16 %v468
        %v2056 = vunpack.c.l.b16 %v469
        %v2057 = vunpack.c.h.b16 %v469
        %v2058 = vunpack.c.l.b16 %v470
        %v2059 = vunpack.c.h.b16 %v470
        %v2060 = vunpack.c.l.b16 %v471
        %v2061 = vunpack.c.h.b16 %v471
        %v2062 = vunpack.c.l.b16 %v472
        %v2063 = vunpack.c.h.b16 %v472
        %v2064 = vunpack.c.l.b16 %v473
        %v2065 = vunpack.c.h.b16 %v473
        %v2066 = vunpack.c.l.b16 %v474
        %v2067 = vunpack.c.h.b16 %v474
        %v2068 = vunpack.c.l.b16 %v475
        %v2069 = vunpack.c.h.b16 %v475
        %v2070 = vunpack.c.l.b16 %v476
        %v2071 = vunpack.c.l.b16 %v477
        %v2072 = vunpack.c.h.b16 %v477
        %v2073 = vunpack.c.l.b16 %v478
        %v2074 = vunpack.c.h.b16 %v478
        %v2075 = vunpack.c.l.b16 %v479
        %v2076 = vunpack.c.h.b16 %v479
        %v2077 = vunpack.c.l.b16 %v480
        %v2078 = vunpack.c.h.b16 %v480
        %v2079 = vunpack.c.l.b16 %v481
        %v2080 = vunpack.c.h.b16 %v481
        %v2081 = vunpack.c.l.b16 %v482
        %v2082 = vunpack.c.h.b16 %v482
        %v2083 = vunpack.c.l.b16 %v483
        %v2084 = vunpack.c.h.b16 %v483
        %v2085 = vunpack.c.l.b16 %v484
        %v2086 = vunpack.c.h.b16 %v484
        %v2087 = vunpack.c.l.b16 %v485
        %v2088 = vunpack.c.h.b16 %v485
        %v2089 = vunpack.c.l.b16 %v486
        %v2090 = vunpack.c.h.b16 %v486
        %v2091 = vunpack.c.l.b16 %v487
        %v2092 = vunpack.c.h.b16 %v487
        %v2093 = vunpack.c.l.b16 %v488
        %v2094 = vunpack.c.h.b16 %v488
        %v2095 = vunpack.c.l.b16 %v489
        %v2096 = vunpack.c.l.b16 %v490
        %v2097 = vunpack.c.h.b16 %v490
        %v2098 = vunpack.c.l.b16 %v491
        %v2099 = vunpack.c.h.b16 %v491
        %v2100 = vunpack.c.l.b16 %v492
        %v2101 = vunpack.c.h.b16 %v492
        %v2102 = vunpack.c.l.b16 %v493
        %v2103 = vunpack.c.h.b16 %v493
        %v2104 = vunpack.c.l.b16 %v494
        %v2105 = vunpack.c.h.b16 %v494
        %v2106 = vunpack.c.l.b16 %v495
        %v2107 = vunpack.c.h.b16 %v495
        %v2108 = vunpack.c.l.b16 %v496
        %v2109 = vunpack.c.h.b16 %v496
        %v2110 = vunpack.c.l.b16 %v497
        %v2111 = vunpack.c.h.b16 %v497
        %v2112 = vunpack.c.l.b16 %v498
        %v2113 = vunpack.c.h.b16 %v498
        %v2114 = vunpack.c.l.b16 %v499
        %v2115 = vunpack.c.h.b16 %v499
        %v2116 = vunpack.c.l.b16 %v500
        %v2117 = vunpack.c.h.b16 %v500
        %v2118 = vunpack.c.l.b16 %v501
        %v2119 = vunpack.c.h.b16 %v501
        %v2120 = vunpack.c.l.b16 %v502
        %v2121 = vunpack.c.l.b16 %v503
        %v2122 = vunpack.c.h.b16 %v503
        %v2123 = vunpack.c.l.b16 %v504
        %v2124 = vunpack.c.h.b16 %v504
        %v2125 = vunpack.c.l.b16 %v505
        %v2126 = vunpack.c.h.b16 %v505
        %v2127 = vunpack.c.l.b16 %v506
        %v2128 = vunpack.c.h.b16 %v506
        %v2129 = vunpack.c.l.b16 %v507
        %v2130 = vunpack.c.h.b16 %v507
        %v2131 = vunpack.c.l.b16 %v508
        %v2132 = vunpack.c.h.b16 %v508
        %v2133 = vunpack.c.l.b16 %v509
        %v2134 = vunpack.c.h.b16 %v509
        %v2135 = vunpack.c.l.b16 %v510
        %v2136 = vunpack.c.h.b16 %v510
        %v2137 = vunpack.c.l.b16 %v511
        %v2138 = vunpack.c.h.b16 %v511
        %v2139 = vunpack.c.l.b16 %v512
        %v2140 = vunpack.c.h.b16 %v512
        %v2141 = vunpack.c.l.b16 %v513
        %v2142 = vunpack.c.h.b16 %v513
        %v2143 = vunpack.c.l.b16 %v514
        %v2144 = vunpack.c.h.b16 %v514
        %v2145 = vunpack.c.l.b16 %v515
        %v2146 = vunpack.c.l.b16 %v516
        %v2147 = vunpack.c.h.b16 %v516
        %v2148 = vunpack.c.l.b16 %v517
        %v2149 = vunpack.c.h.b16 %v517
        %v2150 = vunpack.c.l.b16 %v518
        %v2151 = vunpack.c.h.b16 %v518
        %v2152 = vunpack.c.l.b16 %v519
        %v2153 = vunpack.c.h.b16 %v519
        %v2154 = vunpack.c.l.b16 %v520
        %v2155 = vunpack.c.h.b16 %v520
        %v2156 = vunpack.c.l.b16 %v521
        %v2157 = vunpack.c.h.b16 %v521
        %v2158 = vunpack.c.l.b16 %v522
        %v2159 = vunpack.c.h.b16 %v522
        %v2160 = vunpack.c.l.b16 %v523
        %v2161 = vunpack.c.h.b16 %v523
        %v2162 = vunpack.c.l.b16 %v524
        %v2163 = vunpack.c.h.b16 %v524
        %v2164 = vunpack.c.l.b16 %v525
        %v2165 = vunpack.c.h.b16 %v525
        %v2166 = vunpack.c.l.b16 %v526
        %v2167 = vunpack.c.h.b16 %v526
        %v2168 = vunpack.c.l.b16 %v527
        %v2169 = vunpack.c.h.b16 %v527
        %v2170 = vunpack.c.l.b16 %v528
        %v2171 = vunpack.c.l.b16 %v529
        %v2172 = vunpack.c.h.b16 %v529
        %v2173 = vunpack.c.l.b16 %v530
        %v2174 = vunpack.c.h.b16 %v530
        %v2175 = vunpack.c.l.b16 %v531
        %v2176 = vunpack.c.h.b16 %v531
        %v2177 = vunpack.c.l.b16 %v532
        %v2178 = vunpack.c.h.b16 %v532
        %v2179 = vunpack.c.l.b16 %v533
        %v2180 = vunpack.c.h.b16 %v533
        %v2181 = vunpack.c.l.b16 %v534
        %v2182 = vunpack.c.h.b16 %v534
        %v2183 = vunpack.c.l.b16 %v535
        %v2184 = vunpack.c.h.b16 %v535
        %v2185 = vunpack.c.l.b16 %v536
        %v2186 = vunpack.c.h.b16 %v536
        %v2187 = vunpack.c.l.b16 %v537
        %v2188 = vunpack.c.h.b16 %v537
        %v2189 = vunpack.c.l.b16 %v538
        %v2190 = vunpack.c.h.b16 %v538
        %v2191 = vunpack.c.l.b16 %v539
        %v2192 = vunpack.c.h.b16 %v539
        %v2193 = vunpack.c.l.b16 %v540
        %v2194 = vunpack.c.h.b16 %v540
        %v2195 = vunpack.c.l.b16 %v541
        %v2196 = vunpack.c.l.b16 %v542
        %v2197 = vunpack.c.h.b16 %v542
        %v2198 = vunpack.c.l.b16 %v543
        %v2199 = vunpack.c.h.b16 %v543
        %v2200 = vunpack.c.l.b16 %v544
        %v2201 = vunpack.c.h.b16 %v544
        %v2202 = vunpack.c.l.b16 %v545
        %v2203 = vunpack.c.h.b16 %v545
        %v2204 = vunpack.c.l.b16 %v546
        %v2205 = vunpack.c.h.b16 %v546
        %v2206 = vunpack.c.l.b16 %v547
        %v2207 = vunpack.c.h.b16 %v547
        %v2208 = vunpack.c.l.b16 %v548
        %v2209 = vunpack.c.h.b16 %v548
        %v2210 = vunpack.c.l.b16 %v549
        %v2211 = vunpack.c.h.b16 %v549
        %v2212 = vunpack.c.l.b16 %v550
        %v2213 = vunpack.c.h.b16 %v550
        %v2214 = vunpack.c.l.b16 %v551
        %v2215 = vunpack.c.h.b16 %v551
        %v2216 = vunpack.c.l.b16 %v552
        %v2217 = vunpack.c.h.b16 %v552
        %v2218 = vunpack.c.l.b16 %v553
        %v2219 = vunpack.c.h.b16 %v553
        %v2220 = vunpack.c.l.b16 %v554
        %v2221 = vunpack.c.l.b16 %v555
        %v2222 = vunpack.c.h.b16 %v555
        %v2223 = vunpack.c.l.b16 %v556
        %v2224 = vunpack.c.h.b16 %v556
        %v2225 = vunpack.c.l.b16 %v557
        %v2226 = vunpack.c.h.b16 %v557
        %v2227 = vunpack.c.l.b16 %v558
        %v2228 = vunpack.c.h.b16 %v558
        %v2229 = vunpack.c.l.b16 %v559
        %v2230 = vunpack.c.h.b16 %v559
        %v2231 = vunpack.c.l.b16 %v560
        %v2232 = vunpack.c.h.b16 %v560
        %v2233 = vunpack.c.l.b16 %v561
        %v2234 = vunpack.c.h.b16 %v561
        %v2235 = vunpack.c.l.b16 %v562
        %v2236 = vunpack.c.h.b16 %v562
        %v2237 = vunpack.c.l.b16 %v563
        %v2238 = vunpack.c.h.b16 %v563
        %v2239 = vunpack.c.l.b16 %v564
        %v2240 = vunpack.c.h.b16 %v564
        %v2241 = vunpack.c.l.b16 %v565
        %v2242 = vunpack.c.h.b16 %v565
        %v2243 = vunpack.c.l.b16 %v566
        %v2244 = vunpack.c.h.b16 %v566
        %v2245 = vunpack.c.l.b16 %v567
        %v2246 = vunpack.c.l.b16 %v568
        %v2247 = vunpack.c.h.b16 %v568
        %v2248 = vunpack.c.l.b16 %v569
        %v2249 = vunpack.c.h.b16 %v569
        %v2250 = vunpack.c.l.b16 %v570
        %v2251 = vunpack.c.h.b16 %v570
        %v2252 = vunpack.c.l.b16 %v571
        %v2253 = vunpack.c.h.b16 %v571
        %v2254 = vunpack.c.l.b16 %v572
        %v2255 = vunpack.c.h.b16 %v572
        %v2256 = vunpack.c.l.b16 %v573
        %v2257 = vunpack.c.h.b16 %v573
        %v2258 = vunpack.c.l.b16 %v574
        %v2259 = vunpack.c.h.b16 %v574
        %v2260 = vunpack.c.l.b16 %v575
        %v2261 = vunpack.c.h.b16 %v575
        %v2262 = vunpack.c.l.b16 %v576
        %v2263 = vunpack.c.h.b16 %v576
        %v2264 = vunpack.c.l.b16 %v577
        %v2265 = vunpack.c.h.b16 %v577
        %v2266 = vunpack.c.l.b16 %v578
        %v2267 = vunpack.c.h.b16 %v578
        %v2268 = vunpack.c.l.b16 %v579
        %v2269 = vunpack.c.h.b16 %v579
        %v2270 = vunpack.c.l.b16 %v580
        %v2271 = vunpack.c.l.b16 %v581
        %v2272 = vunpack.c.h.b16 %v581
        %v2273 = vunpack.c.l.b16 %v582
        %v2274 = vunpack.c.h.b16 %v582
        %v2275 = vunpack.c.l.b16 %v583
        %v2276 = vunpack.c.h.b16 %v583
        %v2277 = vunpack.c.l.b16 %v584
        %v2278 = vunpack.c.h.b16 %v584
        %v2279 = vunpack.c.l.b16 %v585
        %v2280 = vunpack.c.h.b16 %v585
        %v2281 = vunpack.c.l.b16 %v586
        %v2282 = vunpack.c.h.b16 %v586
        %v2283 = vunpack.c.l.b16 %v587
        %v2284 = vunpack.c.h.b16 %v587
        %v2285 = vunpack.c.l.b16 %v588
        %v2286 = vunpack.c.h.b16 %v588
        %v2287 = vunpack.c.l.b16 %v589
        %v2288 = vunpack.c.h.b16 %v589
        %v2289 = vunpack.c.l.b16 %v590
        %v2290 = vunpack.c.h.b16 %v590
        %v2291 = vunpack.c.l.b16 %v591
        %v2292 = vunpack.c.h.b16 %v591
        %v2293 = vunpack.c.l.b16 %v592
        %v2294 = vunpack.c.h.b16 %v592
        %v2295 = vunpack.c.l.b16 %v593
        %v2296 = vunpack.c.l.b16 %v594
        %v2297 = vunpack.c.h.b16 %v594
        %v2298 = vunpack.c.l.b16 %v595
        %v2299 = vunpack.c.h.b16 %v595
        %v2300 = vunpack.c.l.b16 %v596
        %v2301 = vunpack.c.h.b16 %v596
        %v2302 = vunpack.c.l.b16 %v597
        %v2303 = vunpack.c.h.b16 %v597
        %v2304 = vunpack.c.l.b16 %v598
        %v2305 = vunpack.c.h.b16 %v598
        %v2306 = vunpack.c.l.b16 %v599
        %v2307 = vunpack.c.h.b16 %v599
        %v2308 = vunpack.c.l.b16 %v600
        %v2309 = vunpack.c.h.b16 %v600
        %v2310 = vunpack.c.l.b16 %v601
        %v2311 = vunpack.c.h.b16 %v601
        %v2312 = vunpack.c.l.b16 %v602
        %v2313 = vunpack.c.h.b16 %v602
        %v2314 = vunpack.c.l.b16 %v603
        %v2315 = vunpack.c.h.b16 %v603
        %v2316 = vunpack.c.l.b16 %v604
        %v2317 = vunpack.c.h.b16 %v604
        %v2318 = vunpack.c.l.b16 %v605
        %v2319 = vunpack.c.h.b16 %v605
        %v2320 = vunpack.c.l.b16 %v606
        %v2321 = vunpack.c.l.b16 %v607
        %v2322 = vunpack.c.h.b16 %v607
        %v2323 = vunpack.c.l.b16 %v608
        %v2324 = vunpack.c.h.b16 %v608
        %v2325 = vunpack.c.l.b16 %v609
        %v2326 = vunpack.c.h.b16 %v609
        %v2327 = vunpack.c.l.b16 %v610
        %v2328 = vunpack.c.h.b16 %v610
        %v2329 = vunpack.c.l.b16 %v611
        %v2330 = vunpack.c.h.b16 %v611
        %v2331 = vunpack.c.l.b16 %v612
        %v2332 = vunpack.c.h.b16 %v612
        %v2333 = vunpack.c.l.b16 %v613
        %v2334 = vunpack.c.h.b16 %v613
        %v2335 = vunpack.c.l.b16 %v614
        %v2336 = vunpack.c.h.b16 %v614
        %v2337 = vunpack.c.l.b16 %v615
        %v2338 = vunpack.c.h.b16 %v615
        %v2339 = vunpack.c.l.b16 %v616
        %v2340 = vunpack.c.h.b16 %v616
        %v2341 = vunpack.c.l.b16 %v617
        %v2342 = vunpack.c.h.b16 %v617
        %v2343 = vunpack.c.l.b16 %v618
        %v2344 = vunpack.c.h.b16 %v618
        %v2345 = vunpack.c.l.b16 %v619
        %v2346 = vunpack.c.l.b16 %v620
        %v2347 = vunpack.c.h.b16 %v620
        %v2348 = vunpack.c.l.b16 %v621
        %v2349 = vunpack.c.h.b16 %v621
        %v2350 = vunpack.c.l.b16 %v622
        %v2351 = vunpack.c.h.b16 %v622
        %v2352 = vunpack.c.l.b16 %v623
        %v2353 = vunpack.c.h.b16 %v623
        %v2354 = vunpack.c.l.b16 %v624
        %v2355 = vunpack.c.h.b16 %v624
        %v2356 = vunpack.c.l.b16 %v625
        %v2357 = vunpack.c.h.b16 %v625
        %v2358 = vunpack.c.l.b16 %v626
        %v2359 = vunpack.c.h.b16 %v626
        %v2360 = vunpack.c.l.b16 %v627
        %v2361 = vunpack.c.h.b16 %v627
        %v2362 = vunpack.c.l.b16 %v628
        %v2363 = vunpack.c.h.b16 %v628
        %v2364 = vunpack.c.l.b16 %v629
        %v2365 = vunpack.c.h.b16 %v629
        %v2366 = vunpack.c.l.b16 %v630
        %v2367 = vunpack.c.h.b16 %v630
        %v2368 = vunpack.c.l.b16 %v631
        %v2369 = vunpack.c.h.b16 %v631
        %v2370 = vunpack.c.l.b16 %v632
        %v2371 = vunpack.c.l.b16 %v633
        %v2372 = vunpack.c.h.b16 %v633
        %v2373 = vunpack.c.l.b16 %v634
        %v2374 = vunpack.c.h.b16 %v634
        %v2375 = vunpack.c.l.b16 %v635
        %v2376 = vunpack.c.h.b16 %v635
        %v2377 = vunpack.c.l.b16 %v636
        %v2378 = vunpack.c.h.b16 %v636
        %v2379 = vunpack.c.l.b16 %v637
        %v2380 = vunpack.c.h.b16 %v637
        %v2381 = vunpack.c.l.b16 %v638
        %v2382 = vunpack.c.h.b16 %v638
        %v2383 = vunpack.c.l.b16 %v639
        %v2384 = vunpack.c.h.b16 %v639
        %v2385 = vunpack.c.l.b16 %v640
        %v2386 = vunpack.c.h.b16 %v640
        %v2387 = vunpack.c.l.b16 %v641
        %v2388 = vunpack.c.h.b16 %v641
        %v2389 = vunpack.c.l.b16 %v642
        %v2390 = vunpack.c.h.b16 %v642
        %v2391 = vunpack.c.l.b16 %v643
        %v2392 = vunpack.c.h.b16 %v643
        %v2393 = vunpack.c.l.b16 %v644
        %v2394 = vunpack.c.h.b16 %v644
        %v2395 = vunpack.c.l.b16 %v645
        %v2396 = vunpack.c.l.b16 %v646
        %v2397 = vunpack.c.h.b16 %v646
        %v2398 = vunpack.c.l.b16 %v647
        %v2399 = vunpack.c.h.b16 %v647
        %v2400 = vunpack.c.l.b16 %v648
        %v2401 = vunpack.c.h.b16 %v648
        %v2402 = vunpack.c.l.b16 %v649
        %v2403 = vunpack.c.h.b16 %v649
        %v2404 = vunpack.c.l.b16 %v650
        %v2405 = vunpack.c.h.b16 %v650
        %v2406 = vunpack.c.l.b16 %v651
        %v2407 = vunpack.c.h.b16 %v651
        %v2408 = vunpack.c.l.b16 %v652
        %v2409 = vunpack.c.h.b16 %v652
        %v2410 = vunpack.c.l.b16 %v653
        %v2411 = vunpack.c.h.b16 %v653
        %v2412 = vunpack.c.l.b16 %v654
        %v2413 = vunpack.c.h.b16 %v654
        %v2414 = vunpack.c.l.b16 %v655
        %v2415 = vunpack.c.h.b16 %v655
        %v2416 = vunpack.c.l.b16 %v656
        %v2417 = vunpack.c.h.b16 %v656
        %v2418 = vunpack.c.l.b16 %v657
        %v2419 = vunpack.c.h.b16 %v657
        %v2420 = vunpack.c.l.b16 %v658
        %v2421 = vunpack.c.l.b16 %v659
        %v2422 = vunpack.c.h.b16 %v659
        %v2423 = vunpack.c.l.b16 %v660
        %v2424 = vunpack.c.h.b16 %v660
        %v2425 = vunpack.c.l.b16 %v661
        %v2426 = vunpack.c.h.b16 %v661
        %v2427 = vunpack.c.l.b16 %v662
        %v2428 = vunpack.c.h.b16 %v662
        %v2429 = vunpack.c.l.b16 %v663
        %v2430 = vunpack.c.h.b16 %v663
        %v2431 = vunpack.c.l.b16 %v664
        %v2432 = vunpack.c.h.b16 %v664
        %v2433 = vunpack.c.l.b16 %v665
        %v2434 = vunpack.c.h.b16 %v665
        %v2435 = vunpack.c.l.b16 %v666
        %v2436 = vunpack.c.h.b16 %v666
        %v2437 = vunpack.c.l.b16 %v667
        %v2438 = vunpack.c.h.b16 %v667
        %v2439 = vunpack.c.l.b16 %v668
        %v2440 = vunpack.c.h.b16 %v668
        %v2441 = vunpack.c.l.b16 %v669
        %v2442 = vunpack.c.h.b16 %v669
        %v2443 = vunpack.c.l.b16 %v670
        %v2444 = vunpack.c.h.b16 %v670
        %v2445 = vunpack.c.l.b16 %v671
        %v2446 = vunpack.c.l.b16 %v672
        %v2447 = vunpack.c.h.b16 %v672
        %v2448 = vunpack.c.l.b16 %v673
        %v2449 = vunpack.c.h.b16 %v673
        %v2450 = vunpack.c.l.b16 %v674
        %v2451 = vunpack.c.h.b16 %v674
        %v2452 = vunpack.c.l.b16 %v675
        %v2453 = vunpack.c.h.b16 %v675
        %v2454 = vunpack.c.l.b16 %v676
        %v2455 = vunpack.c.h.b16 %v676
        %v2456 = vunpack.c.l.b16 %v677
        %v2457 = vunpack.c.h.b16 %v677
        %v2458 = vunpack.c.l.b16 %v678
        %v2459 = vunpack.c.h.b16 %v678
        %v2460 = vunpack.c.l.b16 %v679
        %v2461 = vunpack.c.h.b16 %v679
        %v2462 = vunpack.c.l.b16 %v680
        %v2463 = vunpack.c.h.b16 %v680
        %v2464 = vunpack.c.l.b16 %v681
        %v2465 = vunpack.c.h.b16 %v681
        %v2466 = vunpack.c.l.b16 %v682
        %v2467 = vunpack.c.h.b16 %v682
        %v2468 = vunpack.c.l.b16 %v683
        %v2469 = vunpack.c.h.b16 %v683
        %v2470 = vunpack.c.l.b16 %v684
        %v2471 = vunpack.c.l.b16 %v685
        %v2472 = vunpack.c.h.b16 %v685
        %v2473 = vunpack.c.l.b16 %v686
        %v2474 = vunpack.c.h.b16 %v686
        %v2475 = vunpack.c.l.b16 %v687
        %v2476 = vunpack.c.h.b16 %v687
        %v2477 = vunpack.c.l.b16 %v688
        %v2478 = vunpack.c.h.b16 %v688
        %v2479 = vunpack.c.l.b16 %v689
        %v2480 = vunpack.c.h.b16 %v689
        %v2481 = vunpack.c.l.b16 %v690
        %v2482 = vunpack.c.h.b16 %v690
        %v2483 = vunpack.c.l.b16 %v691
        %v2484 = vunpack.c.h.b16 %v691
        %v2485 = vunpack.c.l.b16 %v692
        %v2486 = vunpack.c.h.b16 %v692
        %v2487 = vunpack.c.l.b16 %v693
        %v2488 = vunpack.c.h.b16 %v693
        %v2489 = vunpack.c.l.b16 %v694
        %v2490 = vunpack.c.h.b16 %v694
        %v2491 = vunpack.c.l.b16 %v695
        %v2492 = vunpack.c.h.b16 %v695
        %v2493 = vunpack.c.l.b16 %v696
        %v2494 = vunpack.c.h.b16 %v696
        %v2495 = vunpack.c.l.b16 %v697
        %v2496 = vunpack.c.l.b16 %v698
        %v2497 = vunpack.c.h.b16 %v698
        %v2498 = vunpack.c.l.b16 %v699
        %v2499 = vunpack.c.h.b16 %v699
        %v2500 = vunpack.c.l.b16 %v700
        %v2501 = vunpack.c.h.b16 %v700
        %v2502 = vunpack.c.l.b16 %v701
        %v2503 = vunpack.c.h.b16 %v701
        %v2504 = vunpack.c.l.b16 %v702
        %v2505 = vunpack.c.h.b16 %v702
        %v2506 = vunpack.c.l.b16 %v703
        %v2507 = vunpack.c.h.b16 %v703
        %v2508 = vunpack.c.l.b16 %v704
        %v2509 = vunpack.c.h.b16 %v704
        %v2510 = vunpack.c.l.b16 %v705
        %v2511 = vunpack.c.h.b16 %v705
        %v2512 = vunpack.c.l.b16 %v706
        %v2513 = vunpack.c.h.b16 %v706
        %v2514 = vunpack.c.l.b16 %v707
        %v2515 = vunpack.c.h.b16 %v707
        %v2516 = vunpack.c.l.b16 %v708
        %v2517 = vunpack.c.h.b16 %v708
        %v2518 = vunpack.c.l.b16 %v709
        %v2519 = vunpack.c.h.b16 %v709
        %v2520 = vunpack.c.l.b16 %v710
        %v2521 = vunpack.c.l.b16 %v711
        %v2522 = vunpack.c.h.b16 %v711
        %v2523 = vunpack.c.l.b16 %v712
        %v2524 = vunpack.c.h.b16 %v712
        %v2525 = vunpack.c.l.b16 %v713
        %v2526 = vunpack.c.h.b16 %v713
        %v2527 = vunpack.c.l.b16 %v714
        %v2528 = vunpack.c.h.b16 %v714
        %v2529 = vunpack.c.l.b16 %v715
        %v2530 = vunpack.c.h.b16 %v715
        %v2531 = vunpack.c.l.b16 %v716
        %v2532 = vunpack.c.h.b16 %v716
        %v2533 = vunpack.c.l.b16 %v717
        %v2534 = vunpack.c.h.b16 %v717
        %v2535 = vunpack.c.l.b16 %v718
        %v2536 = vunpack.c.h.b16 %v718
        %v2537 = vunpack.c.l.b16 %v719
        %v2538 = vunpack.c.h.b16 %v719
        %v2539 = vunpack.c.l.b16 %v720
        %v2540 = vunpack.c.h.b16 %v720
        %v2541 = vunpack.c.l.b16 %v721
        %v2542 = vunpack.c.h.b16 %v721
        %v2543 = vunpack.c.l.b16 %v722
        %v2544 = vunpack.c.h.b16 %v722
        %v2545 = vunpack.c.l.b16 %v723
        %v2546 = vunpack.c.l.b16 %v724
        %v2547 = vunpack.c.h.b16 %v724
        %v2548 = vunpack.c.l.b16 %v725
        %v2549 = vunpack.c.h.b16 %v725
        %v2550 = vunpack.c.l.b16 %v726
        %v2551 = vunpack.c.h.b16 %v726
        %v2552 = vunpack.c.l.b16 %v727
        %v2553 = vunpack.c.h.b16 %v727
        %v2554 = vunpack.c.l.b16 %v728
        %v2555 = vunpack.c.h.b16 %v728
        %v2556 = vunpack.c.l.b16 %v729
        %v2557 = vunpack.c.h.b16 %v729
        %v2558 = vunpack.c.l.b16 %v730
        %v2559 = vunpack.c.h.b16 %v730
        %v2560 = vunpack.c.l.b16 %v731
        %v2561 = vunpack.c.h.b16 %v731
        %v2562 = vunpack.c.l.b16 %v732
        %v2563 = vunpack.c.h.b16 %v732
        %v2564 = vunpack.c.l.b16 %v733
        %v2565 = vunpack.c.h.b16 %v733
        %v2566 = vunpack.c.l.b16 %v734
        %v2567 = vunpack.c.h.b16 %v734
        %v2568 = vunpack.c.l.b16 %v735
        %v2569 = vunpack.c.h.b16 %v735
        %v2570 = vunpack.c.l.b16 %v736
        %v2571 = vunpack.c.l.b16 %v737
        %v2572 = vunpack.c.h.b16 %v737
        %v2573 = vunpack.c.l.b16 %v738
        %v2574 = vunpack.c.h.b16 %v738
        %v2575 = vunpack.c.l.b16 %v739
        %v2576 = vunpack.c.h.b16 %v739
        %v2577 = vunpack.c.l.b16 %v740
        %v2578 = vunpack.c.h.b16 %v740
        %v2579 = vunpack.c.l.b16 %v741
        %v2580 = vunpack.c.h.b16 %v741
        %v2581 = vunpack.c.l.b16 %v742
        %v2582 = vunpack.c.h.b16 %v742
        %v2583 = vunpack.c.l.b16 %v743
        %v2584 = vunpack.c.h.b16 %v743
        %v2585 = vunpack.c.l.b16 %v744
        %v2586 = vunpack.c.h.b16 %v744
        %v2587 = vunpack.c.l.b16 %v745
        %v2588 = vunpack.c.h.b16 %v745
        %v2589 = vunpack.c.l.b16 %v746
        %v2590 = vunpack.c.h.b16 %v746
        %v2591 = vunpack.c.l.b16 %v747
        %v2592 = vunpack.c.h.b16 %v747
        %v2593 = vunpack.c.l.b16 %v748
        %v2594 = vunpack.c.h.b16 %v748
        %v2595 = vunpack.c.l.b16 %v749
        %v2596 = vunpack.c.l.b16 %v750
        %v2597 = vunpack.c.h.b16 %v750
        %v2598 = vunpack.c.l.b16 %v751
        %v2599 = vunpack.c.h.b16 %v751
        %v2600 = vunpack.c.l.b16 %v752
        %v2601 = vunpack.c.h.b16 %v752
        %v2602 = vunpack.c.l.b16 %v753
        %v2603 = vunpack.c.h.b16 %v753
        %v2604 = vunpack.c.l.b16 %v754
        %v2605 = vunpack.c.h.b16 %v754
        %v2606 = vunpack.c.l.b16 %v755
        %v2607 = vunpack.c.h.b16 %v755
        %v2608 = vunpack.c.l.b16 %v756
        %v2609 = vunpack.c.h.b16 %v756
        %v2610 = vunpack.c.l.b16 %v757
        %v2611 = vunpack.c.h.b16 %v757
        %v2612 = vunpack.c.l.b16 %v758
        %v2613 = vunpack.c.h.b16 %v758
        %v2614 = vunpack.c.l.b16 %v759
        %v2615 = vunpack.c.h.b16 %v759
        %v2616 = vunpack.c.l.b16 %v760
        %v2617 = vunpack.c.h.b16 %v760
        %v2618 = vunpack.c.l.b16 %v761
        %v2619 = vunpack.c.h.b16 %v761
        %v2620 = vunpack.c.l.b16 %v762
        %v2621 = vunpack.c.l.b16 %v763
        %v2622 = vunpack.c.h.b16 %v763
        %v2623 = vunpack.c.l.b16 %v764
        %v2624 = vunpack.c.h.b16 %v764
        %v2625 = vunpack.c.l.b16 %v765
        %v2626 = vunpack.c.h.b16 %v765
        %v2627 = vunpack.c.l.b16 %v766
        %v2628 = vunpack.c.h.b16 %v766
        %v2629 = vunpack.c.l.b16 %v767
        %v2630 = vunpack.c.h.b16 %v767
        %v2631 = vunpack.c.l.b16 %v768
        %v2632 = vunpack.c.h.b16 %v768
        %v2633 = vunpack.c.l.b16 %v769
        %v2634 = vunpack.c.h.b16 %v769
        %v2635 = vunpack.c.l.b16 %v770
        %v2636 = vunpack.c.h.b16 %v770
        %v2637 = vunpack.c.l.b16 %v771
        %v2638 = vunpack.c.h.b16 %v771
        %v2639 = vunpack.c.l.b16 %v772
        %v2640 = vunpack.c.h.b16 %v772
        %v2641 = vunpack.c.l.b16 %v773
        %v2642 = vunpack.c.h.b16 %v773
        %v2643 = vunpack.c.l.b16 %v774
        %v2644 = vunpack.c.h.b16 %v774
        %v2645 = vunpack.c.l.b16 %v775
        %v2646 = vunpack.c.l.b16 %v776
        %v2647 = vunpack.c.h.b16 %v776
        %v2648 = vunpack.c.l.b16 %v777
        %v2649 = vunpack.c.h.b16 %v777
        %v2650 = vunpack.c.l.b16 %v778
        %v2651 = vunpack.c.h.b16 %v778
        %v2652 = vunpack.c.l.b16 %v779
        %v2653 = vunpack.c.h.b16 %v779
        %v2654 = vunpack.c.l.b16 %v780
        %v2655 = vunpack.c.h.b16 %v780
        %v2656 = vunpack.c.l.b16 %v781
        %v2657 = vunpack.c.h.b16 %v781
        %v2658 = vunpack.c.l.b16 %v782
        %v2659 = vunpack.c.h.b16 %v782
        %v2660 = vunpack.c.l.b16 %v783
        %v2661 = vunpack.c.h.b16 %v783
        %v2662 = vunpack.c.l.b16 %v784
        %v2663 = vunpack.c.h.b16 %v784
        %v2664 = vunpack.c.l.b16 %v785
        %v2665 = vunpack.c.h.b16 %v785
        %v2666 = vunpack.c.l.b16 %v786
        %v2667 = vunpack.c.h.b16 %v786
        %v2668 = vunpack.c.l.b16 %v787
        %v2669 = vunpack.c.h.b16 %v787
        %v2670 = vunpack.c.l.b16 %v788
        %v2671 = vunpack.c.l.b16 %v789
        %v2672 = vunpack.c.h.b16 %v789
        %v2673 = vunpack.c.l.b16 %v790
        %v2674 = vunpack.c.h.b16 %v790
        %v2675 = vunpack.c.l.b16 %v791
        %v2676 = vunpack.c.h.b16 %v791
        %v2677 = vunpack.c.l.b16 %v792
        %v2678 = vunpack.c.h.b16 %v792
        %v2679 = vunpack.c.l.b16 %v793
        %v2680 = vunpack.c.h.b16 %v793
        %v2681 = vunpack.c.l.b16 %v794
        %v2682 = vunpack.c.h.b16 %v794
        %v2683 = vunpack.c.l.b16 %v795
        %v2684 = vunpack.c.h.b16 %v795
        %v2685 = vunpack.c.l.b16 %v796
        %v2686 = vunpack.c.h.b16 %v796
        %v2687 = vunpack.c.l.b16 %v797
        %v2688 = vunpack.c.h.b16 %v797
        %v2689 = vunpack.c.l.b16 %v798
        %v2690 = vunpack.c.h.b16 %v798
        %v2691 = vunpack.c.l.b16 %v799
        %v2692 = vunpack.c.h.b16 %v799
        %v2693 = vunpack.c.l.b16 %v800
        %v2694 = vunpack.c.h.b16 %v800
        %v2695 = vunpack.c.l.b16 %v801
        %v2696 = vunpack.c.l.b16 %v802
        %v2697 = vunpack.c.h.b16 %v802
        %v2698 = vunpack.c.l.b16 %v803
        %v2699 = vunpack.c.h.b16 %v803
        %v2700 = vunpack.c.l.b16 %v804
        %v2701 = vunpack.c.h.b16 %v804
        %v2702 = vunpack.c.l.b16 %v805
        %v2703 = vunpack.c.h.b16 %v805
        %v2704 = vunpack.c.l.b16 %v806
        %v2705 = vunpack.c.h.b16 %v806
        %v2706 = vunpack.c.l.b16 %v807
        %v2707 = vunpack.c.h.b16 %v807
        %v2708 = vunpack.c.l.b16 %v808
        %v2709 = vunpack.c.h.b16 %v808
        %v2710 = vunpack.c.l.b16 %v809
        %v2711 = vunpack.c.h.b16 %v809
        %v2712 = vunpack.c.l.b16 %v810
        %v2713 = vunpack.c.h.b16 %v810
        %v2714 = vunpack.c.l.b16 %v811
        %v2715 = vunpack.c.h.b16 %v811
        %v2716 = vunpack.c.l.b16 %v812
        %v2717 = vunpack.c.h.b16 %v812
        %v2718 = vunpack.c.l.b16 %v813
        %v2719 = vunpack.c.h.b16 %v813
        %v2720 = vunpack.c.l.b16 %v814
        %v2721 = vunpack.c.l.b16 %v815
        %v2722 = vunpack.c.h.b16 %v815
        %v2723 = vunpack.c.l.b16 %v816
        %v2724 = vunpack.c.h.b16 %v816
        %v2725 = vunpack.c.l.b16 %v817
        %v2726 = vunpack.c.h.b16 %v817
        %v2727 = vunpack.c.l.b16 %v818
        %v2728 = vunpack.c.h.b16 %v818
        %v2729 = vunpack.c.l.b16 %v819
        %v2730 = vunpack.c.h.b16 %v819
        %v2731 = vunpack.c.l.b16 %v820
        %v2732 = vunpack.c.h.b16 %v820
        %v2733 = vunpack.c.l.b16 %v821
        %v2734 = vunpack.c.h.b16 %v821
        %v2735 = vunpack.c.l.b16 %v822
        %v2736 = vunpack.c.h.b16 %v822
        %v2737 = vunpack.c.l.b16 %v823
        %v2738 = vunpack.c.h.b16 %v823
        %v2739 = vunpack.c.l.b16 %v824
        %v2740 = vunpack.c.h.b16 %v824
        %v2741 = vunpack.c.l.b16 %v825
        %v2742 = vunpack.c.h.b16 %v825
        %v2743 = vunpack.c.l.b16 %v826
        %v2744 = vunpack.c.h.b16 %v826
        %v2745 = vunpack.c.l.b16 %v827
        %v2746 = vunpack.c.l.b16 %v828
        %v2747 = vunpack.c.h.b16 %v828
        %v2748 = vunpack.c.l.b16 %v829
        %v2749 = vunpack.c.h.b16 %v829
        %v2750 = vunpack.c.l.b16 %v830
        %v2751 = vunpack.c.h.b16 %v830
        %v2752 = vunpack.c.l.b16 %v831
        %v2753 = vunpack.c.h.b16 %v831
        %v2754 = vunpack.c.l.b16 %v832
        %v2755 = vunpack.c.h.b16 %v832
        %v2756 = vunpack.c.l.b16 %v833
        %v2757 = vunpack.c.h.b16 %v833
        %v2758 = vunpack.c.l.b16 %v834
        %v2759 = vunpack.c.h.b16 %v834
        %v2760 = vunpack.c.l.b16 %v835
        %v2761 = vunpack.c.h.b16 %v835
        %v2762 = vunpack.c.l.b16 %v836
        %v2763 = vunpack.c.h.b16 %v836
        %v2764 = vunpack.c.l.b16 %v837
        %v2765 = vunpack.c.h.b16 %v837
        %v2766 = vunpack.c.l.b16 %v838
        %v2767 = vunpack.c.h.b16 %v838
        %v2768 = vunpack.c.l.b16 %v839
        %v2769 = vunpack.c.h.b16 %v839
        %v2770 = vunpack.c.l.b16 %v840
        %v2771 = vunpack.c.l.b16 %v841
        %v2772 = vunpack.c.h.b16 %v841
        %v2773 = vunpack.c.l.b16 %v842
        %v2774 = vunpack.c.h.b16 %v842
        %v2775 = vunpack.c.l.b16 %v843
        %v2776 = vunpack.c.h.b16 %v843
        %v2777 = vunpack.c.l.b16 %v844
        %v2778 = vunpack.c.h.b16 %v844
        %v2779 = vunpack.c.l.b16 %v845
        %v2780 = vunpack.c.h.b16 %v845
        %v2781 = vunpack.c.l.b16 %v846
        %v2782 = vunpack.c.h.b16 %v846
        %v2783 = vunpack.c.l.b16 %v847
        %v2784 = vunpack.c.h.b16 %v847
        %v2785 = vunpack.c.l.b16 %v848
        %v2786 = vunpack.c.h.b16 %v848
        %v2787 = vunpack.c.l.b16 %v849
        %v2788 = vunpack.c.h.b16 %v849
        %v2789 = vunpack.c.l.b16 %v850
        %v2790 = vunpack.c.h.b16 %v850
        %v2791 = vunpack.c.l.b16 %v851
        %v2792 = vunpack.c.h.b16 %v851
        %v2793 = vunpack.c.l.b16 %v852
        %v2794 = vunpack.c.h.b16 %v852
        %v2795 = vunpack.c.l.b16 %v853
        %v2796 = vunpack.c.l.b16 %v854
        %v2797 = vunpack.c.h.b16 %v854
        %v2798 = vunpack.c.l.b16 %v855
        %v2799 = vunpack.c.h.b16 %v855
        %v2800 = vunpack.c.l.b16 %v856
        %v2801 = vunpack.c.h.b16 %v856
        %v2802 = vunpack.c.l.b16 %v857
        %v2803 = vunpack.c.h.b16 %v857
        %v2804 = vunpack.c.l.b16 %v858
        %v2805 = vunpack.c.h.b16 %v858
        %v2806 = vunpack.c.l.b16 %v859
        %v2807 = vunpack.c.h.b16 %v859
        %v2808 = vunpack.c.l.b16 %v860
        %v2809 = vunpack.c.h.b16 %v860
        %v2810 = vunpack.c.l.b16 %v861
        %v2811 = vunpack.c.h.b16 %v861
        %v2812 = vunpack.c.l.b16 %v862
        %v2813 = vunpack.c.h.b16 %v862
        %v2814 = vunpack.c.l.b16 %v863
        %v2815 = vunpack.c.h.b16 %v863
        %v2816 = vunpack.c.l.b16 %v864
        %v2817 = vunpack.c.h.b16 %v864
        %v2818 = vunpack.c.l.b16 %v865
        %v2819 = vunpack.c.h.b16 %v865
        %v2820 = vunpack.c.l.b16 %v866
        %v2821 = vunpack.c.l.b16 %v867
        %v2822 = vunpack.c.h.b16 %v867
        %v2823 = vunpack.c.l.b16 %v868
        %v2824 = vunpack.c.h.b16 %v868
        %v2825 = vunpack.c.l.b16 %v869
        %v2826 = vunpack.c.h.b16 %v869
        %v2827 = vunpack.c.l.b16 %v870
        %v2828 = vunpack.c.h.b16 %v870
        %v2829 = vunpack.c.l.b16 %v871
        %v2830 = vunpack.c.h.b16 %v871
        %v2831 = vunpack.c.l.b16 %v872
        %v2832 = vunpack.c.h.b16 %v872
        %v2833 = vunpack.c.l.b16 %v873
        %v2834 = vunpack.c.h.b16 %v873
        %v2835 = vunpack.c.l.b16 %v874
        %v2836 = vunpack.c.h.b16 %v874
        %v2837 = vunpack.c.l.b16 %v875
        %v2838 = vunpack.c.h.b16 %v875
        %v2839 = vunpack.c.l.b16 %v876
        %v2840 = vunpack.c.h.b16 %v876
        %v2841 = vunpack.c.l.b16 %v877
        %v2842 = vunpack.c.h.b16 %v877
        %v2843 = vunpack.c.l.b16 %v878
        %v2844 = vunpack.c.h.b16 %v878
        %v2845 = vunpack.c.l.b16 %v879
        %v2846 = vunpack.c.l.b16 %v880
        %v2847 = vunpack.c.h.b16 %v880
        %v2848 = vunpack.c.l.b16 %v881
        %v2849 = vunpack.c.h.b16 %v881
        %v2850 = vunpack.c.l.b16 %v882
        %v2851 = vunpack.c.h.b16 %v882
        %v2852 = vunpack.c.l.b16 %v883
        %v2853 = vunpack.c.h.b16 %v883
        %v2854 = vunpack.c.l.b16 %v884
        %v2855 = vunpack.c.h.b16 %v884
        %v2856 = vunpack.c.l.b16 %v885
        %v2857 = vunpack.c.h.b16 %v885
        %v2858 = vunpack.c.l.b16 %v886
        %v2859 = vunpack.c.h.b16 %v886
        %v2860 = vunpack.c.l.b16 %v887
        %v2861 = vunpack.c.h.b16 %v887
        %v2862 = vunpack.c.l.b16 %v888
        %v2863 = vunpack.c.h.b16 %v888
        %v2864 = vunpack.c.l.b16 %v889
        %v2865 = vunpack.c.h.b16 %v889
        %v2866 = vunpack.c.l.b16 %v890
        %v2867 = vunpack.c.h.b16 %v890
        %v2868 = vunpack.c.l.b16 %v891
        %v2869 = vunpack.c.h.b16 %v891
        %v2870 = vunpack.c.l.b16 %v892
        %v2871 = vunpack.c.l.b16 %v893
        %v2872 = vunpack.c.h.b16 %v893
        %v2873 = vunpack.c.l.b16 %v894
        %v2874 = vunpack.c.h.b16 %v894
        %v2875 = vunpack.c.l.b16 %v895
        %v2876 = vunpack.c.h.b16 %v895
        %v2877 = vunpack.c.l.b16 %v896
        %v2878 = vunpack.c.h.b16 %v896
        %v2879 = vunpack.c.l.b16 %v897
        %v2880 = vunpack.c.h.b16 %v897
        %v2881 = vunpack.c.l.b16 %v898
        %v2882 = vunpack.c.h.b16 %v898
        %v2883 = vunpack.c.l.b16 %v899
        %v2884 = vunpack.c.h.b16 %v899
        %v2885 = vunpack.c.l.b16 %v900
        %v2886 = vunpack.c.h.b16 %v900
        %v2887 = vunpack.c.l.b16 %v901
        %v2888 = vunpack.c.h.b16 %v901
        %v2889 = vunpack.c.l.b16 %v902
        %v2890 = vunpack.c.h.b16 %v902
        %v2891 = vunpack.c.l.b16 %v903
        %v2892 = vunpack.c.h.b16 %v903
        %v2893 = vunpack.c.l.b16 %v904
        %v2894 = vunpack.c.h.b16 %v904
        %v2895 = vunpack.c.l.b16 %v905
        %v2896 = vpack.c.b16 %v1671, %v1646
        %v2897 = vpack.c.b16 %v1672, %v1647
        %v2898 = vpack.c.b16 %v1673, %v1648
        %v2899 = vpack.c.b16 %v1674, %v1649
        %v2900 = vpack.c.b16 %v1675, %v1650
        %v2901 = vpack.c.b16 %v1676, %v1651
        %v2902 = vpack.c.b16 %v1677, %v1652
        %v2903 = vpack.c.b16 %v1678, %v1653
        %v2904 = vpack.c.b16 %v1679, %v1654
        %v2905 = vpack.c.b16 %v1680, %v1655
        %v2906 = vpack.c.b16 %v1681, %v1656
        %v2907 = vpack.c.b16 %v1682, %v1657
        %v2908 = vpack.c.b16 %v1683, %v1658
        %v2909 = vpack.c.b16 %v1684, %v1659
        %v2910 = vpack.c.b16 %v1685, %v1660
        %v2911 = vpack.c.b16 %v1686, %v1661
        %v2912 = vpack.c.b16 %v1687, %v1662
        %v2913 = vpack.c.b16 %v1688, %v1663
        %v2914 = vpack.c.b16 %v1689, %v1664
        %v2915 = vpack.c.b16 %v1690, %v1665
        %v2916 = vpack.c.b16 %v1691, %v1666
        %v2917 = vpack.c.b16 %v1692, %v1667
        %v2918 = vpack.c.b16 %v1693, %v1668
        %v2919 = vpack.c.b16 %v1694, %v1669
        %v2920 = vpack.c.b16 %v1695, %v1670
        %v2921 = vpack.c.b16 %v1721, %v1696
        %v2922 = vpack.c.b16 %v1722, %v1697
        %v2923 = vpack.c.b16 %v1723, %v1698
        %v2924 = vpack.c.b16 %v1724, %v1699
        %v2925 = vpack.c.b16 %v1725, %v1700
        %v2926 = vpack.c.b16 %v1726, %v1701
        %v2927 = vpack.c.b16 %v1727, %v1702
        %v2928 = vpack.c.b16 %v1728, %v1703
        %v2929 = vpack.c.b16 %v1729, %v1704
        %v2930 = vpack.c.b16 %v1730, %v1705
        %v2931 = vpack.c.b16 %v1731, %v1706
        %v2932 = vpack.c.b16 %v1732, %v1707
        %v2933 = vpack.c.b16 %v1733, %v1708
        %v2934 = vpack.c.b16 %v1734, %v1709
        %v2935 = vpack.c.b16 %v1735, %v1710
        %v2936 = vpack.c.b16 %v1736, %v1711
        %v2937 = vpack.c.b16 %v1737, %v1712
        %v2938 = vpack.c.b16 %v1738, %v1713
        %v2939 = vpack.c.b16 %v1739, %v1714
        %v2940 = vpack.c.b16 %v1740, %v1715
        %v2941 = vpack.c.b16 %v1741, %v1716
        %v2942 = vpack.c.b16 %v1742, %v1717
        %v2943 = vpack.c.b16 %v1743, %v1718
        %v2944 = vpack.c.b16 %v1744, %v1719
        %v2945 = vpack.c.b16 %v1745, %v1720
        %v2946 = vpack.c.b16 %v1771, %v1746
        %v2947 = vpack.c.b16 %v1772, %v1747
        %v2948 = vpack.c.b16 %v1773, %v1748
        %v2949 = vpack.c.b16 %v1774, %v1749
        %v2950 = vpack.c.b16 %v1775, %v1750
        %v2951 = vpack.c.b16 %v1776, %v1751
        %v2952 = vpack.c.b16 %v1777, %v1752
        %v2953 = vpack.c.b16 %v1778, %v1753
        %v2954 = vpack.c.b16 %v1779, %v1754
        %v2955 = vpack.c.b16 %v1780, %v1755
        %v2956 = vpack.c.b16 %v1781, %v1756
        %v2957 = vpack.c.b16 %v1782, %v1757
        %v2958 = vpack.c.b16 %v1783, %v1758
        %v2959 = vpack.c.b16 %v1784, %v1759
        %v2960 = vpack.c.b16 %v1785, %v1760
        %v2961 = vpack.c.b16 %v1786, %v1761
        %v2962 = vpack.c.b16 %v1787, %v1762
        %v2963 = vpack.c.b16 %v1788, %v1763
        %v2964 = vpack.c.b16 %v1789, %v1764
        %v2965 = vpack.c.b16 %v1790, %v1765
        %v2966 = vpack.c.b16 %v1791, %v1766
        %v2967 = vpack.c.b16 %v1792, %v1767
        %v2968 = vpack.c.b16 %v1793, %v1768
        %v2969 = vpack.c.b16 %v1794, %v1769
        %v2970 = vpack.c.b16 %v1795, %v1770
        %v2971 = vpack.c.b16 %v1821, %v1796
        %v2972 = vpack.c.b16 %v1822, %v1797
        %v2973 = vpack.c.b16 %v1823, %v1798
        %v2974 = vpack.c.b16 %v1824, %v1799
        %v2975 = vpack.c.b16 %v1825, %v1800
        %v2976 = vpack.c.b16 %v1826, %v1801
        %v2977 = vpack.c.b16 %v1827, %v1802
        %v2978 = vpack.c.b16 %v1828, %v1803
        %v2979 = vpack.c.b16 %v1829, %v1804
        %v2980 = vpack.c.b16 %v1830, %v1805
        %v2981 = vpack.c.b16 %v1831, %v1806
        %v2982 = vpack.c.b16 %v1832, %v1807
        %v2983 = vpack.c.b16 %v1833, %v1808
        %v2984 = vpack.c.b16 %v1834, %v1809
        %v2985 = vpack.c.b16 %v1835, %v1810
        %v2986 = vpack.c.b16 %v1836, %v1811
        %v2987 = vpack.c.b16 %v1837, %v1812
        %v2988 = vpack.c.b16 %v1838, %v1813
        %v2989 = vpack.c.b16 %v1839, %v1814
        %v2990 = vpack.c.b16 %v1840, %v1815
        %v2991 = vpack.c.b16 %v1841, %v1816
        %v2992 = vpack.c.b16 %v1842, %v1817
        %v2993 = vpack.c.b16 %v1843, %v1818
        %v2994 = vpack.c.b16 %v1844, %v1819
        %v2995 = vpack.c.b16 %v1845, %v1820
        %v2996 = vpack.c.b16 %v1871, %v1846
        %v2997 = vpack.c.b16 %v1872, %v1847
        %v2998 = vpack.c.b16 %v1873, %v1848
        %v2999 = vpack.c.b16 %v1874, %v1849
        %v3000 = vpack.c.b16 %v1875, %v1850
        %v3001 = vpack.c.b16 %v1876, %v1851
        %v3002 = vpack.c.b16 %v1877, %v1852
        %v3003 = vpack.c.b16 %v1878, %v1853
        %v3004 = vpack.c.b16 %v1879, %v1854
        %v3005 = vpack.c.b16 %v1880, %v1855
        %v3006 = vpack.c.b16 %v1881, %v1856
        %v3007 = vpack.c.b16 %v1882, %v1857
        %v3008 = vpack.c.b16 %v1883, %v1858
        %v3009 = vpack.c.b16 %v1884, %v1859
        %v3010 = vpack.c.b16 %v1885, %v1860
        %v3011 = vpack.c.b16 %v1886, %v1861
        %v3012 = vpack.c.b16 %v1887, %v1862
        %v3013 = vpack.c.b16 %v1888, %v1863
        %v3014 = vpack.c.b16 %v1889, %v1864
        %v3015 = vpack.c.b16 %v1890, %v1865
        %v3016 = vpack.c.b16 %v1891, %v1866
        %v3017 = vpack.c.b16 %v1892, %v1867
        %v3018 = vpack.c.b16 %v1893, %v1868
        %v3019 = vpack.c.b16 %v1894, %v1869
        %v3020 = vpack.c.b16 %v1895, %v1870
        %v3021 = vpack.c.b16 %v1921, %v1896
        %v3022 = vpack.c.b16 %v1922, %v1897
        %v3023 = vpack.c.b16 %v1923, %v1898
        %v3024 = vpack.c.b16 %v1924, %v1899
        %v3025 = vpack.c.b16 %v1925, %v1900
        %v3026 = vpack.c.b16 %v1926, %v1901
        %v3027 = vpack.c.b16 %v1927, %v1902
        %v3028 = vpack.c.b16 %v1928, %v1903
        %v3029 = vpack.c.b16 %v1929, %v1904
        %v3030 = vpack.c.b16 %v1930, %v1905
        %v3031 = vpack.c.b16 %v1931, %v1906
        %v3032 = vpack.c.b16 %v1932, %v1907
        %v3033 = vpack.c.b16 %v1933, %v1908
        %v3034 = vpack.c.b16 %v1934, %v1909
        %v3035 = vpack.c.b16 %v1935, %v1910
        %v3036 = vpack.c.b16 %v1936, %v1911
        %v3037 = vpack.c.b16 %v1937, %v1912
        %v3038 = vpack.c.b16 %v1938, %v1913
        %v3039 = vpack.c.b16 %v1939, %v1914
        %v3040 = vpack.c.b16 %v1940, %v1915
        %v3041 = vpack.c.b16 %v1941, %v1916
        %v3042 = vpack.c.b16 %v1942, %v1917
        %v3043 = vpack.c.b16 %v1943, %v1918
        %v3044 = vpack.c.b16 %v1944, %v1919
        %v3045 = vpack.c.b16 %v1945, %v1920
        %v3046 = vpack.c.b16 %v1971, %v1946
        %v3047 = vpack.c.b16 %v1972, %v1947
        %v3048 = vpack.c.b16 %v1973, %v1948
        %v3049 = vpack.c.b16 %v1974, %v1949
        %v3050 = vpack.c.b16 %v1975, %v1950
        %v3051 = vpack.c.b16 %v1976, %v1951
        %v3052 = vpack.c.b16 %v1977, %v1952
        %v3053 = vpack.c.b16 %v1978, %v1953
        %v3054 = vpack.c.b16 %v1979, %v1954
        %v3055 = vpack.c.b16 %v1980, %v1955
        %v3056 = vpack.c.b16 %v1981, %v1956
        %v3057 = vpack.c.b16 %v1982, %v1957
        %v3058 = vpack.c.b16 %v1983, %v1958
        %v3059 = vpack.c.b16 %v1984, %v1959
        %v3060 = vpack.c.b16 %v1985, %v1960
        %v3061 = vpack.c.b16 %v1986, %v1961
        %v3062 = vpack.c.b16 %v1987, %v1962
        %v3063 = vpack.c.b16 %v1988, %v1963
        %v3064 = vpack.c.b16 %v1989, %v1964
        %v3065 = vpack.c.b16 %v1990, %v1965
        %v3066 = vpack.c.b16 %v1991, %v1966
        %v3067 = vpack.c.b16 %v1992, %v1967
        %v3068 = vpack.c.b16 %v1993, %v1968
        %v3069 = vpack.c.b16 %v1994, %v1969
        %v3070 = vpack.c.b16 %v1995, %v1970
        %v3071 = vpack.c.b16 %v2021, %v1996
        %v3072 = vpack.c.b16 %v2022, %v1997
        %v3073 = vpack.c.b16 %v2023, %v1998
        %v3074 = vpack.c.b16 %v2024, %v1999
        %v3075 = vpack.c.b16 %v2025, %v2000
        %v3076 = vpack.c.b16 %v2026, %v2001
        %v3077 = vpack.c.b16 %v2027, %v2002
        %v3078 = vpack.c.b16 %v2028, %v2003
        %v3079 = vpack.c.b16 %v2029, %v2004
        %v3080 = vpack.c.b16 %v2030, %v2005
        %v3081 = vpack.c.b16 %v2031, %v2006
        %v3082 = vpack.c.b16 %v2032, %v2007
        %v3083 = vpack.c.b16 %v2033, %v2008
        %v3084 = vpack.c.b16 %v2034, %v2009
        %v3085 = vpack.c.b16 %v2035, %v2010
        %v3086 = vpack.c.b16 %v2036, %v2011
        %v3087 = vpack.c.b16 %v2037, %v2012
        %v3088 = vpack.c.b16 %v2038, %v2013
        %v3089 = vpack.c.b16 %v2039, %v2014
        %v3090 = vpack.c.b16 %v2040, %v2015
        %v3091 = vpack.c.b16 %v2041, %v2016
        %v3092 = vpack.c.b16 %v2042, %v2017
        %v3093 = vpack.c.b16 %v2043, %v2018
        %v3094 = vpack.c.b16 %v2044, %v2019
        %v3095 = vpack.c.b16 %v2045, %v2020
        %v3096 = vpack.c.b16 %v2071, %v2046
        %v3097 = vpack.c.b16 %v2072, %v2047
        %v3098 = vpack.c.b16 %v2073, %v2048
        %v3099 = vpack.c.b16 %v2074, %v2049
        %v3100 = vpack.c.b16 %v2075, %v2050
        %v3101 = vpack.c.b16 %v2076, %v2051
        %v3102 = vpack.c.b16 %v2077, %v2052
        %v3103 = vpack.c.b16 %v2078, %v2053
        %v3104 = vpack.c.b16 %v2079, %v2054
        %v3105 = vpack.c.b16 %v2080, %v2055
        %v3106 = vpack.c.b16 %v2081, %v2056
        %v3107 = vpack.c.b16 %v2082, %v2057
        %v3108 = vpack.c.b16 %v2083, %v2058
        %v3109 = vpack.c.b16 %v2084, %v2059
        %v3110 = vpack.c.b16 %v2085, %v2060
        %v3111 = vpack.c.b16 %v2086, %v2061
        %v3112 = vpack.c.b16 %v2087, %v2062
        %v3113 = vpack.c.b16 %v2088, %v2063
        %v3114 = vpack.c.b16 %v2089, %v2064
        %v3115 = vpack.c.b16 %v2090, %v2065
        %v3116 = vpack.c.b16 %v2091, %v2066
        %v3117 = vpack.c.b16 %v2092, %v2067
        %v3118 = vpack.c.b16 %v2093, %v2068
        %v3119 = vpack.c.b16 %v2094, %v2069
        %v3120 = vpack.c.b16 %v2095, %v2070
        %v3121 = vpack.c.b16 %v2121, %v2096
        %v3122 = vpack.c.b16 %v2122, %v2097
        %v3123 = vpack.c.b16 %v2123, %v2098
        %v3124 = vpack.c.b16 %v2124, %v2099
        %v3125 = vpack.c.b16 %v2125, %v2100
        %v3126 = vpack.c.b16 %v2126, %v2101
        %v3127 = vpack.c.b16 %v2127, %v2102
        %v3128 = vpack.c.b16 %v2128, %v2103
        %v3129 = vpack.c.b16 %v2129, %v2104
        %v3130 = vpack.c.b16 %v2130, %v2105
        %v3131 = vpack.c.b16 %v2131, %v2106
        %v3132 = vpack.c.b16 %v2132, %v2107
        %v3133 = vpack.c.b16 %v2133, %v2108
        %v3134 = vpack.c.b16 %v2134, %v2109
        %v3135 = vpack.c.b16 %v2135, %v2110
        %v3136 = vpack.c.b16 %v2136, %v2111
        %v3137 = vpack.c.b16 %v2137, %v2112
        %v3138 = vpack.c.b16 %v2138, %v2113
        %v3139 = vpack.c.b16 %v2139, %v2114
        %v3140 = vpack.c.b16 %v2140, %v2115
        %v3141 = vpack.c.b16 %v2141, %v2116
        %v3142 = vpack.c.b16 %v2142, %v2117
        %v3143 = vpack.c.b16 %v2143, %v2118
        %v3144 = vpack.c.b16 %v2144, %v2119
        %v3145 = vpack.c.b16 %v2145, %v2120
        %v3146 = vpack.c.b16 %v2171, %v2146
        %v3147 = vpack.c.b16 %v2172, %v2147
        %v3148 = vpack.c.b16 %v2173, %v2148
        %v3149 = vpack.c.b16 %v2174, %v2149
        %v3150 = vpack.c.b16 %v2175, %v2150
        %v3151 = vpack.c.b16 %v2176, %v2151
        %v3152 = vpack.c.b16 %v2177, %v2152
        %v3153 = vpack.c.b16 %v2178, %v2153
        %v3154 = vpack.c.b16 %v2179, %v2154
        %v3155 = vpack.c.b16 %v2180, %v2155
        %v3156 = vpack.c.b16 %v2181, %v2156
        %v3157 = vpack.c.b16 %v2182, %v2157
        %v3158 = vpack.c.b16 %v2183, %v2158
        %v3159 = vpack.c.b16 %v2184, %v2159
        %v3160 = vpack.c.b16 %v2185, %v2160
        %v3161 = vpack.c.b16 %v2186, %v2161
        %v3162 = vpack.c.b16 %v2187, %v2162
        %v3163 = vpack.c.b16 %v2188, %v2163
        %v3164 = vpack.c.b16 %v2189, %v2164
        %v3165 = vpack.c.b16 %v2190, %v2165
        %v3166 = vpack.c.b16 %v2191, %v2166
        %v3167 = vpack.c.b16 %v2192, %v2167
        %v3168 = vpack.c.b16 %v2193, %v2168
        %v3169 = vpack.c.b16 %v2194, %v2169
        %v3170 = vpack.c.b16 %v2195, %v2170
        %v3171 = vpack.c.b16 %v2221, %v2196
        %v3172 = vpack.c.b16 %v2222, %v2197
        %v3173 = vpack.c.b16 %v2223, %v2198
        %v3174 = vpack.c.b16 %v2224, %v2199
        %v3175 = vpack.c.b16 %v2225, %v2200
        %v3176 = vpack.c.b16 %v2226, %v2201
        %v3177 = vpack.c.b16 %v2227, %v2202
        %v3178 = vpack.c.b16 %v2228, %v2203
        %v3179 = vpack.c.b16 %v2229, %v2204
        %v3180 = vpack.c.b16 %v2230, %v2205
        %v3181 = vpack.c.b16 %v2231, %v2206
        %v3182 = vpack.c.b16 %v2232, %v2207
        %v3183 = vpack.c.b16 %v2233, %v2208
        %v3184 = vpack.c.b16 %v2234, %v2209
        %v3185 = vpack.c.b16 %v2235, %v2210
        %v3186 = vpack.c.b16 %v2236, %v2211
        %v3187 = vpack.c.b16 %v2237, %v2212
        %v3188 = vpack.c.b16 %v2238, %v2213
        %v3189 = vpack.c.b16 %v2239, %v2214
        %v3190 = vpack.c.b16 %v2240, %v2215
        %v3191 = vpack.c.b16 %v2241, %v2216
        %v3192 = vpack.c.b16 %v2242, %v2217
        %v3193 = vpack.c.b16 %v2243, %v2218
        %v3194 = vpack.c.b16 %v2244, %v2219
        %v3195 = vpack.c.b16 %v2245, %v2220
        %v3196 = vpack.c.b16 %v2271, %v2246
        %v3197 = vpack.c.b16 %v2272, %v2247
        %v3198 = vpack.c.b16 %v2273, %v2248
        %v3199 = vpack.c.b16 %v2274, %v2249
        %v3200 = vpack.c.b16 %v2275, %v2250
        %v3201 = vpack.c.b16 %v2276, %v2251
        %v3202 = vpack.c.b16 %v2277, %v2252
        %v3203 = vpack.c.b16 %v2278, %v2253
        %v3204 = vpack.c.b16 %v2279, %v2254
        %v3205 = vpack.c.b16 %v2280, %v2255
        %v3206 = vpack.c.b16 %v2281, %v2256
        %v3207 = vpack.c.b16 %v2282, %v2257
        %v3208 = vpack.c.b16 %v2283, %v2258
        %v3209 = vpack.c.b16 %v2284, %v2259
        %v3210 = vpack.c.b16 %v2285, %v2260
        %v3211 = vpack.c.b16 %v2286, %v2261
        %v3212 = vpack.c.b16 %v2287, %v2262
        %v3213 = vpack.c.b16 %v2288, %v2263
        %v3214 = vpack.c.b16 %v2289, %v2264
        %v3215 = vpack.c.b16 %v2290, %v2265
        %v3216 = vpack.c.b16 %v2291, %v2266
        %v3217 = vpack.c.b16 %v2292, %v2267
        %v3218 = vpack.c.b16 %v2293, %v2268
        %v3219 = vpack.c.b16 %v2294, %v2269
        %v3220 = vpack.c.b16 %v2295, %v2270
        %v3221 = vpack.c.b16 %v2321, %v2296
        %v3222 = vpack.c.b16 %v2322, %v2297
        %v3223 = vpack.c.b16 %v2323, %v2298
        %v3224 = vpack.c.b16 %v2324, %v2299
        %v3225 = vpack.c.b16 %v2325, %v2300
        %v3226 = vpack.c.b16 %v2326, %v2301
        %v3227 = vpack.c.b16 %v2327, %v2302
        %v3228 = vpack.c.b16 %v2328, %v2303
        %v3229 = vpack.c.b16 %v2329, %v2304
        %v3230 = vpack.c.b16 %v2330, %v2305
        %v3231 = vpack.c.b16 %v2331, %v2306
        %v3232 = vpack.c.b16 %v2332, %v2307
        %v3233 = vpack.c.b16 %v2333, %v2308
        %v3234 = vpack.c.b16 %v2334, %v2309
        %v3235 = vpack.c.b16 %v2335, %v2310
        %v3236 = vpack.c.b16 %v2336, %v2311
        %v3237 = vpack.c.b16 %v2337, %v2312
        %v3238 = vpack.c.b16 %v2338, %v2313
        %v3239 = vpack.c.b16 %v2339, %v2314
        %v3240 = vpack.c.b16 %v2340, %v2315
        %v3241 = vpack.c.b16 %v2341, %v2316
        %v3242 = vpack.c.b16 %v2342, %v2317
        %v3243 = vpack.c.b16 %v2343, %v2318
        %v3244 = vpack.c.b16 %v2344, %v2319
        %v3245 = vpack.c.b16 %v2345, %v2320
        %v3246 = vpack.c.b16 %v2371, %v2346
        %v3247 = vpack.c.b16 %v2372, %v2347
        %v3248 = vpack.c.b16 %v2373, %v2348
        %v3249 = vpack.c.b16 %v2374, %v2349
        %v3250 = vpack.c.b16 %v2375, %v2350
        %v3251 = vpack.c.b16 %v2376, %v2351
        %v3252 = vpack.c.b16 %v2377, %v2352
        %v3253 = vpack.c.b16 %v2378, %v2353
        %v3254 = vpack.c.b16 %v2379, %v2354
        %v3255 = vpack.c.b16 %v2380, %v2355
        %v3256 = vpack.c.b16 %v2381, %v2356
        %v3257 = vpack.c.b16 %v2382, %v2357
        %v3258 = vpack.c.b16 %v2383, %v2358
        %v3259 = vpack.c.b16 %v2384, %v2359
        %v3260 = vpack.c.b16 %v2385, %v2360
        %v3261 = vpack.c.b16 %v2386, %v2361
        %v3262 = vpack.c.b16 %v2387, %v2362
        %v3263 = vpack.c.b16 %v2388, %v2363
        %v3264 = vpack.c.b16 %v2389, %v2364
        %v3265 = vpack.c.b16 %v2390, %v2365
        %v3266 = vpack.c.b16 %v2391, %v2366
        %v3267 = vpack.c.b16 %v2392, %v2367
        %v3268 = vpack.c.b16 %v2393, %v2368
        %v3269 = vpack.c.b16 %v2394, %v2369
        %v3270 = vpack.c.b16 %v2395, %v2370
        %v3271 = vpack.c.b16 %v2421, %v2396
        %v3272 = vpack.c.b16 %v2422, %v2397
        %v3273 = vpack.c.b16 %v2423, %v2398
        %v3274 = vpack.c.b16 %v2424, %v2399
        %v3275 = vpack.c.b16 %v2425, %v2400
        %v3276 = vpack.c.b16 %v2426, %v2401
        %v3277 = vpack.c.b16 %v2427, %v2402
        %v3278 = vpack.c.b16 %v2428, %v2403
        %v3279 = vpack.c.b16 %v2429, %v2404
        %v3280 = vpack.c.b16 %v2430, %v2405
        %v3281 = vpack.c.b16 %v2431, %v2406
        %v3282 = vpack.c.b16 %v2432, %v2407
        %v3283 = vpack.c.b16 %v2433, %v2408
        %v3284 = vpack.c.b16 %v2434, %v2409
        %v3285 = vpack.c.b16 %v2435, %v2410
        %v3286 = vpack.c.b16 %v2436, %v2411
        %v3287 = vpack.c.b16 %v2437, %v2412
        %v3288 = vpack.c.b16 %v2438, %v2413
        %v3289 = vpack.c.b16 %v2439, %v2414
        %v3290 = vpack.c.b16 %v2440, %v2415
        %v3291 = vpack.c.b16 %v2441, %v2416
        %v3292 = vpack.c.b16 %v2442, %v2417
        %v3293 = vpack.c.b16 %v2443, %v2418
        %v3294 = vpack.c.b16 %v2444, %v2419
        %v3295 = vpack.c.b16 %v2445, %v2420
        %v3296 = vpack.c.b16 %v2471, %v2446
        %v3297 = vpack.c.b16 %v2472, %v2447
        %v3298 = vpack.c.b16 %v2473, %v2448
        %v3299 = vpack.c.b16 %v2474, %v2449
        %v3300 = vpack.c.b16 %v2475, %v2450
        %v3301 = vpack.c.b16 %v2476, %v2451
        %v3302 = vpack.c.b16 %v2477, %v2452
        %v3303 = vpack.c.b16 %v2478, %v2453
        %v3304 = vpack.c.b16 %v2479, %v2454
        %v3305 = vpack.c.b16 %v2480, %v2455
        %v3306 = vpack.c.b16 %v2481, %v2456
        %v3307 = vpack.c.b16 %v2482, %v2457
        %v3308 = vpack.c.b16 %v2483, %v2458
        %v3309 = vpack.c.b16 %v2484, %v2459
        %v3310 = vpack.c.b16 %v2485, %v2460
        %v3311 = vpack.c.b16 %v2486, %v2461
        %v3312 = vpack.c.b16 %v2487, %v2462
        %v3313 = vpack.c.b16 %v2488, %v2463
        %v3314 = vpack.c.b16 %v2489, %v2464
        %v3315 = vpack.c.b16 %v2490, %v2465
        %v3316 = vpack.c.b16 %v2491, %v2466
        %v3317 = vpack.c.b16 %v2492, %v2467
        %v3318 = vpack.c.b16 %v2493, %v2468
        %v3319 = vpack.c.b16 %v2494, %v2469
        %v3320 = vpack.c.b16 %v2495, %v2470
        %v3321 = vpack.c.b16 %v2521, %v2496
        %v3322 = vpack.c.b16 %v2522, %v2497
        %v3323 = vpack.c.b16 %v2523, %v2498
        %v3324 = vpack.c.b16 %v2524, %v2499
        %v3325 = vpack.c.b16 %v2525, %v2500
        %v3326 = vpack.c.b16 %v2526, %v2501
        %v3327 = vpack.c.b16 %v2527, %v2502
        %v3328 = vpack.c.b16 %v2528, %v2503
        %v3329 = vpack.c.b16 %v2529, %v2504
        %v3330 = vpack.c.b16 %v2530, %v2505
        %v3331 = vpack.c.b16 %v2531, %v2506
        %v3332 = vpack.c.b16 %v2532, %v2507
        %v3333 = vpack.c.b16 %v2533, %v2508
        %v3334 = vpack.c.b16 %v2534, %v2509
        %v3335 = vpack.c.b16 %v2535, %v2510
        %v3336 = vpack.c.b16 %v2536, %v2511
        %v3337 = vpack.c.b16 %v2537, %v2512
        %v3338 = vpack.c.b16 %v2538, %v2513
        %v3339 = vpack.c.b16 %v2539, %v2514
        %v3340 = vpack.c.b16 %v2540, %v2515
        %v3341 = vpack.c.b16 %v2541, %v2516
        %v3342 = vpack.c.b16 %v2542, %v2517
        %v3343 = vpack.c.b16 %v2543, %v2518
        %v3344 = vpack.c.b16 %v2544, %v2519
        %v3345 = vpack.c.b16 %v2545, %v2520
        %v3346 = vpack.c.b16 %v2571, %v2546
        %v3347 = vpack.c.b16 %v2572, %v2547
        %v3348 = vpack.c.b16 %v2573, %v2548
        %v3349 = vpack.c.b16 %v2574, %v2549
        %v3350 = vpack.c.b16 %v2575, %v2550
        %v3351 = vpack.c.b16 %v2576, %v2551
        %v3352 = vpack.c.b16 %v2577, %v2552
        %v3353 = vpack.c.b16 %v2578, %v2553
        %v3354 = vpack.c.b16 %v2579, %v2554
        %v3355 = vpack.c.b16 %v2580, %v2555
        %v3356 = vpack.c.b16 %v2581, %v2556
        %v3357 = vpack.c.b16 %v2582, %v2557
        %v3358 = vpack.c.b16 %v2583, %v2558
        %v3359 = vpack.c.b16 %v2584, %v2559
        %v3360 = vpack.c.b16 %v2585, %v2560
        %v3361 = vpack.c.b16 %v2586, %v2561
        %v3362 = vpack.c.b16 %v2587, %v2562
        %v3363 = vpack.c.b16 %v2588, %v2563
        %v3364 = vpack.c.b16 %v2589, %v2564
        %v3365 = vpack.c.b16 %v2590, %v2565
        %v3366 = vpack.c.b16 %v2591, %v2566
        %v3367 = vpack.c.b16 %v2592, %v2567
        %v3368 = vpack.c.b16 %v2593, %v2568
        %v3369 = vpack.c.b16 %v2594, %v2569
        %v3370 = vpack.c.b16 %v2595, %v2570
        %v3371 = vpack.c.b16 %v2621, %v2596
        %v3372 = vpack.c.b16 %v2622, %v2597
        %v3373 = vpack.c.b16 %v2623, %v2598
        %v3374 = vpack.c.b16 %v2624, %v2599
        %v3375 = vpack.c.b16 %v2625, %v2600
        %v3376 = vpack.c.b16 %v2626, %v2601
        %v3377 = vpack.c.b16 %v2627, %v2602
        %v3378 = vpack.c.b16 %v2628, %v2603
        %v3379 = vpack.c.b16 %v2629, %v2604
        %v3380 = vpack.c.b16 %v2630, %v2605
        %v3381 = vpack.c.b16 %v2631, %v2606
        %v3382 = vpack.c.b16 %v2632, %v2607
        %v3383 = vpack.c.b16 %v2633, %v2608
        %v3384 = vpack.c.b16 %v2634, %v2609
        %v3385 = vpack.c.b16 %v2635, %v2610
        %v3386 = vpack.c.b16 %v2636, %v2611
        %v3387 = vpack.c.b16 %v2637, %v2612
        %v3388 = vpack.c.b16 %v2638, %v2613
        %v3389 = vpack.c.b16 %v2639, %v2614
        %v3390 = vpack.c.b16 %v2640, %v2615
        %v3391 = vpack.c.b16 %v2641, %v2616
        %v3392 = vpack.c.b16 %v2642, %v2617
        %v3393 = vpack.c.b16 %v2643, %v2618
        %v3394 = vpack.c.b16 %v2644, %v2619
        %v3395 = vpack.c.b16 %v2645, %v2620
        %v3396 = vpack.c.b16 %v2671, %v2646
        %v3397 = vpack.c.b16 %v2672, %v2647
        %v3398 = vpack.c.b16 %v2673, %v2648
        %v3399 = vpack.c.b16 %v2674, %v2649
        %v3400 = vpack.c.b16 %v2675, %v2650
        %v3401 = vpack.c.b16 %v2676, %v2651
        %v3402 = vpack.c.b16 %v2677, %v2652
        %v3403 = vpack.c.b16 %v2678, %v2653
        %v3404 = vpack.c.b16 %v2679, %v2654
        %v3405 = vpack.c.b16 %v2680, %v2655
        %v3406 = vpack.c.b16 %v2681, %v2656
        %v3407 = vpack.c.b16 %v2682, %v2657
        %v3408 = vpack.c.b16 %v2683, %v2658
        %v3409 = vpack.c.b16 %v2684, %v2659
        %v3410 = vpack.c.b16 %v2685, %v2660
        %v3411 = vpack.c.b16 %v2686, %v2661
        %v3412 = vpack.c.b16 %v2687, %v2662
        %v3413 = vpack.c.b16 %v2688, %v2663
        %v3414 = vpack.c.b16 %v2689, %v2664
        %v3415 = vpack.c.b16 %v2690, %v2665
        %v3416 = vpack.c.b16 %v2691, %v2666
        %v3417 = vpack.c.b16 %v2692, %v2667
        %v3418 = vpack.c.b16 %v2693, %v2668
        %v3419 = vpack.c.b16 %v2694, %v2669
        %v3420 = vpack.c.b16 %v2695, %v2670
        %v3421 = vpack.c.b16 %v2721, %v2696
        %v3422 = vpack.c.b16 %v2722, %v2697
        %v3423 = vpack.c.b16 %v2723, %v2698
        %v3424 = vpack.c.b16 %v2724, %v2699
        %v3425 = vpack.c.b16 %v2725, %v2700
        %v3426 = vpack.c.b16 %v2726, %v2701
        %v3427 = vpack.c.b16 %v2727, %v2702
        %v3428 = vpack.c.b16 %v2728, %v2703
        %v3429 = vpack.c.b16 %v2729, %v2704
        %v3430 = vpack.c.b16 %v2730, %v2705
        %v3431 = vpack.c.b16 %v2731, %v2706
        %v3432 = vpack.c.b16 %v2732, %v2707
        %v3433 = vpack.c.b16 %v2733, %v2708
        %v3434 = vpack.c.b16 %v2734, %v2709
        %v3435 = vpack.c.b16 %v2735, %v2710
        %v3436 = vpack.c.b16 %v2736, %v2711
        %v3437 = vpack.c.b16 %v2737, %v2712
        %v3438 = vpack.c.b16 %v2738, %v2713
        %v3439 = vpack.c.b16 %v2739, %v2714
        %v3440 = vpack.c.b16 %v2740, %v2715
        %v3441 = vpack.c.b16 %v2741, %v2716
        %v3442 = vpack.c.b16 %v2742, %v2717
        %v3443 = vpack.c.b16 %v2743, %v2718
        %v3444 = vpack.c.b16 %v2744, %v2719
        %v3445 = vpack.c.b16 %v2745, %v2720
        %v3446 = vpack.c.b16 %v2771, %v2746
        %v3447 = vpack.c.b16 %v2772, %v2747
        %v3448 = vpack.c.b16 %v2773, %v2748
        %v3449 = vpack.c.b16 %v2774, %v2749
        %v3450 = vpack.c.b16 %v2775, %v2750
        %v3451 = vpack.c.b16 %v2776, %v2751
        %v3452 = vpack.c.b16 %v2777, %v2752
        %v3453 = vpack.c.b16 %v2778, %v2753
        %v3454 = vpack.c.b16 %v2779, %v2754
        %v3455 = vpack.c.b16 %v2780, %v2755
        %v3456 = vpack.c.b16 %v2781, %v2756
        %v3457 = vpack.c.b16 %v2782, %v2757
        %v3458 = vpack.c.b16 %v2783, %v2758
        %v3459 = vpack.c.b16 %v2784, %v2759
        %v3460 = vpack.c.b16 %v2785, %v2760
        %v3461 = vpack.c.b16 %v2786, %v2761
        %v3462 = vpack.c.b16 %v2787, %v2762
        %v3463 = vpack.c.b16 %v2788, %v2763
        %v3464 = vpack.c.b16 %v2789, %v2764
        %v3465 = vpack.c.b16 %v2790, %v2765
        %v3466 = vpack.c.b16 %v2791, %v2766
        %v3467 = vpack.c.b16 %v2792, %v2767
        %v3468 = vpack.c.b16 %v2793, %v2768
        %v3469 = vpack.c.b16 %v2794, %v2769
        %v3470 = vpack.c.b16 %v2795, %v2770
        %v3471 = vpack.c.b16 %v2821, %v2796
        %v3472 = vpack.c.b16 %v2822, %v2797
        %v3473 = vpack.c.b16 %v2823, %v2798
        %v3474 = vpack.c.b16 %v2824, %v2799
        %v3475 = vpack.c.b16 %v2825, %v2800
        %v3476 = vpack.c.b16 %v2826, %v2801
        %v3477 = vpack.c.b16 %v2827, %v2802
        %v3478 = vpack.c.b16 %v2828, %v2803
        %v3479 = vpack.c.b16 %v2829, %v2804
        %v3480 = vpack.c.b16 %v2830, %v2805
        %v3481 = vpack.c.b16 %v2831, %v2806
        %v3482 = vpack.c.b16 %v2832, %v2807
        %v3483 = vpack.c.b16 %v2833, %v2808
        %v3484 = vpack.c.b16 %v2834, %v2809
        %v3485 = vpack.c.b16 %v2835, %v2810
        %v3486 = vpack.c.b16 %v2836, %v2811
        %v3487 = vpack.c.b16 %v2837, %v2812
        %v3488 = vpack.c.b16 %v2838, %v2813
        %v3489 = vpack.c.b16 %v2839, %v2814
        %v3490 = vpack.c.b16 %v2840, %v2815
        %v3491 = vpack.c.b16 %v2841, %v2816
        %v3492 = vpack.c.b16 %v2842, %v2817
        %v3493 = vpack.c.b16 %v2843, %v2818
        %v3494 = vpack.c.b16 %v2844, %v2819
        %v3495 = vpack.c.b16 %v2845, %v2820
        %v3496 = vpack.c.b16 %v2871, %v2846
        %v3497 = vpack.c.b16 %v2872, %v2847
        %v3498 = vpack.c.b16 %v2873, %v2848
        %v3499 = vpack.c.b16 %v2874, %v2849
        %v3500 = vpack.c.b16 %v2875, %v2850
        %v3501 = vpack.c.b16 %v2876, %v2851
        %v3502 = vpack.c.b16 %v2877, %v2852
        %v3503 = vpack.c.b16 %v2878, %v2853
        %v3504 = vpack.c.b16 %v2879, %v2854
        %v3505 = vpack.c.b16 %v2880, %v2855
        %v3506 = vpack.c.b16 %v2881, %v2856
        %v3507 = vpack.c.b16 %v2882, %v2857
        %v3508 = vpack.c.b16 %v2883, %v2858
        %v3509 = vpack.c.b16 %v2884, %v2859
        %v3510 = vpack.c.b16 %v2885, %v2860
        %v3511 = vpack.c.b16 %v2886, %v2861
        %v3512 = vpack.c.b16 %v2887, %v2862
        %v3513 = vpack.c.b16 %v2888, %v2863
        %v3514 = vpack.c.b16 %v2889, %v2864
        %v3515 = vpack.c.b16 %v2890, %v2865
        %v3516 = vpack.c.b16 %v2891, %v2866
        %v3517 = vpack.c.b16 %v2892, %v2867
        %v3518 = vpack.c.b16 %v2893, %v2868
        %v3519 = vpack.c.b16 %v2894, %v2869
        %v3520 = vpack.c.b16 %v2895, %v2870
        %4146 = vmatpush.bf16.xpose.msra.mxu0 %v3071
        %4147 = vmatpush.bf16.xpose.msra.mxu0 %v3046
        %4148 = vmatpush.bf16.xpose.msra.mxu0 %v3021
        %4149 = vmatpush.bf16.xpose.msra.mxu0 %v2996
        %4150 = vmatpush.bf16.xpose.msra.mxu0 %v2971
        %4151 = vmatpush.bf16.xpose.msra.mxu0 %v2946
        %4152 = vmatpush.bf16.xpose.msra.mxu0 %v2921
        %4153 = vmatpush.bf16.xpose.msra.mxu0 %v2896
        %4154 = vmatmul.bf16.gmra.mxu0 %v971
        %v4155 = vpop.f32.mrf.mxu0
        %v4156 = vadd.f32 0.0, %v4155
        %v4157 = vpop.f32.mrf.mxu0
        %4158 = vdwg.mxu0
        %4159 = vmatpush.bf16.xpose.msra.mxu0 %v3072
        %4160 = vmatpush.bf16.xpose.msra.mxu0 %v3047
        %4161 = vmatpush.bf16.xpose.msra.mxu0 %v3022
        %4162 = vmatpush.bf16.xpose.msra.mxu0 %v2997
        %4163 = vmatpush.bf16.xpose.msra.mxu0 %v2972
        %4164 = vmatpush.bf16.xpose.msra.mxu0 %v2947
        %4165 = vmatpush.bf16.xpose.msra.mxu0 %v2922
        %4166 = vmatpush.bf16.xpose.msra.mxu0 %v2897
        %4167 = vmatmul.bf16.gmra.mxu0 %v972
        %v4168 = vpop.f32.mrf.mxu0
        %v4169 = vadd.f32 %v4156, %v4168
        %v4170 = vpop.f32.mrf.mxu0
        %4171 = vdwg.mxu0
        %4172 = vmatpush.bf16.xpose.msra.mxu0 %v3073
        %4173 = vmatpush.bf16.xpose.msra.mxu0 %v3048
        %4174 = vmatpush.bf16.xpose.msra.mxu0 %v3023
        %4175 = vmatpush.bf16.xpose.msra.mxu0 %v2998
        %4176 = vmatpush.bf16.xpose.msra.mxu0 %v2973
        %4177 = vmatpush.bf16.xpose.msra.mxu0 %v2948
        %4178 = vmatpush.bf16.xpose.msra.mxu0 %v2923
        %4179 = vmatpush.bf16.xpose.msra.mxu0 %v2898
        %4180 = vmatmul.bf16.gmra.mxu0 %v973
        %v4181 = vpop.f32.mrf.mxu0
        %v4182 = vadd.f32 %v4169, %v4181
        %v4183 = vpop.f32.mrf.mxu0
        %4184 = vdwg.mxu0
        %4185 = vmatpush.bf16.xpose.msra.mxu0 %v3074
        %4186 = vmatpush.bf16.xpose.msra.mxu0 %v3049
        %4187 = vmatpush.bf16.xpose.msra.mxu0 %v3024
        %4188 = vmatpush.bf16.xpose.msra.mxu0 %v2999
        %4189 = vmatpush.bf16.xpose.msra.mxu0 %v2974
        %4190 = vmatpush.bf16.xpose.msra.mxu0 %v2949
        %4191 = vmatpush.bf16.xpose.msra.mxu0 %v2924
        %4192 = vmatpush.bf16.xpose.msra.mxu0 %v2899
        %4193 = vmatmul.bf16.gmra.mxu0 %v974
        %v4194 = vpop.f32.mrf.mxu0
        %v4195 = vadd.f32 %v4182, %v4194
        %v4196 = vpop.f32.mrf.mxu0
        %4197 = vdwg.mxu0
        %4198 = vmatpush.bf16.xpose.msra.mxu0 %v3075
        %4199 = vmatpush.bf16.xpose.msra.mxu0 %v3050
        %4200 = vmatpush.bf16.xpose.msra.mxu0 %v3025
        %4201 = vmatpush.bf16.xpose.msra.mxu0 %v3000
        %4202 = vmatpush.bf16.xpose.msra.mxu0 %v2975
        %4203 = vmatpush.bf16.xpose.msra.mxu0 %v2950
        %4204 = vmatpush.bf16.xpose.msra.mxu0 %v2925
        %4205 = vmatpush.bf16.xpose.msra.mxu0 %v2900
        %4206 = vmatmul.bf16.gmra.mxu0 %v975
        %v4207 = vpop.f32.mrf.mxu0
        %v4208 = vadd.f32 %v4195, %v4207
        %v4209 = vpop.f32.mrf.mxu0
        %4210 = vdwg.mxu0
        %4211 = vmatpush.bf16.xpose.msra.mxu0 %v3076
        %4212 = vmatpush.bf16.xpose.msra.mxu0 %v3051
        %4213 = vmatpush.bf16.xpose.msra.mxu0 %v3026
        %4214 = vmatpush.bf16.xpose.msra.mxu0 %v3001
        %4215 = vmatpush.bf16.xpose.msra.mxu0 %v2976
        %4216 = vmatpush.bf16.xpose.msra.mxu0 %v2951
        %4217 = vmatpush.bf16.xpose.msra.mxu0 %v2926
        %4218 = vmatpush.bf16.xpose.msra.mxu0 %v2901
        %4219 = vmatmul.bf16.gmra.mxu0 %v976
        %v4220 = vpop.f32.mrf.mxu0
        %v4221 = vadd.f32 %v4208, %v4220
        %v4222 = vpop.f32.mrf.mxu0
        %4223 = vdwg.mxu0
        %4224 = vmatpush.bf16.xpose.msra.mxu0 %v3077
        %4225 = vmatpush.bf16.xpose.msra.mxu0 %v3052
        %4226 = vmatpush.bf16.xpose.msra.mxu0 %v3027
        %4227 = vmatpush.bf16.xpose.msra.mxu0 %v3002
        %4228 = vmatpush.bf16.xpose.msra.mxu0 %v2977
        %4229 = vmatpush.bf16.xpose.msra.mxu0 %v2952
        %4230 = vmatpush.bf16.xpose.msra.mxu0 %v2927
        %4231 = vmatpush.bf16.xpose.msra.mxu0 %v2902
        %4232 = vmatmul.bf16.gmra.mxu0 %v977
        %v4233 = vpop.f32.mrf.mxu0
        %v4234 = vadd.f32 %v4221, %v4233
        %v4235 = vpop.f32.mrf.mxu0
        %4236 = vdwg.mxu0
        %4237 = vmatpush.bf16.xpose.msra.mxu0 %v3078
        %4238 = vmatpush.bf16.xpose.msra.mxu0 %v3053
        %4239 = vmatpush.bf16.xpose.msra.mxu0 %v3028
        %4240 = vmatpush.bf16.xpose.msra.mxu0 %v3003
        %4241 = vmatpush.bf16.xpose.msra.mxu0 %v2978
        %4242 = vmatpush.bf16.xpose.msra.mxu0 %v2953
        %4243 = vmatpush.bf16.xpose.msra.mxu0 %v2928
        %4244 = vmatpush.bf16.xpose.msra.mxu0 %v2903
        %4245 = vmatmul.bf16.gmra.mxu0 %v978
        %v4246 = vpop.f32.mrf.mxu0
        %v4247 = vadd.f32 %v4234, %v4246
        %v4248 = vpop.f32.mrf.mxu0
        %4249 = vdwg.mxu0
        %4250 = vmatpush.bf16.xpose.msra.mxu0 %v3079
        %4251 = vmatpush.bf16.xpose.msra.mxu0 %v3054
        %4252 = vmatpush.bf16.xpose.msra.mxu0 %v3029
        %4253 = vmatpush.bf16.xpose.msra.mxu0 %v3004
        %4254 = vmatpush.bf16.xpose.msra.mxu0 %v2979
        %4255 = vmatpush.bf16.xpose.msra.mxu0 %v2954
        %4256 = vmatpush.bf16.xpose.msra.mxu0 %v2929
        %4257 = vmatpush.bf16.xpose.msra.mxu0 %v2904
        %4258 = vmatmul.bf16.gmra.mxu0 %v979
        %v4259 = vpop.f32.mrf.mxu0
        %v4260 = vadd.f32 %v4247, %v4259
        %v4261 = vpop.f32.mrf.mxu0
        %4262 = vdwg.mxu0
        %4263 = vmatpush.bf16.xpose.msra.mxu0 %v3080
        %4264 = vmatpush.bf16.xpose.msra.mxu0 %v3055
        %4265 = vmatpush.bf16.xpose.msra.mxu0 %v3030
        %4266 = vmatpush.bf16.xpose.msra.mxu0 %v3005
        %4267 = vmatpush.bf16.xpose.msra.mxu0 %v2980
        %4268 = vmatpush.bf16.xpose.msra.mxu0 %v2955
        %4269 = vmatpush.bf16.xpose.msra.mxu0 %v2930
        %4270 = vmatpush.bf16.xpose.msra.mxu0 %v2905
        %4271 = vmatmul.bf16.gmra.mxu0 %v980
        %v4272 = vpop.f32.mrf.mxu0
        %v4273 = vadd.f32 %v4260, %v4272
        %v4274 = vpop.f32.mrf.mxu0
        %4275 = vdwg.mxu0
        %4276 = vmatpush.bf16.xpose.msra.mxu0 %v3081
        %4277 = vmatpush.bf16.xpose.msra.mxu0 %v3056
        %4278 = vmatpush.bf16.xpose.msra.mxu0 %v3031
        %4279 = vmatpush.bf16.xpose.msra.mxu0 %v3006
        %4280 = vmatpush.bf16.xpose.msra.mxu0 %v2981
        %4281 = vmatpush.bf16.xpose.msra.mxu0 %v2956
        %4282 = vmatpush.bf16.xpose.msra.mxu0 %v2931
        %4283 = vmatpush.bf16.xpose.msra.mxu0 %v2906
        %4284 = vmatmul.bf16.gmra.mxu0 %v981
        %v4285 = vpop.f32.mrf.mxu0
        %v4286 = vadd.f32 %v4273, %v4285
        %v4287 = vpop.f32.mrf.mxu0
        %4288 = vdwg.mxu0
        %4289 = vmatpush.bf16.xpose.msra.mxu0 %v3082
        %4290 = vmatpush.bf16.xpose.msra.mxu0 %v3057
        %4291 = vmatpush.bf16.xpose.msra.mxu0 %v3032
        %4292 = vmatpush.bf16.xpose.msra.mxu0 %v3007
        %4293 = vmatpush.bf16.xpose.msra.mxu0 %v2982
        %4294 = vmatpush.bf16.xpose.msra.mxu0 %v2957
        %4295 = vmatpush.bf16.xpose.msra.mxu0 %v2932
        %4296 = vmatpush.bf16.xpose.msra.mxu0 %v2907
        %4297 = vmatmul.bf16.gmra.mxu0 %v982
        %v4298 = vpop.f32.mrf.mxu0
        %v4299 = vadd.f32 %v4286, %v4298
        %v4300 = vpop.f32.mrf.mxu0
        %4301 = vdwg.mxu0
        %4302 = vmatpush.bf16.xpose.msra.mxu0 %v3083
        %4303 = vmatpush.bf16.xpose.msra.mxu0 %v3058
        %4304 = vmatpush.bf16.xpose.msra.mxu0 %v3033
        %4305 = vmatpush.bf16.xpose.msra.mxu0 %v3008
        %4306 = vmatpush.bf16.xpose.msra.mxu0 %v2983
        %4307 = vmatpush.bf16.xpose.msra.mxu0 %v2958
        %4308 = vmatpush.bf16.xpose.msra.mxu0 %v2933
        %4309 = vmatpush.bf16.xpose.msra.mxu0 %v2908
        %4310 = vmatmul.bf16.gmra.mxu0 %v983
        %v4311 = vpop.f32.mrf.mxu0
        %v4312 = vadd.f32 %v4299, %v4311
        %v4313 = vpop.f32.mrf.mxu0
        %4314 = vdwg.mxu0
        %4315 = vmatpush.bf16.xpose.msra.mxu0 %v3084
        %4316 = vmatpush.bf16.xpose.msra.mxu0 %v3059
        %4317 = vmatpush.bf16.xpose.msra.mxu0 %v3034
        %4318 = vmatpush.bf16.xpose.msra.mxu0 %v3009
        %4319 = vmatpush.bf16.xpose.msra.mxu0 %v2984
        %4320 = vmatpush.bf16.xpose.msra.mxu0 %v2959
        %4321 = vmatpush.bf16.xpose.msra.mxu0 %v2934
        %4322 = vmatpush.bf16.xpose.msra.mxu0 %v2909
        %4323 = vmatmul.bf16.gmra.mxu0 %v984
        %v4324 = vpop.f32.mrf.mxu0
        %v4325 = vadd.f32 %v4312, %v4324
        %v4326 = vpop.f32.mrf.mxu0
        %4327 = vdwg.mxu0
        %4328 = vmatpush.bf16.xpose.msra.mxu0 %v3085
        %4329 = vmatpush.bf16.xpose.msra.mxu0 %v3060
        %4330 = vmatpush.bf16.xpose.msra.mxu0 %v3035
        %4331 = vmatpush.bf16.xpose.msra.mxu0 %v3010
        %4332 = vmatpush.bf16.xpose.msra.mxu0 %v2985
        %4333 = vmatpush.bf16.xpose.msra.mxu0 %v2960
        %4334 = vmatpush.bf16.xpose.msra.mxu0 %v2935
        %4335 = vmatpush.bf16.xpose.msra.mxu0 %v2910
        %4336 = vmatmul.bf16.gmra.mxu0 %v985
        %v4337 = vpop.f32.mrf.mxu0
        %v4338 = vadd.f32 %v4325, %v4337
        %v4339 = vpop.f32.mrf.mxu0
        %4340 = vdwg.mxu0
        %4341 = vmatpush.bf16.xpose.msra.mxu0 %v3086
        %4342 = vmatpush.bf16.xpose.msra.mxu0 %v3061
        %4343 = vmatpush.bf16.xpose.msra.mxu0 %v3036
        %4344 = vmatpush.bf16.xpose.msra.mxu0 %v3011
        %4345 = vmatpush.bf16.xpose.msra.mxu0 %v2986
        %4346 = vmatpush.bf16.xpose.msra.mxu0 %v2961
        %4347 = vmatpush.bf16.xpose.msra.mxu0 %v2936
        %4348 = vmatpush.bf16.xpose.msra.mxu0 %v2911
        %4349 = vmatmul.bf16.gmra.mxu0 %v986
        %v4350 = vpop.f32.mrf.mxu0
        %v4351 = vadd.f32 %v4338, %v4350
        %v4352 = vpop.f32.mrf.mxu0
        %4353 = vdwg.mxu0
        %4354 = vmatpush.bf16.xpose.msra.mxu0 %v3087
        %4355 = vmatpush.bf16.xpose.msra.mxu0 %v3062
        %4356 = vmatpush.bf16.xpose.msra.mxu0 %v3037
        %4357 = vmatpush.bf16.xpose.msra.mxu0 %v3012
        %4358 = vmatpush.bf16.xpose.msra.mxu0 %v2987
        %4359 = vmatpush.bf16.xpose.msra.mxu0 %v2962
        %4360 = vmatpush.bf16.xpose.msra.mxu0 %v2937
        %4361 = vmatpush.bf16.xpose.msra.mxu0 %v2912
        %4362 = vmatmul.bf16.gmra.mxu0 %v987
        %v4363 = vpop.f32.mrf.mxu0
        %v4364 = vadd.f32 %v4351, %v4363
        %v4365 = vpop.f32.mrf.mxu0
        %4366 = vdwg.mxu0
        %4367 = vmatpush.bf16.xpose.msra.mxu0 %v3088
        %4368 = vmatpush.bf16.xpose.msra.mxu0 %v3063
        %4369 = vmatpush.bf16.xpose.msra.mxu0 %v3038
        %4370 = vmatpush.bf16.xpose.msra.mxu0 %v3013
        %4371 = vmatpush.bf16.xpose.msra.mxu0 %v2988
        %4372 = vmatpush.bf16.xpose.msra.mxu0 %v2963
        %4373 = vmatpush.bf16.xpose.msra.mxu0 %v2938
        %4374 = vmatpush.bf16.xpose.msra.mxu0 %v2913
        %4375 = vmatmul.bf16.gmra.mxu0 %v988
        %v4376 = vpop.f32.mrf.mxu0
        %v4377 = vadd.f32 %v4364, %v4376
        %v4378 = vpop.f32.mrf.mxu0
        %4379 = vdwg.mxu0
        %4380 = vmatpush.bf16.xpose.msra.mxu0 %v3089
        %4381 = vmatpush.bf16.xpose.msra.mxu0 %v3064
        %4382 = vmatpush.bf16.xpose.msra.mxu0 %v3039
        %4383 = vmatpush.bf16.xpose.msra.mxu0 %v3014
        %4384 = vmatpush.bf16.xpose.msra.mxu0 %v2989
        %4385 = vmatpush.bf16.xpose.msra.mxu0 %v2964
        %4386 = vmatpush.bf16.xpose.msra.mxu0 %v2939
        %4387 = vmatpush.bf16.xpose.msra.mxu0 %v2914
        %4388 = vmatmul.bf16.gmra.mxu0 %v989
        %v4389 = vpop.f32.mrf.mxu0
        %v4390 = vadd.f32 %v4377, %v4389
        %v4391 = vpop.f32.mrf.mxu0
        %4392 = vdwg.mxu0
        %4393 = vmatpush.bf16.xpose.msra.mxu0 %v3090
        %4394 = vmatpush.bf16.xpose.msra.mxu0 %v3065
        %4395 = vmatpush.bf16.xpose.msra.mxu0 %v3040
        %4396 = vmatpush.bf16.xpose.msra.mxu0 %v3015
        %4397 = vmatpush.bf16.xpose.msra.mxu0 %v2990
        %4398 = vmatpush.bf16.xpose.msra.mxu0 %v2965
        %4399 = vmatpush.bf16.xpose.msra.mxu0 %v2940
        %4400 = vmatpush.bf16.xpose.msra.mxu0 %v2915
        %4401 = vmatmul.bf16.gmra.mxu0 %v990
        %v4402 = vpop.f32.mrf.mxu0
        %v4403 = vadd.f32 %v4390, %v4402
        %v4404 = vpop.f32.mrf.mxu0
        %4405 = vdwg.mxu0
        %4406 = vmatpush.bf16.xpose.msra.mxu0 %v3091
        %4407 = vmatpush.bf16.xpose.msra.mxu0 %v3066
        %4408 = vmatpush.bf16.xpose.msra.mxu0 %v3041
        %4409 = vmatpush.bf16.xpose.msra.mxu0 %v3016
        %4410 = vmatpush.bf16.xpose.msra.mxu0 %v2991
        %4411 = vmatpush.bf16.xpose.msra.mxu0 %v2966
        %4412 = vmatpush.bf16.xpose.msra.mxu0 %v2941
        %4413 = vmatpush.bf16.xpose.msra.mxu0 %v2916
        %4414 = vmatmul.bf16.gmra.mxu0 %v991
        %v4415 = vpop.f32.mrf.mxu0
        %v4416 = vadd.f32 %v4403, %v4415
        %v4417 = vpop.f32.mrf.mxu0
        %4418 = vdwg.mxu0
        %4419 = vmatpush.bf16.xpose.msra.mxu0 %v3092
        %4420 = vmatpush.bf16.xpose.msra.mxu0 %v3067
        %4421 = vmatpush.bf16.xpose.msra.mxu0 %v3042
        %4422 = vmatpush.bf16.xpose.msra.mxu0 %v3017
        %4423 = vmatpush.bf16.xpose.msra.mxu0 %v2992
        %4424 = vmatpush.bf16.xpose.msra.mxu0 %v2967
        %4425 = vmatpush.bf16.xpose.msra.mxu0 %v2942
        %4426 = vmatpush.bf16.xpose.msra.mxu0 %v2917
        %4427 = vmatmul.bf16.gmra.mxu0 %v992
        %v4428 = vpop.f32.mrf.mxu0
        %v4429 = vadd.f32 %v4416, %v4428
        %v4430 = vpop.f32.mrf.mxu0
        %4431 = vdwg.mxu0
        %4432 = vmatpush.bf16.xpose.msra.mxu0 %v3093
        %4433 = vmatpush.bf16.xpose.msra.mxu0 %v3068
        %4434 = vmatpush.bf16.xpose.msra.mxu0 %v3043
        %4435 = vmatpush.bf16.xpose.msra.mxu0 %v3018
        %4436 = vmatpush.bf16.xpose.msra.mxu0 %v2993
        %4437 = vmatpush.bf16.xpose.msra.mxu0 %v2968
        %4438 = vmatpush.bf16.xpose.msra.mxu0 %v2943
        %4439 = vmatpush.bf16.xpose.msra.mxu0 %v2918
        %4440 = vmatmul.bf16.gmra.mxu0 %v993
        %v4441 = vpop.f32.mrf.mxu0
        %v4442 = vadd.f32 %v4429, %v4441
        %v4443 = vpop.f32.mrf.mxu0
        %4444 = vdwg.mxu0
        %4445 = vmatpush.bf16.xpose.msra.mxu0 %v3094
        %4446 = vmatpush.bf16.xpose.msra.mxu0 %v3069
        %4447 = vmatpush.bf16.xpose.msra.mxu0 %v3044
        %4448 = vmatpush.bf16.xpose.msra.mxu0 %v3019
        %4449 = vmatpush.bf16.xpose.msra.mxu0 %v2994
        %4450 = vmatpush.bf16.xpose.msra.mxu0 %v2969
        %4451 = vmatpush.bf16.xpose.msra.mxu0 %v2944
        %4452 = vmatpush.bf16.xpose.msra.mxu0 %v2919
        %4453 = vmatmul.bf16.gmra.mxu0 %v994
        %v4454 = vpop.f32.mrf.mxu0
        %v4455 = vadd.f32 %v4442, %v4454
        %v4456 = vpop.f32.mrf.mxu0
        %4457 = vdwg.mxu0
        %4458 = vmatpush.bf16.xpose.msra.mxu0 %v3095
        %4459 = vmatpush.bf16.xpose.msra.mxu0 %v3070
        %4460 = vmatpush.bf16.xpose.msra.mxu0 %v3045
        %4461 = vmatpush.bf16.xpose.msra.mxu0 %v3020
        %4462 = vmatpush.bf16.xpose.msra.mxu0 %v2995
        %4463 = vmatpush.bf16.xpose.msra.mxu0 %v2970
        %4464 = vmatpush.bf16.xpose.msra.mxu0 %v2945
        %4465 = vmatpush.bf16.xpose.msra.mxu0 %v2920
        %4466 = vmatmul.bf16.gmra.mxu0 %v995
        %v4467 = vpop.f32.mrf.mxu0
        %v4468 = vadd.f32 %v4455, %v4467
        %v4469 = vpop.f32.mrf.mxu0
        %4470 = vdwg.mxu0
        %4471 = vmatpush.bf16.xpose.msra.mxu0 %v3271
        %4472 = vmatpush.bf16.xpose.msra.mxu0 %v3246
        %4473 = vmatpush.bf16.xpose.msra.mxu0 %v3221
        %4474 = vmatpush.bf16.xpose.msra.mxu0 %v3196
        %4475 = vmatpush.bf16.xpose.msra.mxu0 %v3171
        %4476 = vmatpush.bf16.xpose.msra.mxu0 %v3146
        %4477 = vmatpush.bf16.xpose.msra.mxu0 %v3121
        %4478 = vmatpush.bf16.xpose.msra.mxu0 %v3096
        %4479 = vmatmul.bf16.gmra.mxu0 %v971
        %v4480 = vpop.f32.mrf.mxu0
        %v4481 = vadd.f32 0.0, %v4480
        %v4482 = vpop.f32.mrf.mxu0
        %4483 = vdwg.mxu0
        %4484 = vmatpush.bf16.xpose.msra.mxu0 %v3272
        %4485 = vmatpush.bf16.xpose.msra.mxu0 %v3247
        %4486 = vmatpush.bf16.xpose.msra.mxu0 %v3222
        %4487 = vmatpush.bf16.xpose.msra.mxu0 %v3197
        %4488 = vmatpush.bf16.xpose.msra.mxu0 %v3172
        %4489 = vmatpush.bf16.xpose.msra.mxu0 %v3147
        %4490 = vmatpush.bf16.xpose.msra.mxu0 %v3122
        %4491 = vmatpush.bf16.xpose.msra.mxu0 %v3097
        %4492 = vmatmul.bf16.gmra.mxu0 %v972
        %v4493 = vpop.f32.mrf.mxu0
        %v4494 = vadd.f32 %v4481, %v4493
        %v4495 = vpop.f32.mrf.mxu0
        %4496 = vdwg.mxu0
        %4497 = vmatpush.bf16.xpose.msra.mxu0 %v3273
        %4498 = vmatpush.bf16.xpose.msra.mxu0 %v3248
        %4499 = vmatpush.bf16.xpose.msra.mxu0 %v3223
        %4500 = vmatpush.bf16.xpose.msra.mxu0 %v3198
        %4501 = vmatpush.bf16.xpose.msra.mxu0 %v3173
        %4502 = vmatpush.bf16.xpose.msra.mxu0 %v3148
        %4503 = vmatpush.bf16.xpose.msra.mxu0 %v3123
        %4504 = vmatpush.bf16.xpose.msra.mxu0 %v3098
        %4505 = vmatmul.bf16.gmra.mxu0 %v973
        %v4506 = vpop.f32.mrf.mxu0
        %v4507 = vadd.f32 %v4494, %v4506
        %v4508 = vpop.f32.mrf.mxu0
        %4509 = vdwg.mxu0
        %4510 = vmatpush.bf16.xpose.msra.mxu0 %v3274
        %4511 = vmatpush.bf16.xpose.msra.mxu0 %v3249
        %4512 = vmatpush.bf16.xpose.msra.mxu0 %v3224
        %4513 = vmatpush.bf16.xpose.msra.mxu0 %v3199
        %4514 = vmatpush.bf16.xpose.msra.mxu0 %v3174
        %4515 = vmatpush.bf16.xpose.msra.mxu0 %v3149
        %4516 = vmatpush.bf16.xpose.msra.mxu0 %v3124
        %4517 = vmatpush.bf16.xpose.msra.mxu0 %v3099
        %4518 = vmatmul.bf16.gmra.mxu0 %v974
        %v4519 = vpop.f32.mrf.mxu0
        %v4520 = vadd.f32 %v4507, %v4519
        %v4521 = vpop.f32.mrf.mxu0
        %4522 = vdwg.mxu0
        %4523 = vmatpush.bf16.xpose.msra.mxu0 %v3275
        %4524 = vmatpush.bf16.xpose.msra.mxu0 %v3250
        %4525 = vmatpush.bf16.xpose.msra.mxu0 %v3225
        %4526 = vmatpush.bf16.xpose.msra.mxu0 %v3200
        %4527 = vmatpush.bf16.xpose.msra.mxu0 %v3175
        %4528 = vmatpush.bf16.xpose.msra.mxu0 %v3150
        %4529 = vmatpush.bf16.xpose.msra.mxu0 %v3125
        %4530 = vmatpush.bf16.xpose.msra.mxu0 %v3100
        %4531 = vmatmul.bf16.gmra.mxu0 %v975
        %v4532 = vpop.f32.mrf.mxu0
        %v4533 = vadd.f32 %v4520, %v4532
        %v4534 = vpop.f32.mrf.mxu0
        %4535 = vdwg.mxu0
        %4536 = vmatpush.bf16.xpose.msra.mxu0 %v3276
        %4537 = vmatpush.bf16.xpose.msra.mxu0 %v3251
        %4538 = vmatpush.bf16.xpose.msra.mxu0 %v3226
        %4539 = vmatpush.bf16.xpose.msra.mxu0 %v3201
        %4540 = vmatpush.bf16.xpose.msra.mxu0 %v3176
        %4541 = vmatpush.bf16.xpose.msra.mxu0 %v3151
        %4542 = vmatpush.bf16.xpose.msra.mxu0 %v3126
        %4543 = vmatpush.bf16.xpose.msra.mxu0 %v3101
        %4544 = vmatmul.bf16.gmra.mxu0 %v976
        %v4545 = vpop.f32.mrf.mxu0
        %v4546 = vadd.f32 %v4533, %v4545
        %v4547 = vpop.f32.mrf.mxu0
        %4548 = vdwg.mxu0
        %4549 = vmatpush.bf16.xpose.msra.mxu0 %v3277
        %4550 = vmatpush.bf16.xpose.msra.mxu0 %v3252
        %4551 = vmatpush.bf16.xpose.msra.mxu0 %v3227
        %4552 = vmatpush.bf16.xpose.msra.mxu0 %v3202
        %4553 = vmatpush.bf16.xpose.msra.mxu0 %v3177
        %4554 = vmatpush.bf16.xpose.msra.mxu0 %v3152
        %4555 = vmatpush.bf16.xpose.msra.mxu0 %v3127
        %4556 = vmatpush.bf16.xpose.msra.mxu0 %v3102
        %4557 = vmatmul.bf16.gmra.mxu0 %v977
        %v4558 = vpop.f32.mrf.mxu0
        %v4559 = vadd.f32 %v4546, %v4558
        %v4560 = vpop.f32.mrf.mxu0
        %4561 = vdwg.mxu0
        %4562 = vmatpush.bf16.xpose.msra.mxu0 %v3278
        %4563 = vmatpush.bf16.xpose.msra.mxu0 %v3253
        %4564 = vmatpush.bf16.xpose.msra.mxu0 %v3228
        %4565 = vmatpush.bf16.xpose.msra.mxu0 %v3203
        %4566 = vmatpush.bf16.xpose.msra.mxu0 %v3178
        %4567 = vmatpush.bf16.xpose.msra.mxu0 %v3153
        %4568 = vmatpush.bf16.xpose.msra.mxu0 %v3128
        %4569 = vmatpush.bf16.xpose.msra.mxu0 %v3103
        %4570 = vmatmul.bf16.gmra.mxu0 %v978
        %v4571 = vpop.f32.mrf.mxu0
        %v4572 = vadd.f32 %v4559, %v4571
        %v4573 = vpop.f32.mrf.mxu0
        %4574 = vdwg.mxu0
        %4575 = vmatpush.bf16.xpose.msra.mxu0 %v3279
        %4576 = vmatpush.bf16.xpose.msra.mxu0 %v3254
        %4577 = vmatpush.bf16.xpose.msra.mxu0 %v3229
        %4578 = vmatpush.bf16.xpose.msra.mxu0 %v3204
        %4579 = vmatpush.bf16.xpose.msra.mxu0 %v3179
        %4580 = vmatpush.bf16.xpose.msra.mxu0 %v3154
        %4581 = vmatpush.bf16.xpose.msra.mxu0 %v3129
        %4582 = vmatpush.bf16.xpose.msra.mxu0 %v3104
        %4583 = vmatmul.bf16.gmra.mxu0 %v979
        %v4584 = vpop.f32.mrf.mxu0
        %v4585 = vadd.f32 %v4572, %v4584
        %v4586 = vpop.f32.mrf.mxu0
        %4587 = vdwg.mxu0
        %4588 = vmatpush.bf16.xpose.msra.mxu0 %v3280
        %4589 = vmatpush.bf16.xpose.msra.mxu0 %v3255
        %4590 = vmatpush.bf16.xpose.msra.mxu0 %v3230
        %4591 = vmatpush.bf16.xpose.msra.mxu0 %v3205
        %4592 = vmatpush.bf16.xpose.msra.mxu0 %v3180
        %4593 = vmatpush.bf16.xpose.msra.mxu0 %v3155
        %4594 = vmatpush.bf16.xpose.msra.mxu0 %v3130
        %4595 = vmatpush.bf16.xpose.msra.mxu0 %v3105
        %4596 = vmatmul.bf16.gmra.mxu0 %v980
        %v4597 = vpop.f32.mrf.mxu0
        %v4598 = vadd.f32 %v4585, %v4597
        %v4599 = vpop.f32.mrf.mxu0
        %4600 = vdwg.mxu0
        %4601 = vmatpush.bf16.xpose.msra.mxu0 %v3281
        %4602 = vmatpush.bf16.xpose.msra.mxu0 %v3256
        %4603 = vmatpush.bf16.xpose.msra.mxu0 %v3231
        %4604 = vmatpush.bf16.xpose.msra.mxu0 %v3206
        %4605 = vmatpush.bf16.xpose.msra.mxu0 %v3181
        %4606 = vmatpush.bf16.xpose.msra.mxu0 %v3156
        %4607 = vmatpush.bf16.xpose.msra.mxu0 %v3131
        %4608 = vmatpush.bf16.xpose.msra.mxu0 %v3106
        %4609 = vmatmul.bf16.gmra.mxu0 %v981
        %v4610 = vpop.f32.mrf.mxu0
        %v4611 = vadd.f32 %v4598, %v4610
        %v4612 = vpop.f32.mrf.mxu0
        %4613 = vdwg.mxu0
        %4614 = vmatpush.bf16.xpose.msra.mxu0 %v3282
        %4615 = vmatpush.bf16.xpose.msra.mxu0 %v3257
        %4616 = vmatpush.bf16.xpose.msra.mxu0 %v3232
        %4617 = vmatpush.bf16.xpose.msra.mxu0 %v3207
        %4618 = vmatpush.bf16.xpose.msra.mxu0 %v3182
        %4619 = vmatpush.bf16.xpose.msra.mxu0 %v3157
        %4620 = vmatpush.bf16.xpose.msra.mxu0 %v3132
        %4621 = vmatpush.bf16.xpose.msra.mxu0 %v3107
        %4622 = vmatmul.bf16.gmra.mxu0 %v982
        %v4623 = vpop.f32.mrf.mxu0
        %v4624 = vadd.f32 %v4611, %v4623
        %v4625 = vpop.f32.mrf.mxu0
        %4626 = vdwg.mxu0
        %4627 = vmatpush.bf16.xpose.msra.mxu0 %v3283
        %4628 = vmatpush.bf16.xpose.msra.mxu0 %v3258
        %4629 = vmatpush.bf16.xpose.msra.mxu0 %v3233
        %4630 = vmatpush.bf16.xpose.msra.mxu0 %v3208
        %4631 = vmatpush.bf16.xpose.msra.mxu0 %v3183
        %4632 = vmatpush.bf16.xpose.msra.mxu0 %v3158
        %4633 = vmatpush.bf16.xpose.msra.mxu0 %v3133
        %4634 = vmatpush.bf16.xpose.msra.mxu0 %v3108
        %4635 = vmatmul.bf16.gmra.mxu0 %v983
        %v4636 = vpop.f32.mrf.mxu0
        %v4637 = vadd.f32 %v4624, %v4636
        %v4638 = vpop.f32.mrf.mxu0
        %4639 = vdwg.mxu0
        %4640 = vmatpush.bf16.xpose.msra.mxu0 %v3284
        %4641 = vmatpush.bf16.xpose.msra.mxu0 %v3259
        %4642 = vmatpush.bf16.xpose.msra.mxu0 %v3234
        %4643 = vmatpush.bf16.xpose.msra.mxu0 %v3209
        %4644 = vmatpush.bf16.xpose.msra.mxu0 %v3184
        %4645 = vmatpush.bf16.xpose.msra.mxu0 %v3159
        %4646 = vmatpush.bf16.xpose.msra.mxu0 %v3134
        %4647 = vmatpush.bf16.xpose.msra.mxu0 %v3109
        %4648 = vmatmul.bf16.gmra.mxu0 %v984
        %v4649 = vpop.f32.mrf.mxu0
        %v4650 = vadd.f32 %v4637, %v4649
        %v4651 = vpop.f32.mrf.mxu0
        %4652 = vdwg.mxu0
        %4653 = vmatpush.bf16.xpose.msra.mxu0 %v3285
        %4654 = vmatpush.bf16.xpose.msra.mxu0 %v3260
        %4655 = vmatpush.bf16.xpose.msra.mxu0 %v3235
        %4656 = vmatpush.bf16.xpose.msra.mxu0 %v3210
        %4657 = vmatpush.bf16.xpose.msra.mxu0 %v3185
        %4658 = vmatpush.bf16.xpose.msra.mxu0 %v3160
        %4659 = vmatpush.bf16.xpose.msra.mxu0 %v3135
        %4660 = vmatpush.bf16.xpose.msra.mxu0 %v3110
        %4661 = vmatmul.bf16.gmra.mxu0 %v985
        %v4662 = vpop.f32.mrf.mxu0
        %v4663 = vadd.f32 %v4650, %v4662
        %v4664 = vpop.f32.mrf.mxu0
        %4665 = vdwg.mxu0
        %4666 = vmatpush.bf16.xpose.msra.mxu0 %v3286
        %4667 = vmatpush.bf16.xpose.msra.mxu0 %v3261
        %4668 = vmatpush.bf16.xpose.msra.mxu0 %v3236
        %4669 = vmatpush.bf16.xpose.msra.mxu0 %v3211
        %4670 = vmatpush.bf16.xpose.msra.mxu0 %v3186
        %4671 = vmatpush.bf16.xpose.msra.mxu0 %v3161
        %4672 = vmatpush.bf16.xpose.msra.mxu0 %v3136
        %4673 = vmatpush.bf16.xpose.msra.mxu0 %v3111
        %4674 = vmatmul.bf16.gmra.mxu0 %v986
        %v4675 = vpop.f32.mrf.mxu0
        %v4676 = vadd.f32 %v4663, %v4675
        %v4677 = vpop.f32.mrf.mxu0
        %4678 = vdwg.mxu0
        %4679 = vmatpush.bf16.xpose.msra.mxu0 %v3287
        %4680 = vmatpush.bf16.xpose.msra.mxu0 %v3262
        %4681 = vmatpush.bf16.xpose.msra.mxu0 %v3237
        %4682 = vmatpush.bf16.xpose.msra.mxu0 %v3212
        %4683 = vmatpush.bf16.xpose.msra.mxu0 %v3187
        %4684 = vmatpush.bf16.xpose.msra.mxu0 %v3162
        %4685 = vmatpush.bf16.xpose.msra.mxu0 %v3137
        %4686 = vmatpush.bf16.xpose.msra.mxu0 %v3112
        %4687 = vmatmul.bf16.gmra.mxu0 %v987
        %v4688 = vpop.f32.mrf.mxu0
        %v4689 = vadd.f32 %v4676, %v4688
        %v4690 = vpop.f32.mrf.mxu0
        %4691 = vdwg.mxu0
        %4692 = vmatpush.bf16.xpose.msra.mxu0 %v3288
        %4693 = vmatpush.bf16.xpose.msra.mxu0 %v3263
        %4694 = vmatpush.bf16.xpose.msra.mxu0 %v3238
        %4695 = vmatpush.bf16.xpose.msra.mxu0 %v3213
        %4696 = vmatpush.bf16.xpose.msra.mxu0 %v3188
        %4697 = vmatpush.bf16.xpose.msra.mxu0 %v3163
        %4698 = vmatpush.bf16.xpose.msra.mxu0 %v3138
        %4699 = vmatpush.bf16.xpose.msra.mxu0 %v3113
        %4700 = vmatmul.bf16.gmra.mxu0 %v988
        %v4701 = vpop.f32.mrf.mxu0
        %v4702 = vadd.f32 %v4689, %v4701
        %v4703 = vpop.f32.mrf.mxu0
        %4704 = vdwg.mxu0
        %4705 = vmatpush.bf16.xpose.msra.mxu0 %v3289
        %4706 = vmatpush.bf16.xpose.msra.mxu0 %v3264
        %4707 = vmatpush.bf16.xpose.msra.mxu0 %v3239
        %4708 = vmatpush.bf16.xpose.msra.mxu0 %v3214
        %4709 = vmatpush.bf16.xpose.msra.mxu0 %v3189
        %4710 = vmatpush.bf16.xpose.msra.mxu0 %v3164
        %4711 = vmatpush.bf16.xpose.msra.mxu0 %v3139
        %4712 = vmatpush.bf16.xpose.msra.mxu0 %v3114
        %4713 = vmatmul.bf16.gmra.mxu0 %v989
        %v4714 = vpop.f32.mrf.mxu0
        %v4715 = vadd.f32 %v4702, %v4714
        %v4716 = vpop.f32.mrf.mxu0
        %4717 = vdwg.mxu0
        %4718 = vmatpush.bf16.xpose.msra.mxu0 %v3290
        %4719 = vmatpush.bf16.xpose.msra.mxu0 %v3265
        %4720 = vmatpush.bf16.xpose.msra.mxu0 %v3240
        %4721 = vmatpush.bf16.xpose.msra.mxu0 %v3215
        %4722 = vmatpush.bf16.xpose.msra.mxu0 %v3190
        %4723 = vmatpush.bf16.xpose.msra.mxu0 %v3165
        %4724 = vmatpush.bf16.xpose.msra.mxu0 %v3140
        %4725 = vmatpush.bf16.xpose.msra.mxu0 %v3115
        %4726 = vmatmul.bf16.gmra.mxu0 %v990
        %v4727 = vpop.f32.mrf.mxu0
        %v4728 = vadd.f32 %v4715, %v4727
        %v4729 = vpop.f32.mrf.mxu0
        %4730 = vdwg.mxu0
        %4731 = vmatpush.bf16.xpose.msra.mxu0 %v3291
        %4732 = vmatpush.bf16.xpose.msra.mxu0 %v3266
        %4733 = vmatpush.bf16.xpose.msra.mxu0 %v3241
        %4734 = vmatpush.bf16.xpose.msra.mxu0 %v3216
        %4735 = vmatpush.bf16.xpose.msra.mxu0 %v3191
        %4736 = vmatpush.bf16.xpose.msra.mxu0 %v3166
        %4737 = vmatpush.bf16.xpose.msra.mxu0 %v3141
        %4738 = vmatpush.bf16.xpose.msra.mxu0 %v3116
        %4739 = vmatmul.bf16.gmra.mxu0 %v991
        %v4740 = vpop.f32.mrf.mxu0
        %v4741 = vadd.f32 %v4728, %v4740
        %v4742 = vpop.f32.mrf.mxu0
        %4743 = vdwg.mxu0
        %4744 = vmatpush.bf16.xpose.msra.mxu0 %v3292
        %4745 = vmatpush.bf16.xpose.msra.mxu0 %v3267
        %4746 = vmatpush.bf16.xpose.msra.mxu0 %v3242
        %4747 = vmatpush.bf16.xpose.msra.mxu0 %v3217
        %4748 = vmatpush.bf16.xpose.msra.mxu0 %v3192
        %4749 = vmatpush.bf16.xpose.msra.mxu0 %v3167
        %4750 = vmatpush.bf16.xpose.msra.mxu0 %v3142
        %4751 = vmatpush.bf16.xpose.msra.mxu0 %v3117
        %4752 = vmatmul.bf16.gmra.mxu0 %v992
        %v4753 = vpop.f32.mrf.mxu0
        %v4754 = vadd.f32 %v4741, %v4753
        %v4755 = vpop.f32.mrf.mxu0
        %4756 = vdwg.mxu0
        %4757 = vmatpush.bf16.xpose.msra.mxu0 %v3293
        %4758 = vmatpush.bf16.xpose.msra.mxu0 %v3268
        %4759 = vmatpush.bf16.xpose.msra.mxu0 %v3243
        %4760 = vmatpush.bf16.xpose.msra.mxu0 %v3218
        %4761 = vmatpush.bf16.xpose.msra.mxu0 %v3193
        %4762 = vmatpush.bf16.xpose.msra.mxu0 %v3168
        %4763 = vmatpush.bf16.xpose.msra.mxu0 %v3143
        %4764 = vmatpush.bf16.xpose.msra.mxu0 %v3118
        %4765 = vmatmul.bf16.gmra.mxu0 %v993
        %v4766 = vpop.f32.mrf.mxu0
        %v4767 = vadd.f32 %v4754, %v4766
        %v4768 = vpop.f32.mrf.mxu0
        %4769 = vdwg.mxu0
        %4770 = vmatpush.bf16.xpose.msra.mxu0 %v3294
        %4771 = vmatpush.bf16.xpose.msra.mxu0 %v3269
        %4772 = vmatpush.bf16.xpose.msra.mxu0 %v3244
        %4773 = vmatpush.bf16.xpose.msra.mxu0 %v3219
        %4774 = vmatpush.bf16.xpose.msra.mxu0 %v3194
        %4775 = vmatpush.bf16.xpose.msra.mxu0 %v3169
        %4776 = vmatpush.bf16.xpose.msra.mxu0 %v3144
        %4777 = vmatpush.bf16.xpose.msra.mxu0 %v3119
        %4778 = vmatmul.bf16.gmra.mxu0 %v994
        %v4779 = vpop.f32.mrf.mxu0
        %v4780 = vadd.f32 %v4767, %v4779
        %v4781 = vpop.f32.mrf.mxu0
        %4782 = vdwg.mxu0
        %4783 = vmatpush.bf16.xpose.msra.mxu0 %v3295
        %4784 = vmatpush.bf16.xpose.msra.mxu0 %v3270
        %4785 = vmatpush.bf16.xpose.msra.mxu0 %v3245
        %4786 = vmatpush.bf16.xpose.msra.mxu0 %v3220
        %4787 = vmatpush.bf16.xpose.msra.mxu0 %v3195
        %4788 = vmatpush.bf16.xpose.msra.mxu0 %v3170
        %4789 = vmatpush.bf16.xpose.msra.mxu0 %v3145
        %4790 = vmatpush.bf16.xpose.msra.mxu0 %v3120
        %4791 = vmatmul.bf16.gmra.mxu0 %v995
        %v4792 = vpop.f32.mrf.mxu0
        %v4793 = vadd.f32 %v4780, %v4792
        %v4794 = vpop.f32.mrf.mxu0
        %4795 = vdwg.mxu0
        %4796 = vmatpush.bf16.xpose.msra.mxu0 %v3471
        %4797 = vmatpush.bf16.xpose.msra.mxu0 %v3446
        %4798 = vmatpush.bf16.xpose.msra.mxu0 %v3421
        %4799 = vmatpush.bf16.xpose.msra.mxu0 %v3396
        %4800 = vmatpush.bf16.xpose.msra.mxu0 %v3371
        %4801 = vmatpush.bf16.xpose.msra.mxu0 %v3346
        %4802 = vmatpush.bf16.xpose.msra.mxu0 %v3321
        %4803 = vmatpush.bf16.xpose.msra.mxu0 %v3296
        %4804 = vmatmul.bf16.gmra.mxu0 %v971
        %v4805 = vpop.f32.mrf.mxu0
        %v4806 = vadd.f32 0.0, %v4805
        %v4807 = vpop.f32.mrf.mxu0
        %4808 = vdwg.mxu0
        %4809 = vmatpush.bf16.xpose.msra.mxu0 %v3472
        %4810 = vmatpush.bf16.xpose.msra.mxu0 %v3447
        %4811 = vmatpush.bf16.xpose.msra.mxu0 %v3422
        %4812 = vmatpush.bf16.xpose.msra.mxu0 %v3397
        %4813 = vmatpush.bf16.xpose.msra.mxu0 %v3372
        %4814 = vmatpush.bf16.xpose.msra.mxu0 %v3347
        %4815 = vmatpush.bf16.xpose.msra.mxu0 %v3322
        %4816 = vmatpush.bf16.xpose.msra.mxu0 %v3297
        %4817 = vmatmul.bf16.gmra.mxu0 %v972
        %v4818 = vpop.f32.mrf.mxu0
        %v4819 = vadd.f32 %v4806, %v4818
        %v4820 = vpop.f32.mrf.mxu0
        %4821 = vdwg.mxu0
        %4822 = vmatpush.bf16.xpose.msra.mxu0 %v3473
        %4823 = vmatpush.bf16.xpose.msra.mxu0 %v3448
        %4824 = vmatpush.bf16.xpose.msra.mxu0 %v3423
        %4825 = vmatpush.bf16.xpose.msra.mxu0 %v3398
        %4826 = vmatpush.bf16.xpose.msra.mxu0 %v3373
        %4827 = vmatpush.bf16.xpose.msra.mxu0 %v3348
        %4828 = vmatpush.bf16.xpose.msra.mxu0 %v3323
        %4829 = vmatpush.bf16.xpose.msra.mxu0 %v3298
        %4830 = vmatmul.bf16.gmra.mxu0 %v973
        %v4831 = vpop.f32.mrf.mxu0
        %v4832 = vadd.f32 %v4819, %v4831
        %v4833 = vpop.f32.mrf.mxu0
        %4834 = vdwg.mxu0
        %4835 = vmatpush.bf16.xpose.msra.mxu0 %v3474
        %4836 = vmatpush.bf16.xpose.msra.mxu0 %v3449
        %4837 = vmatpush.bf16.xpose.msra.mxu0 %v3424
        %4838 = vmatpush.bf16.xpose.msra.mxu0 %v3399
        %4839 = vmatpush.bf16.xpose.msra.mxu0 %v3374
        %4840 = vmatpush.bf16.xpose.msra.mxu0 %v3349
        %4841 = vmatpush.bf16.xpose.msra.mxu0 %v3324
        %4842 = vmatpush.bf16.xpose.msra.mxu0 %v3299
        %4843 = vmatmul.bf16.gmra.mxu0 %v974
        %v4844 = vpop.f32.mrf.mxu0
        %v4845 = vadd.f32 %v4832, %v4844
        %v4846 = vpop.f32.mrf.mxu0
        %4847 = vdwg.mxu0
        %4848 = vmatpush.bf16.xpose.msra.mxu0 %v3475
        %4849 = vmatpush.bf16.xpose.msra.mxu0 %v3450
        %4850 = vmatpush.bf16.xpose.msra.mxu0 %v3425
        %4851 = vmatpush.bf16.xpose.msra.mxu0 %v3400
        %4852 = vmatpush.bf16.xpose.msra.mxu0 %v3375
        %4853 = vmatpush.bf16.xpose.msra.mxu0 %v3350
        %4854 = vmatpush.bf16.xpose.msra.mxu0 %v3325
        %4855 = vmatpush.bf16.xpose.msra.mxu0 %v3300
        %4856 = vmatmul.bf16.gmra.mxu0 %v975
        %v4857 = vpop.f32.mrf.mxu0
        %v4858 = vadd.f32 %v4845, %v4857
        %v4859 = vpop.f32.mrf.mxu0
        %4860 = vdwg.mxu0
        %4861 = vmatpush.bf16.xpose.msra.mxu0 %v3476
        %4862 = vmatpush.bf16.xpose.msra.mxu0 %v3451
        %4863 = vmatpush.bf16.xpose.msra.mxu0 %v3426
        %4864 = vmatpush.bf16.xpose.msra.mxu0 %v3401
        %4865 = vmatpush.bf16.xpose.msra.mxu0 %v3376
        %4866 = vmatpush.bf16.xpose.msra.mxu0 %v3351
        %4867 = vmatpush.bf16.xpose.msra.mxu0 %v3326
        %4868 = vmatpush.bf16.xpose.msra.mxu0 %v3301
        %4869 = vmatmul.bf16.gmra.mxu0 %v976
        %v4870 = vpop.f32.mrf.mxu0
        %v4871 = vadd.f32 %v4858, %v4870
        %v4872 = vpop.f32.mrf.mxu0
        %4873 = vdwg.mxu0
        %4874 = vmatpush.bf16.xpose.msra.mxu0 %v3477
        %4875 = vmatpush.bf16.xpose.msra.mxu0 %v3452
        %4876 = vmatpush.bf16.xpose.msra.mxu0 %v3427
        %4877 = vmatpush.bf16.xpose.msra.mxu0 %v3402
        %4878 = vmatpush.bf16.xpose.msra.mxu0 %v3377
        %4879 = vmatpush.bf16.xpose.msra.mxu0 %v3352
        %4880 = vmatpush.bf16.xpose.msra.mxu0 %v3327
        %4881 = vmatpush.bf16.xpose.msra.mxu0 %v3302
        %4882 = vmatmul.bf16.gmra.mxu0 %v977
        %v4883 = vpop.f32.mrf.mxu0
        %v4884 = vadd.f32 %v4871, %v4883
        %v4885 = vpop.f32.mrf.mxu0
        %4886 = vdwg.mxu0
        %4887 = vmatpush.bf16.xpose.msra.mxu0 %v3478
        %4888 = vmatpush.bf16.xpose.msra.mxu0 %v3453
        %4889 = vmatpush.bf16.xpose.msra.mxu0 %v3428
        %4890 = vmatpush.bf16.xpose.msra.mxu0 %v3403
        %4891 = vmatpush.bf16.xpose.msra.mxu0 %v3378
        %4892 = vmatpush.bf16.xpose.msra.mxu0 %v3353
        %4893 = vmatpush.bf16.xpose.msra.mxu0 %v3328
        %4894 = vmatpush.bf16.xpose.msra.mxu0 %v3303
        %4895 = vmatmul.bf16.gmra.mxu0 %v978
        %v4896 = vpop.f32.mrf.mxu0
        %v4897 = vadd.f32 %v4884, %v4896
        %v4898 = vpop.f32.mrf.mxu0
        %4899 = vdwg.mxu0
        %4900 = vmatpush.bf16.xpose.msra.mxu0 %v3479
        %4901 = vmatpush.bf16.xpose.msra.mxu0 %v3454
        %4902 = vmatpush.bf16.xpose.msra.mxu0 %v3429
        %4903 = vmatpush.bf16.xpose.msra.mxu0 %v3404
        %4904 = vmatpush.bf16.xpose.msra.mxu0 %v3379
        %4905 = vmatpush.bf16.xpose.msra.mxu0 %v3354
        %4906 = vmatpush.bf16.xpose.msra.mxu0 %v3329
        %4907 = vmatpush.bf16.xpose.msra.mxu0 %v3304
        %4908 = vmatmul.bf16.gmra.mxu0 %v979
        %v4909 = vpop.f32.mrf.mxu0
        %v4910 = vadd.f32 %v4897, %v4909
        %v4911 = vpop.f32.mrf.mxu0
        %4912 = vdwg.mxu0
        %4913 = vmatpush.bf16.xpose.msra.mxu0 %v3480
        %4914 = vmatpush.bf16.xpose.msra.mxu0 %v3455
        %4915 = vmatpush.bf16.xpose.msra.mxu0 %v3430
        %4916 = vmatpush.bf16.xpose.msra.mxu0 %v3405
        %4917 = vmatpush.bf16.xpose.msra.mxu0 %v3380
        %4918 = vmatpush.bf16.xpose.msra.mxu0 %v3355
        %4919 = vmatpush.bf16.xpose.msra.mxu0 %v3330
        %4920 = vmatpush.bf16.xpose.msra.mxu0 %v3305
        %4921 = vmatmul.bf16.gmra.mxu0 %v980
        %v4922 = vpop.f32.mrf.mxu0
        %v4923 = vadd.f32 %v4910, %v4922
        %v4924 = vpop.f32.mrf.mxu0
        %4925 = vdwg.mxu0
        %4926 = vmatpush.bf16.xpose.msra.mxu0 %v3481
        %4927 = vmatpush.bf16.xpose.msra.mxu0 %v3456
        %4928 = vmatpush.bf16.xpose.msra.mxu0 %v3431
        %4929 = vmatpush.bf16.xpose.msra.mxu0 %v3406
        %4930 = vmatpush.bf16.xpose.msra.mxu0 %v3381
        %4931 = vmatpush.bf16.xpose.msra.mxu0 %v3356
        %4932 = vmatpush.bf16.xpose.msra.mxu0 %v3331
        %4933 = vmatpush.bf16.xpose.msra.mxu0 %v3306
        %4934 = vmatmul.bf16.gmra.mxu0 %v981
        %v4935 = vpop.f32.mrf.mxu0
        %v4936 = vadd.f32 %v4923, %v4935
        %v4937 = vpop.f32.mrf.mxu0
        %4938 = vdwg.mxu0
        %4939 = vmatpush.bf16.xpose.msra.mxu0 %v3482
        %4940 = vmatpush.bf16.xpose.msra.mxu0 %v3457
        %4941 = vmatpush.bf16.xpose.msra.mxu0 %v3432
        %4942 = vmatpush.bf16.xpose.msra.mxu0 %v3407
        %4943 = vmatpush.bf16.xpose.msra.mxu0 %v3382
        %4944 = vmatpush.bf16.xpose.msra.mxu0 %v3357
        %4945 = vmatpush.bf16.xpose.msra.mxu0 %v3332
        %4946 = vmatpush.bf16.xpose.msra.mxu0 %v3307
        %4947 = vmatmul.bf16.gmra.mxu0 %v982
        %v4948 = vpop.f32.mrf.mxu0
        %v4949 = vadd.f32 %v4936, %v4948
        %v4950 = vpop.f32.mrf.mxu0
        %4951 = vdwg.mxu0
        %4952 = vmatpush.bf16.xpose.msra.mxu0 %v3483
        %4953 = vmatpush.bf16.xpose.msra.mxu0 %v3458
        %4954 = vmatpush.bf16.xpose.msra.mxu0 %v3433
        %4955 = vmatpush.bf16.xpose.msra.mxu0 %v3408
        %4956 = vmatpush.bf16.xpose.msra.mxu0 %v3383
        %4957 = vmatpush.bf16.xpose.msra.mxu0 %v3358
        %4958 = vmatpush.bf16.xpose.msra.mxu0 %v3333
        %4959 = vmatpush.bf16.xpose.msra.mxu0 %v3308
        %4960 = vmatmul.bf16.gmra.mxu0 %v983
        %v4961 = vpop.f32.mrf.mxu0
        %v4962 = vadd.f32 %v4949, %v4961
        %v4963 = vpop.f32.mrf.mxu0
        %4964 = vdwg.mxu0
        %4965 = vmatpush.bf16.xpose.msra.mxu0 %v3484
        %4966 = vmatpush.bf16.xpose.msra.mxu0 %v3459
        %4967 = vmatpush.bf16.xpose.msra.mxu0 %v3434
        %4968 = vmatpush.bf16.xpose.msra.mxu0 %v3409
        %4969 = vmatpush.bf16.xpose.msra.mxu0 %v3384
        %4970 = vmatpush.bf16.xpose.msra.mxu0 %v3359
        %4971 = vmatpush.bf16.xpose.msra.mxu0 %v3334
        %4972 = vmatpush.bf16.xpose.msra.mxu0 %v3309
        %4973 = vmatmul.bf16.gmra.mxu0 %v984
        %v4974 = vpop.f32.mrf.mxu0
        %v4975 = vadd.f32 %v4962, %v4974
        %v4976 = vpop.f32.mrf.mxu0
        %4977 = vdwg.mxu0
        %4978 = vmatpush.bf16.xpose.msra.mxu0 %v3485
        %4979 = vmatpush.bf16.xpose.msra.mxu0 %v3460
        %4980 = vmatpush.bf16.xpose.msra.mxu0 %v3435
        %4981 = vmatpush.bf16.xpose.msra.mxu0 %v3410
        %4982 = vmatpush.bf16.xpose.msra.mxu0 %v3385
        %4983 = vmatpush.bf16.xpose.msra.mxu0 %v3360
        %4984 = vmatpush.bf16.xpose.msra.mxu0 %v3335
        %4985 = vmatpush.bf16.xpose.msra.mxu0 %v3310
        %4986 = vmatmul.bf16.gmra.mxu0 %v985
        %v4987 = vpop.f32.mrf.mxu0
        %v4988 = vadd.f32 %v4975, %v4987
        %v4989 = vpop.f32.mrf.mxu0
        %4990 = vdwg.mxu0
        %4991 = vmatpush.bf16.xpose.msra.mxu0 %v3486
        %4992 = vmatpush.bf16.xpose.msra.mxu0 %v3461
        %4993 = vmatpush.bf16.xpose.msra.mxu0 %v3436
        %4994 = vmatpush.bf16.xpose.msra.mxu0 %v3411
        %4995 = vmatpush.bf16.xpose.msra.mxu0 %v3386
        %4996 = vmatpush.bf16.xpose.msra.mxu0 %v3361
        %4997 = vmatpush.bf16.xpose.msra.mxu0 %v3336
        %4998 = vmatpush.bf16.xpose.msra.mxu0 %v3311
        %4999 = vmatmul.bf16.gmra.mxu0 %v986
        %v5000 = vpop.f32.mrf.mxu0
        %v5001 = vadd.f32 %v4988, %v5000
        %v5002 = vpop.f32.mrf.mxu0
        %5003 = vdwg.mxu0
        %5004 = vmatpush.bf16.xpose.msra.mxu0 %v3487
        %5005 = vmatpush.bf16.xpose.msra.mxu0 %v3462
        %5006 = vmatpush.bf16.xpose.msra.mxu0 %v3437
        %5007 = vmatpush.bf16.xpose.msra.mxu0 %v3412
        %5008 = vmatpush.bf16.xpose.msra.mxu0 %v3387
        %5009 = vmatpush.bf16.xpose.msra.mxu0 %v3362
        %5010 = vmatpush.bf16.xpose.msra.mxu0 %v3337
        %5011 = vmatpush.bf16.xpose.msra.mxu0 %v3312
        %5012 = vmatmul.bf16.gmra.mxu0 %v987
        %v5013 = vpop.f32.mrf.mxu0
        %v5014 = vadd.f32 %v5001, %v5013
        %v5015 = vpop.f32.mrf.mxu0
        %5016 = vdwg.mxu0
        %5017 = vmatpush.bf16.xpose.msra.mxu0 %v3488
        %5018 = vmatpush.bf16.xpose.msra.mxu0 %v3463
        %5019 = vmatpush.bf16.xpose.msra.mxu0 %v3438
        %5020 = vmatpush.bf16.xpose.msra.mxu0 %v3413
        %5021 = vmatpush.bf16.xpose.msra.mxu0 %v3388
        %5022 = vmatpush.bf16.xpose.msra.mxu0 %v3363
        %5023 = vmatpush.bf16.xpose.msra.mxu0 %v3338
        %5024 = vmatpush.bf16.xpose.msra.mxu0 %v3313
        %5025 = vmatmul.bf16.gmra.mxu0 %v988
        %v5026 = vpop.f32.mrf.mxu0
        %v5027 = vadd.f32 %v5014, %v5026
        %v5028 = vpop.f32.mrf.mxu0
        %5029 = vdwg.mxu0
        %5030 = vmatpush.bf16.xpose.msra.mxu0 %v3489
        %5031 = vmatpush.bf16.xpose.msra.mxu0 %v3464
        %5032 = vmatpush.bf16.xpose.msra.mxu0 %v3439
        %5033 = vmatpush.bf16.xpose.msra.mxu0 %v3414
        %5034 = vmatpush.bf16.xpose.msra.mxu0 %v3389
        %5035 = vmatpush.bf16.xpose.msra.mxu0 %v3364
        %5036 = vmatpush.bf16.xpose.msra.mxu0 %v3339
        %5037 = vmatpush.bf16.xpose.msra.mxu0 %v3314
        %5038 = vmatmul.bf16.gmra.mxu0 %v989
        %v5039 = vpop.f32.mrf.mxu0
        %v5040 = vadd.f32 %v5027, %v5039
        %v5041 = vpop.f32.mrf.mxu0
        %5042 = vdwg.mxu0
        %5043 = vmatpush.bf16.xpose.msra.mxu0 %v3490
        %5044 = vmatpush.bf16.xpose.msra.mxu0 %v3465
        %5045 = vmatpush.bf16.xpose.msra.mxu0 %v3440
        %5046 = vmatpush.bf16.xpose.msra.mxu0 %v3415
        %5047 = vmatpush.bf16.xpose.msra.mxu0 %v3390
        %5048 = vmatpush.bf16.xpose.msra.mxu0 %v3365
        %5049 = vmatpush.bf16.xpose.msra.mxu0 %v3340
        %5050 = vmatpush.bf16.xpose.msra.mxu0 %v3315
        %5051 = vmatmul.bf16.gmra.mxu0 %v990
        %v5052 = vpop.f32.mrf.mxu0
        %v5053 = vadd.f32 %v5040, %v5052
        %v5054 = vpop.f32.mrf.mxu0
        %5055 = vdwg.mxu0
        %5056 = vmatpush.bf16.xpose.msra.mxu0 %v3491
        %5057 = vmatpush.bf16.xpose.msra.mxu0 %v3466
        %5058 = vmatpush.bf16.xpose.msra.mxu0 %v3441
        %5059 = vmatpush.bf16.xpose.msra.mxu0 %v3416
        %5060 = vmatpush.bf16.xpose.msra.mxu0 %v3391
        %5061 = vmatpush.bf16.xpose.msra.mxu0 %v3366
        %5062 = vmatpush.bf16.xpose.msra.mxu0 %v3341
        %5063 = vmatpush.bf16.xpose.msra.mxu0 %v3316
        %5064 = vmatmul.bf16.gmra.mxu0 %v991
        %v5065 = vpop.f32.mrf.mxu0
        %v5066 = vadd.f32 %v5053, %v5065
        %v5067 = vpop.f32.mrf.mxu0
        %5068 = vdwg.mxu0
        %5069 = vmatpush.bf16.xpose.msra.mxu0 %v3492
        %5070 = vmatpush.bf16.xpose.msra.mxu0 %v3467
        %5071 = vmatpush.bf16.xpose.msra.mxu0 %v3442
        %5072 = vmatpush.bf16.xpose.msra.mxu0 %v3417
        %5073 = vmatpush.bf16.xpose.msra.mxu0 %v3392
        %5074 = vmatpush.bf16.xpose.msra.mxu0 %v3367
        %5075 = vmatpush.bf16.xpose.msra.mxu0 %v3342
        %5076 = vmatpush.bf16.xpose.msra.mxu0 %v3317
        %5077 = vmatmul.bf16.gmra.mxu0 %v992
        %v5078 = vpop.f32.mrf.mxu0
        %v5079 = vadd.f32 %v5066, %v5078
        %v5080 = vpop.f32.mrf.mxu0
        %5081 = vdwg.mxu0
        %5082 = vmatpush.bf16.xpose.msra.mxu0 %v3493
        %5083 = vmatpush.bf16.xpose.msra.mxu0 %v3468
        %5084 = vmatpush.bf16.xpose.msra.mxu0 %v3443
        %5085 = vmatpush.bf16.xpose.msra.mxu0 %v3418
        %5086 = vmatpush.bf16.xpose.msra.mxu0 %v3393
        %5087 = vmatpush.bf16.xpose.msra.mxu0 %v3368
        %5088 = vmatpush.bf16.xpose.msra.mxu0 %v3343
        %5089 = vmatpush.bf16.xpose.msra.mxu0 %v3318
        %5090 = vmatmul.bf16.gmra.mxu0 %v993
        %v5091 = vpop.f32.mrf.mxu0
        %v5092 = vadd.f32 %v5079, %v5091
        %v5093 = vpop.f32.mrf.mxu0
        %5094 = vdwg.mxu0
        %5095 = vmatpush.bf16.xpose.msra.mxu0 %v3494
        %5096 = vmatpush.bf16.xpose.msra.mxu0 %v3469
        %5097 = vmatpush.bf16.xpose.msra.mxu0 %v3444
        %5098 = vmatpush.bf16.xpose.msra.mxu0 %v3419
        %5099 = vmatpush.bf16.xpose.msra.mxu0 %v3394
        %5100 = vmatpush.bf16.xpose.msra.mxu0 %v3369
        %5101 = vmatpush.bf16.xpose.msra.mxu0 %v3344
        %5102 = vmatpush.bf16.xpose.msra.mxu0 %v3319
        %5103 = vmatmul.bf16.gmra.mxu0 %v994
        %v5104 = vpop.f32.mrf.mxu0
        %v5105 = vadd.f32 %v5092, %v5104
        %v5106 = vpop.f32.mrf.mxu0
        %5107 = vdwg.mxu0
        %5108 = vmatpush.bf16.xpose.msra.mxu0 %v3495
        %5109 = vmatpush.bf16.xpose.msra.mxu0 %v3470
        %5110 = vmatpush.bf16.xpose.msra.mxu0 %v3445
        %5111 = vmatpush.bf16.xpose.msra.mxu0 %v3420
        %5112 = vmatpush.bf16.xpose.msra.mxu0 %v3395
        %5113 = vmatpush.bf16.xpose.msra.mxu0 %v3370
        %5114 = vmatpush.bf16.xpose.msra.mxu0 %v3345
        %5115 = vmatpush.bf16.xpose.msra.mxu0 %v3320
        %5116 = vmatmul.bf16.gmra.mxu0 %v995
        %v5117 = vpop.f32.mrf.mxu0
        %v5118 = vadd.f32 %v5105, %v5117
        %v5119 = vpop.f32.mrf.mxu0
        %5120 = vdwg.mxu0
        %5121 = vmatpush.bf16.xpose.msra.mxu0 0
        %5122 = vmatpush.bf16.xpose.msra.mxu0 0
        %5123 = vmatpush.bf16.xpose.msra.mxu0 0
        %5124 = vmatpush.bf16.xpose.msra.mxu0 0
        %5125 = vmatpush.bf16.xpose.msra.mxu0 0
        %5126 = vmatpush.bf16.xpose.msra.mxu0 0
        %5127 = vmatpush.bf16.xpose.msra.mxu0 0
        %5128 = vmatpush.bf16.xpose.msra.mxu0 %v3496
        %5129 = vmatmul.bf16.gmra.mxu0 %v971
        %v5130 = vpop.f32.mrf.mxu0
        %v5131 = vadd.f32 0.0, %v5130
        %v5132 = vpop.f32.mrf.mxu0
        %5133 = vdwg.mxu0
        %5134 = vmatpush.bf16.xpose.msra.mxu0 0
        %5135 = vmatpush.bf16.xpose.msra.mxu0 0
        %5136 = vmatpush.bf16.xpose.msra.mxu0 0
        %5137 = vmatpush.bf16.xpose.msra.mxu0 0
        %5138 = vmatpush.bf16.xpose.msra.mxu0 0
        %5139 = vmatpush.bf16.xpose.msra.mxu0 0
        %5140 = vmatpush.bf16.xpose.msra.mxu0 0
        %5141 = vmatpush.bf16.xpose.msra.mxu0 %v3497
        %5142 = vmatmul.bf16.gmra.mxu0 %v972
        %v5143 = vpop.f32.mrf.mxu0
        %v5144 = vadd.f32 %v5131, %v5143
        %v5145 = vpop.f32.mrf.mxu0
        %5146 = vdwg.mxu0
        %5147 = vmatpush.bf16.xpose.msra.mxu0 0
        %5148 = vmatpush.bf16.xpose.msra.mxu0 0
        %5149 = vmatpush.bf16.xpose.msra.mxu0 0
        %5150 = vmatpush.bf16.xpose.msra.mxu0 0
        %5151 = vmatpush.bf16.xpose.msra.mxu0 0
        %5152 = vmatpush.bf16.xpose.msra.mxu0 0
        %5153 = vmatpush.bf16.xpose.msra.mxu0 0
        %5154 = vmatpush.bf16.xpose.msra.mxu0 %v3498
        %5155 = vmatmul.bf16.gmra.mxu0 %v973
        %v5156 = vpop.f32.mrf.mxu0
        %v5157 = vadd.f32 %v5144, %v5156
        %v5158 = vpop.f32.mrf.mxu0
        %5159 = vdwg.mxu0
        %5160 = vmatpush.bf16.xpose.msra.mxu0 0
        %5161 = vmatpush.bf16.xpose.msra.mxu0 0
        %5162 = vmatpush.bf16.xpose.msra.mxu0 0
        %5163 = vmatpush.bf16.xpose.msra.mxu0 0
        %5164 = vmatpush.bf16.xpose.msra.mxu0 0
        %5165 = vmatpush.bf16.xpose.msra.mxu0 0
        %5166 = vmatpush.bf16.xpose.msra.mxu0 0
        %5167 = vmatpush.bf16.xpose.msra.mxu0 %v3499
        %5168 = vmatmul.bf16.gmra.mxu0 %v974
        %v5169 = vpop.f32.mrf.mxu0
        %v5170 = vadd.f32 %v5157, %v5169
        %v5171 = vpop.f32.mrf.mxu0
        %5172 = vdwg.mxu0
        %5173 = vmatpush.bf16.xpose.msra.mxu0 0
        %5174 = vmatpush.bf16.xpose.msra.mxu0 0
        %5175 = vmatpush.bf16.xpose.msra.mxu0 0
        %5176 = vmatpush.bf16.xpose.msra.mxu0 0
        %5177 = vmatpush.bf16.xpose.msra.mxu0 0
        %5178 = vmatpush.bf16.xpose.msra.mxu0 0
        %5179 = vmatpush.bf16.xpose.msra.mxu0 0
        %5180 = vmatpush.bf16.xpose.msra.mxu0 %v3500
        %5181 = vmatmul.bf16.gmra.mxu0 %v975
        %v5182 = vpop.f32.mrf.mxu0
        %v5183 = vadd.f32 %v5170, %v5182
        %v5184 = vpop.f32.mrf.mxu0
        %5185 = vdwg.mxu0
        %5186 = vmatpush.bf16.xpose.msra.mxu0 0
        %5187 = vmatpush.bf16.xpose.msra.mxu0 0
        %5188 = vmatpush.bf16.xpose.msra.mxu0 0
        %5189 = vmatpush.bf16.xpose.msra.mxu0 0
        %5190 = vmatpush.bf16.xpose.msra.mxu0 0
        %5191 = vmatpush.bf16.xpose.msra.mxu0 0
        %5192 = vmatpush.bf16.xpose.msra.mxu0 0
        %5193 = vmatpush.bf16.xpose.msra.mxu0 %v3501
        %5194 = vmatmul.bf16.gmra.mxu0 %v976
        %v5195 = vpop.f32.mrf.mxu0
        %v5196 = vadd.f32 %v5183, %v5195
        %v5197 = vpop.f32.mrf.mxu0
        %5198 = vdwg.mxu0
        %5199 = vmatpush.bf16.xpose.msra.mxu0 0
        %5200 = vmatpush.bf16.xpose.msra.mxu0 0
        %5201 = vmatpush.bf16.xpose.msra.mxu0 0
        %5202 = vmatpush.bf16.xpose.msra.mxu0 0
        %5203 = vmatpush.bf16.xpose.msra.mxu0 0
        %5204 = vmatpush.bf16.xpose.msra.mxu0 0
        %5205 = vmatpush.bf16.xpose.msra.mxu0 0
        %5206 = vmatpush.bf16.xpose.msra.mxu0 %v3502
        %5207 = vmatmul.bf16.gmra.mxu0 %v977
        %v5208 = vpop.f32.mrf.mxu0
        %v5209 = vadd.f32 %v5196, %v5208
        %v5210 = vpop.f32.mrf.mxu0
        %5211 = vdwg.mxu0
        %5212 = vmatpush.bf16.xpose.msra.mxu0 0
        %5213 = vmatpush.bf16.xpose.msra.mxu0 0
        %5214 = vmatpush.bf16.xpose.msra.mxu0 0
        %5215 = vmatpush.bf16.xpose.msra.mxu0 0
        %5216 = vmatpush.bf16.xpose.msra.mxu0 0
        %5217 = vmatpush.bf16.xpose.msra.mxu0 0
        %5218 = vmatpush.bf16.xpose.msra.mxu0 0
        %5219 = vmatpush.bf16.xpose.msra.mxu0 %v3503
        %5220 = vmatmul.bf16.gmra.mxu0 %v978
        %v5221 = vpop.f32.mrf.mxu0
        %v5222 = vadd.f32 %v5209, %v5221
        %v5223 = vpop.f32.mrf.mxu0
        %5224 = vdwg.mxu0
        %5225 = vmatpush.bf16.xpose.msra.mxu0 0
        %5226 = vmatpush.bf16.xpose.msra.mxu0 0
        %5227 = vmatpush.bf16.xpose.msra.mxu0 0
        %5228 = vmatpush.bf16.xpose.msra.mxu0 0
        %5229 = vmatpush.bf16.xpose.msra.mxu0 0
        %5230 = vmatpush.bf16.xpose.msra.mxu0 0
        %5231 = vmatpush.bf16.xpose.msra.mxu0 0
        %5232 = vmatpush.bf16.xpose.msra.mxu0 %v3504
        %5233 = vmatmul.bf16.gmra.mxu0 %v979
        %v5234 = vpop.f32.mrf.mxu0
        %v5235 = vadd.f32 %v5222, %v5234
        %v5236 = vpop.f32.mrf.mxu0
        %5237 = vdwg.mxu0
        %5238 = vmatpush.bf16.xpose.msra.mxu0 0
        %5239 = vmatpush.bf16.xpose.msra.mxu0 0
        %5240 = vmatpush.bf16.xpose.msra.mxu0 0
        %5241 = vmatpush.bf16.xpose.msra.mxu0 0
        %5242 = vmatpush.bf16.xpose.msra.mxu0 0
        %5243 = vmatpush.bf16.xpose.msra.mxu0 0
        %5244 = vmatpush.bf16.xpose.msra.mxu0 0
        %5245 = vmatpush.bf16.xpose.msra.mxu0 %v3505
        %5246 = vmatmul.bf16.gmra.mxu0 %v980
        %v5247 = vpop.f32.mrf.mxu0
        %v5248 = vadd.f32 %v5235, %v5247
        %v5249 = vpop.f32.mrf.mxu0
        %5250 = vdwg.mxu0
        %5251 = vmatpush.bf16.xpose.msra.mxu0 0
        %5252 = vmatpush.bf16.xpose.msra.mxu0 0
        %5253 = vmatpush.bf16.xpose.msra.mxu0 0
        %5254 = vmatpush.bf16.xpose.msra.mxu0 0
        %5255 = vmatpush.bf16.xpose.msra.mxu0 0
        %5256 = vmatpush.bf16.xpose.msra.mxu0 0
        %5257 = vmatpush.bf16.xpose.msra.mxu0 0
        %5258 = vmatpush.bf16.xpose.msra.mxu0 %v3506
        %5259 = vmatmul.bf16.gmra.mxu0 %v981
        %v5260 = vpop.f32.mrf.mxu0
        %v5261 = vadd.f32 %v5248, %v5260
        %v5262 = vpop.f32.mrf.mxu0
        %5263 = vdwg.mxu0
        %5264 = vmatpush.bf16.xpose.msra.mxu0 0
        %5265 = vmatpush.bf16.xpose.msra.mxu0 0
        %5266 = vmatpush.bf16.xpose.msra.mxu0 0
        %5267 = vmatpush.bf16.xpose.msra.mxu0 0
        %5268 = vmatpush.bf16.xpose.msra.mxu0 0
        %5269 = vmatpush.bf16.xpose.msra.mxu0 0
        %5270 = vmatpush.bf16.xpose.msra.mxu0 0
        %5271 = vmatpush.bf16.xpose.msra.mxu0 %v3507
        %5272 = vmatmul.bf16.gmra.mxu0 %v982
        %v5273 = vpop.f32.mrf.mxu0
        %v5274 = vadd.f32 %v5261, %v5273
        %v5275 = vpop.f32.mrf.mxu0
        %5276 = vdwg.mxu0
        %5277 = vmatpush.bf16.xpose.msra.mxu0 0
        %5278 = vmatpush.bf16.xpose.msra.mxu0 0
        %5279 = vmatpush.bf16.xpose.msra.mxu0 0
        %5280 = vmatpush.bf16.xpose.msra.mxu0 0
        %5281 = vmatpush.bf16.xpose.msra.mxu0 0
        %5282 = vmatpush.bf16.xpose.msra.mxu0 0
        %5283 = vmatpush.bf16.xpose.msra.mxu0 0
        %5284 = vmatpush.bf16.xpose.msra.mxu0 %v3508
        %5285 = vmatmul.bf16.gmra.mxu0 %v983
        %v5286 = vpop.f32.mrf.mxu0
        %v5287 = vadd.f32 %v5274, %v5286
        %v5288 = vpop.f32.mrf.mxu0
        %5289 = vdwg.mxu0
        %5290 = vmatpush.bf16.xpose.msra.mxu0 0
        %5291 = vmatpush.bf16.xpose.msra.mxu0 0
        %5292 = vmatpush.bf16.xpose.msra.mxu0 0
        %5293 = vmatpush.bf16.xpose.msra.mxu0 0
        %5294 = vmatpush.bf16.xpose.msra.mxu0 0
        %5295 = vmatpush.bf16.xpose.msra.mxu0 0
        %5296 = vmatpush.bf16.xpose.msra.mxu0 0
        %5297 = vmatpush.bf16.xpose.msra.mxu0 %v3509
        %5298 = vmatmul.bf16.gmra.mxu0 %v984
        %v5299 = vpop.f32.mrf.mxu0
        %v5300 = vadd.f32 %v5287, %v5299
        %v5301 = vpop.f32.mrf.mxu0
        %5302 = vdwg.mxu0
        %5303 = vmatpush.bf16.xpose.msra.mxu0 0
        %5304 = vmatpush.bf16.xpose.msra.mxu0 0
        %5305 = vmatpush.bf16.xpose.msra.mxu0 0
        %5306 = vmatpush.bf16.xpose.msra.mxu0 0
        %5307 = vmatpush.bf16.xpose.msra.mxu0 0
        %5308 = vmatpush.bf16.xpose.msra.mxu0 0
        %5309 = vmatpush.bf16.xpose.msra.mxu0 0
        %5310 = vmatpush.bf16.xpose.msra.mxu0 %v3510
        %5311 = vmatmul.bf16.gmra.mxu0 %v985
        %v5312 = vpop.f32.mrf.mxu0
        %v5313 = vadd.f32 %v5300, %v5312
        %v5314 = vpop.f32.mrf.mxu0
        %5315 = vdwg.mxu0
        %5316 = vmatpush.bf16.xpose.msra.mxu0 0
        %5317 = vmatpush.bf16.xpose.msra.mxu0 0
        %5318 = vmatpush.bf16.xpose.msra.mxu0 0
        %5319 = vmatpush.bf16.xpose.msra.mxu0 0
        %5320 = vmatpush.bf16.xpose.msra.mxu0 0
        %5321 = vmatpush.bf16.xpose.msra.mxu0 0
        %5322 = vmatpush.bf16.xpose.msra.mxu0 0
        %5323 = vmatpush.bf16.xpose.msra.mxu0 %v3511
        %5324 = vmatmul.bf16.gmra.mxu0 %v986
        %v5325 = vpop.f32.mrf.mxu0
        %v5326 = vadd.f32 %v5313, %v5325
        %v5327 = vpop.f32.mrf.mxu0
        %5328 = vdwg.mxu0
        %5329 = vmatpush.bf16.xpose.msra.mxu0 0
        %5330 = vmatpush.bf16.xpose.msra.mxu0 0
        %5331 = vmatpush.bf16.xpose.msra.mxu0 0
        %5332 = vmatpush.bf16.xpose.msra.mxu0 0
        %5333 = vmatpush.bf16.xpose.msra.mxu0 0
        %5334 = vmatpush.bf16.xpose.msra.mxu0 0
        %5335 = vmatpush.bf16.xpose.msra.mxu0 0
        %5336 = vmatpush.bf16.xpose.msra.mxu0 %v3512
        %5337 = vmatmul.bf16.gmra.mxu0 %v987
        %v5338 = vpop.f32.mrf.mxu0
        %v5339 = vadd.f32 %v5326, %v5338
        %v5340 = vpop.f32.mrf.mxu0
        %5341 = vdwg.mxu0
        %5342 = vmatpush.bf16.xpose.msra.mxu0 0
        %5343 = vmatpush.bf16.xpose.msra.mxu0 0
        %5344 = vmatpush.bf16.xpose.msra.mxu0 0
        %5345 = vmatpush.bf16.xpose.msra.mxu0 0
        %5346 = vmatpush.bf16.xpose.msra.mxu0 0
        %5347 = vmatpush.bf16.xpose.msra.mxu0 0
        %5348 = vmatpush.bf16.xpose.msra.mxu0 0
        %5349 = vmatpush.bf16.xpose.msra.mxu0 %v3513
        %5350 = vmatmul.bf16.gmra.mxu0 %v988
        %v5351 = vpop.f32.mrf.mxu0
        %v5352 = vadd.f32 %v5339, %v5351
        %v5353 = vpop.f32.mrf.mxu0
        %5354 = vdwg.mxu0
        %5355 = vmatpush.bf16.xpose.msra.mxu0 0
        %5356 = vmatpush.bf16.xpose.msra.mxu0 0
        %5357 = vmatpush.bf16.xpose.msra.mxu0 0
        %5358 = vmatpush.bf16.xpose.msra.mxu0 0
        %5359 = vmatpush.bf16.xpose.msra.mxu0 0
        %5360 = vmatpush.bf16.xpose.msra.mxu0 0
        %5361 = vmatpush.bf16.xpose.msra.mxu0 0
        %5362 = vmatpush.bf16.xpose.msra.mxu0 %v3514
        %5363 = vmatmul.bf16.gmra.mxu0 %v989
        %v5364 = vpop.f32.mrf.mxu0
        %v5365 = vadd.f32 %v5352, %v5364
        %v5366 = vpop.f32.mrf.mxu0
        %5367 = vdwg.mxu0
        %5368 = vmatpush.bf16.xpose.msra.mxu0 0
        %5369 = vmatpush.bf16.xpose.msra.mxu0 0
        %5370 = vmatpush.bf16.xpose.msra.mxu0 0
        %5371 = vmatpush.bf16.xpose.msra.mxu0 0
        %5372 = vmatpush.bf16.xpose.msra.mxu0 0
        %5373 = vmatpush.bf16.xpose.msra.mxu0 0
        %5374 = vmatpush.bf16.xpose.msra.mxu0 0
        %5375 = vmatpush.bf16.xpose.msra.mxu0 %v3515
        %5376 = vmatmul.bf16.gmra.mxu0 %v990
        %v5377 = vpop.f32.mrf.mxu0
        %v5378 = vadd.f32 %v5365, %v5377
        %v5379 = vpop.f32.mrf.mxu0
        %5380 = vdwg.mxu0
        %5381 = vmatpush.bf16.xpose.msra.mxu0 0
        %5382 = vmatpush.bf16.xpose.msra.mxu0 0
        %5383 = vmatpush.bf16.xpose.msra.mxu0 0
        %5384 = vmatpush.bf16.xpose.msra.mxu0 0
        %5385 = vmatpush.bf16.xpose.msra.mxu0 0
        %5386 = vmatpush.bf16.xpose.msra.mxu0 0
        %5387 = vmatpush.bf16.xpose.msra.mxu0 0
        %5388 = vmatpush.bf16.xpose.msra.mxu0 %v3516
        %5389 = vmatmul.bf16.gmra.mxu0 %v991
        %v5390 = vpop.f32.mrf.mxu0
        %v5391 = vadd.f32 %v5378, %v5390
        %v5392 = vpop.f32.mrf.mxu0
        %5393 = vdwg.mxu0
        %5394 = vmatpush.bf16.xpose.msra.mxu0 0
        %5395 = vmatpush.bf16.xpose.msra.mxu0 0
        %5396 = vmatpush.bf16.xpose.msra.mxu0 0
        %5397 = vmatpush.bf16.xpose.msra.mxu0 0
        %5398 = vmatpush.bf16.xpose.msra.mxu0 0
        %5399 = vmatpush.bf16.xpose.msra.mxu0 0
        %5400 = vmatpush.bf16.xpose.msra.mxu0 0
        %5401 = vmatpush.bf16.xpose.msra.mxu0 %v3517
        %5402 = vmatmul.bf16.gmra.mxu0 %v992
        %v5403 = vpop.f32.mrf.mxu0
        %v5404 = vadd.f32 %v5391, %v5403
        %v5405 = vpop.f32.mrf.mxu0
        %5406 = vdwg.mxu0
        %5407 = vmatpush.bf16.xpose.msra.mxu0 0
        %5408 = vmatpush.bf16.xpose.msra.mxu0 0
        %5409 = vmatpush.bf16.xpose.msra.mxu0 0
        %5410 = vmatpush.bf16.xpose.msra.mxu0 0
        %5411 = vmatpush.bf16.xpose.msra.mxu0 0
        %5412 = vmatpush.bf16.xpose.msra.mxu0 0
        %5413 = vmatpush.bf16.xpose.msra.mxu0 0
        %5414 = vmatpush.bf16.xpose.msra.mxu0 %v3518
        %5415 = vmatmul.bf16.gmra.mxu0 %v993
        %v5416 = vpop.f32.mrf.mxu0
        %v5417 = vadd.f32 %v5404, %v5416
        %v5418 = vpop.f32.mrf.mxu0
        %5419 = vdwg.mxu0
        %5420 = vmatpush.bf16.xpose.msra.mxu0 0
        %5421 = vmatpush.bf16.xpose.msra.mxu0 0
        %5422 = vmatpush.bf16.xpose.msra.mxu0 0
        %5423 = vmatpush.bf16.xpose.msra.mxu0 0
        %5424 = vmatpush.bf16.xpose.msra.mxu0 0
        %5425 = vmatpush.bf16.xpose.msra.mxu0 0
        %5426 = vmatpush.bf16.xpose.msra.mxu0 0
        %5427 = vmatpush.bf16.xpose.msra.mxu0 %v3519
        %5428 = vmatmul.bf16.gmra.mxu0 %v994
        %v5429 = vpop.f32.mrf.mxu0
        %v5430 = vadd.f32 %v5417, %v5429
        %v5431 = vpop.f32.mrf.mxu0
        %5432 = vdwg.mxu0
        %5433 = vmatpush.bf16.xpose.msra.mxu0 0
        %5434 = vmatpush.bf16.xpose.msra.mxu0 0
        %5435 = vmatpush.bf16.xpose.msra.mxu0 0
        %5436 = vmatpush.bf16.xpose.msra.mxu0 0
        %5437 = vmatpush.bf16.xpose.msra.mxu0 0
        %5438 = vmatpush.bf16.xpose.msra.mxu0 0
        %5439 = vmatpush.bf16.xpose.msra.mxu0 0
        %5440 = vmatpush.bf16.xpose.msra.mxu0 %v3520
        %5441 = vmatmul.bf16.gmra.mxu0 %v995
        %v5442 = vpop.f32.mrf.mxu0
        %v5443 = vadd.f32 %v5430, %v5442
        %v5444 = vpop.f32.mrf.mxu0
        %5445 = vdwg.mxu0
        %v5450 = vrot.slane %v4793, 6
        %v5451 = vrot.slane %v5118, 4
        %v5452 = vrot.slane %v5443, 2
        %vm5453 = vcmask 1041408
        %v5454 = vsel %vm5453, %v4468, %v5450
        %vm5455 = vcmask 1045508
        %v5456 = vsel %vm5455, %v5451, %v5452
        %vm5457 = vcmask 1043456
        %v5458 = vsel %vm5457, %v5454, %v5456
        %v5460 = vadd.f32 %v248, %v5458
        %vm5461 = vcmask 1043458
        %vm5462 = vmor %vm5461, %vm5453
        %vm5463 = vmor %vm5455, %vm5462
        %vm5464 = vcmask 130054
        %vm5465 = vmor %vm5464, %vm5463
        %5466 = vst.msk [vmem:[#allocation8] sm:$0xff] %vm5465, %v5460
        %p5467 = scmp.eq.s32.totalorder %s21, 1
        // Predicated region
        $region49: #{backward_nn_forward.1} parent=31 // pred_check
          %p5468 = pneg %p5467
        $region50: #{backward_nn_forward.1} parent=31 // pred_check_branch
          %5470 = sbr.rel (%p5468) target = $region52
        $region51: #{backward_nn_forward.1} parent=31 // pred_region
          %v5471 = vld [vmem:[#allocation8] sm:$0xff]
          %v5472 = vld [vmem:[#allocation7] sm:$0xf]
          %v5474 = vperm.slane %v5472, 0
          %v5475 = vperm.slane %v5472, 1
          %v5476 = vperm.slane %v5472, 2
          %v5477 = vperm.slane %v5472, 3
          %v5478 = vrot.slane %v5475, 6
          %v5479 = vrot.slane %v5476, 4
          %v5480 = vrot.slane %v5477, 2
          %v5481 = vsel %vm5453, %v5474, %v5478
          %v5482 = vsel %vm5455, %v5479, %v5480
          %v5483 = vsel %vm5457, %v5481, %v5482
          %v5485 = vadd.f32 %v5471, %v5483
          %5486 = vst.msk [vmem:[#allocation8] sm:$0xff] %vm5465, %v5485
        $region52: #{backward_nn_forward.1} parent=31 // pred_fallthru
          _
        // Predicated region
        $region53: #{backward_nn_forward.1} parent=31 // pred_check
          %p5487 = pneg %p107
        $region54: #{backward_nn_forward.1} parent=31 // pred_check_branch
          %5489 = sbr.rel (%p5487) target = $region56
        $region55: #{backward_nn_forward.1} parent=31 // pred_region
          %5491 = vsyncadd [#allocation4], 0
          %s5493 = sshll.u32 [#allocation8], 4
          %s5494 = int_to_ptr.vmem [resolvable:$true] %s5493
          %s5495 = sshll.u32 %s3, 4
          %s5496 = int_to_ptr.hbm [resolvable:$true] %s5495
          %5498 = dma.vmem_to_hbm [thread:$0]  %s5494, 128, %s5496, [#allocation4]
        $region56: #{backward_nn_forward.1} parent=31 // pred_fallthru
          _
        // Predicated region
        $region57: #{backward_nn_forward.1} parent=31 // pred_check
          %p5499 = pneg %p107
        $region58: #{backward_nn_forward.1} parent=31 // pred_check_branch
          %5501 = sbr.rel (%p5499) target = $region60
        $region59: #{backward_nn_forward.1} parent=31 // pred_region
          %5503 = dma.done [#allocation4], 128
        $region60: #{backward_nn_forward.1} parent=31 // pred_fallthru
          _
      $region32: #{backward_nn_forward.1} parent=5 // pred_fallthru
        _
      %p5504 = scmp.le.s32.totalorder 2, %s16
      // Predicated region
      $region61: #{backward_nn_forward.1} parent=5 // pred_check
        %p5505 = pneg %p5504
      $region62: #{backward_nn_forward.1} parent=5 // pred_check_branch
        %5507 = sbr.rel (%p5505) target = $region64
      $region63: #{backward_nn_forward.1} parent=5 // pred_region
        %s5508 = ssub.s32 %s16, 2
      $region64: #{backward_nn_forward.1} parent=5 // pred_fallthru
        _
    $region6: #{backward_nn_forward.1} parent=1 // loop_footer
      %s20 = sadd.s32 1, %s16
    $region7: #{backward_nn_forward.1} parent=1 // loop_footer_branch
      %15 = sbr.rel target = $region3
    $region8: #{backward_nn_forward.1} parent=1 // loop_exit
      _
    %5509 = vsyncpa [#allocation3], 1
    %s5510 = scalar_lea.sflag [#allocation3], 1
    %5511 = vsyncpa %s5510, 1
    %5512 = vsyncpa [#allocation6], 1
    %s5513 = scalar_lea.sflag [#allocation6], 1
    %5514 = vsyncpa %s5513, 1
    %5515 = vsyncpa [#allocation4], 1
    %s5516 = scalar_lea.sflag [#allocation4], 1
    %5517 = vsyncpa %s5516, 1

</llo_original>
